<compile_context>
chip_gen: v7x
topology: tpu7x:2x2x1
jax: 0.10.0
libtpu: 0.0.40
codegen_flags: <defaults>
</compile_context>

<pallas_src>
import math
from functools import partial

import numpy as np
import jax
import jax.numpy as jnp
from jax.experimental import pallas as pl
from jax.experimental.pallas import tpu as pltpu

# Align matmul precision between the Pallas kernel and the pure-JAX reference.
jax.config.update("jax_default_matmul_precision", "highest")


# ----------------------------------------------------------------------------
# In-kernel helpers (f32 elementwise everywhere, incl. on v5e)
# ----------------------------------------------------------------------------
def _erf(x):
    # Abramowitz & Stegun 7.1.26 polynomial (|err| < 1.5e-7); only ops that
    # are guaranteed to lower in Mosaic (exp / mul / add / where / abs).
    a1, a2, a3, a4, a5 = (0.254829592, -0.284496736, 1.421413741,
                          -1.453152027, 1.061405429)
    p = 0.3275911
    sign = jnp.where(x >= 0.0, 1.0, -1.0)
    ax = jnp.abs(x)
    t = 1.0 / (1.0 + p * ax)
    poly = ((((a5 * t + a4) * t + a3) * t + a2) * t + a1) * t
    return sign * (1.0 - poly * jnp.exp(-ax * ax))


def _gelu_exact(x):
    # torch.nn.GELU() default = exact (erf-based) GELU.
    return 0.5 * x * (1.0 + _erf(x * 0.7071067811865476))


# ----------------------------------------------------------------------------
# Fused kernel: depthwise+pointwise conv, attention path, LayerNorm, MLP+GELU
# ----------------------------------------------------------------------------
def _hformer_fused_kernel(xpf_ref, fmpT_ref, cmask_ref, gmask_ref, dww_ref,
                          pww_ref, wq_ref, wk_ref, wvT_ref, w1_ref, b1_ref,
                          w2_ref, b2_ref, out_ref, *, C, W, HW, PAD):
    f32 = jnp.float32

    # ---------------- path A: depthwise 7x7 'same' + pointwise 1x1 ----------
    # xpf_ref is the channel-major flat image zero-padded by PAD lanes on each
    # side; tap (dh, dj) is a static lane-shifted slice.  Horizontal 'same'
    # validity comes from the precomputed per-dj lane mask.
    dww = dww_ref[...]                                        # (C, 49)
    dw = jnp.zeros((C, HW), f32)
    for dj in range(7):
        acc = jnp.zeros((C, HW), f32)
        for dh in range(7):
            shift = (dh - 3) * W + (dj - 3)
            tap = xpf_ref[:, pl.ds(PAD + shift, HW)]          # (C, HW)
            t = dh * 7 + dj
            acc = acc + dww[:, t:t + 1] * tap
        dw = dw + cmask_ref[dj:dj + 1, :] * acc
    pa = jnp.dot(pww_ref[...], dw, preferred_element_type=f32)   # (C, HW)  MXU

    # ---------------- path B: attention over max-pooled tokens --------------
    fmpT = fmpT_ref[...]                                      # (C, Np)
    qT = jnp.dot(wq_ref[...], fmpT, preferred_element_type=f32)  # 1/sqrt(dk) folded
    kT = jnp.dot(wk_ref[...], fmpT, preferred_element_type=f32)
    att = jax.lax.dot_general(qT, kT, (((1,), (1,)), ((), ())),
                              preferred_element_type=f32)     # (C, C) = q^T k / sqrt(dk)
    att = att - jnp.max(att, axis=-1, keepdims=True)
    e = jnp.exp(att)
    att = e * pl.reciprocal(jnp.sum(e, axis=-1, keepdims=True), approx=True)
    mproj = jnp.dot(wvT_ref[...], att, preferred_element_type=f32)  # (C, C) = Wv^T att

    # pb = (images.view(N, C) @ Wv.T @ att).view(C, H, W), computed directly
    # in channel-major layout:  pb[c, n] = sum_j X[c, n - n%C + j] * M[j, n%C]
    shifted = {d: xpf_ref[:, pl.ds(PAD + d, HW)] for d in range(1 - C, C)}
    pb = jnp.zeros((C, HW), f32)
    for r in range(C):
        mask_r = gmask_ref[r:r + 1, :]                        # (1, HW)  n%C == r
        for j in range(C):
            pb = pb + (mproj[j:j + 1, r:r + 1] * mask_r) * shifted[j - r]

    # ------------- combine, LayerNorm([C,H,W], no affine), MLP + GELU -------
    x = pa + pb
    inv_n = 1.0 / float(C * HW)
    mu = jnp.sum(x, keepdims=True) * inv_n                    # (1, 1)
    xc = x - mu
    var = jnp.sum(xc * xc, keepdims=True) * inv_n
    xn = xc * jax.lax.rsqrt(var + 1e-5)

    h = jnp.dot(w1_ref[...], xn, preferred_element_type=f32) + b1_ref[...]   # (4C, HW)
    h = _gelu_exact(h)
    out = jnp.dot(w2_ref[...], h, preferred_element_type=f32) + b2_ref[...]  # (C, HW)
    out_ref[...] = out


# ----------------------------------------------------------------------------
# Wrapper
# ----------------------------------------------------------------------------
@partial(jax.jit, static_argnames=("pool_k", "dk"))
def hformer_block_forward(images, params, *, pool_k, dk):
    B, C, H, W = images.shape
    HW = H * W
    Hp, Wp = H // pool_k, W // pool_k
    Np = Hp * Wp
    # This lane-dense specialisation assumes the spatial size is a multiple of
    # the channel count (true for the module's intended shapes: torch's raw
    # .view(B,-1,C) requires it anyway for the NCHW round-trip to line up).
    assert HW % C == 0

    PAD = 3 * W + 3                    # covers conv shifts (+-(3W+3))
    assert PAD >= C - 1                # ... and the +-(C-1) v-path shifts
    PADTOT = HW + 2 * PAD

    # --- input-side XLA glue: flatten/pad, max-pool, raw .view reshapes -----
    xflat = images.reshape(B, C, HW)
    xpf = jnp.pad(xflat, ((0, 0), (0, 0), (PAD, PAD)))
    mp = images.reshape(B, C, Hp, pool_k, Wp, pool_k).max(axis=(3, 5))
    # torch: max_pooled.view(B, -1, C)  (raw NCHW reinterpretation); the
    # kernel wants it token-transposed -> (B, C, Np).
    fmpT = jnp.swapaxes(mp.reshape(B, Np, C), 1, 2)

    # --- constant lane masks (built once at trace time) ---------------------
    n_idx = np.arange(HW)
    wcol = n_idx % W
    cmask = np.stack(
        [((wcol + dj - 3 >= 0) & (wcol + dj - 3 <= W - 1)).astype(np.float32)
         for dj in range(7)], axis=0)                          # (7, HW)
    gmask = np.stack([(n_idx % C == r).astype(np.float32)
                      for r in range(C)], axis=0)              # (C, HW)

    # --- weights, pre-arranged for MXU / lane broadcast ----------------------
    inv_sqrt_dk = 1.0 / math.sqrt(dk)
    wq_s = params["wq"] * inv_sqrt_dk                          # scale folded into q
    wk = params["wk"]
    wvT = params["wv"].T
    dww = params["dw_w"].reshape(C, 49)
    pww = params["pw_w"]
    w1 = params["w1"]
    b1 = params["b1"].reshape(4 * C, 1)
    w2 = params["w2"]
    b2 = params["b2"].reshape(C, 1)

    def shared(shape):
        return pl.BlockSpec(shape, lambda b: (0,) * len(shape))

    out_flat = pl.pallas_call(
        partial(_hformer_fused_kernel, C=C, W=W, HW=HW, PAD=PAD),
        grid=(B,),
        in_specs=[
            pl.BlockSpec((None, C, PADTOT), lambda b: (b, 0, 0)),  # padded flat img
            pl.BlockSpec((None, C, Np), lambda b: (b, 0, 0)),      # pooled tokens^T
            shared((7, HW)),                                       # conv lane masks
            shared((C, HW)),                                       # phase lane masks
            shared((C, 49)),                                       # depthwise w
            shared((C, C)),                                        # pointwise w
            shared((C, C)),                                        # wq (scaled)
            shared((C, C)),                                        # wk
            shared((C, C)),                                        # wv^T
            shared((4 * C, C)),                                    # linear_1 w
            shared((4 * C, 1)),                                    # linear_1 b
            shared((C, 4 * C)),                                    # linear_2 w
            shared((C, 1)),                                        # linear_2 b
        ],
        out_specs=pl.BlockSpec((None, C, HW), lambda b: (b, 0, 0)),
        out_shape=jax.ShapeDtypeStruct((B, C, HW), jnp.float32),
        compiler_params=pltpu.CompilerParams(
            dimension_semantics=("parallel",)),
    )(xpf, fmpT, jnp.asarray(cmask), jnp.asarray(gmask), dww, pww,
      wq_s, wk, wvT, w1, b1, w2, b2)

    return out_flat.reshape(B, C, H, W)    # metadata-only layout restore


# ----------------------------------------------------------------------------
# Pure-JAX reference (for in-script verification only)
# ----------------------------------------------------------------------------
def hformer_block_reference(images, params, *, pool_k, dk):
    B, C, H, W = images.shape
    Hp, Wp = H // pool_k, W // pool_k
    xpad = jnp.pad(images, ((0, 0), (0, 0), (3, 3), (3, 3)))
    dw = jnp.zeros_like(images)
    for dh in range(7):
        for dj in range(7):
            dw = dw + xpad[:, :, dh:dh + H, dj:dj + W] * \
                params["dw_w"][None, :, dh, dj, None, None]
    pa = jnp.einsum('oc,bchw->bohw', params["pw_w"], dw)
    mp = images.reshape(B, C, Hp, pool_k, Wp, pool_k).max(axis=(3, 5))
    fmp = mp.reshape(B, Hp * Wp, C)
    q = fmp @ params["wq"].T
    k = fmp @ params["wk"].T
    v = images.reshape(B, H * W, C) @ params["wv"].T
    att = jnp.einsum('bnc,bnd->bcd', q, k) / jnp.sqrt(jnp.float32(dk))
    att = jax.nn.softmax(att, axis=-1)
    pb = jnp.einsum('bnc,bcd->bnd', v, att).reshape(B, C, H, W)
    x = pa + pb
    mean = x.mean(axis=(1, 2, 3), keepdims=True)
    var = x.var(axis=(1, 2, 3), keepdims=True)
    xn = (x - mean) / jnp.sqrt(var + 1e-5)
    h = jnp.einsum('oc,bchw->bohw', params["w1"], xn) + params["b1"][None, :, None, None]
    h = jax.nn.gelu(h, approximate=False)
    return jnp.einsum('oc,bchw->bohw', params["w2"], h) + params["b2"][None, :, None, None]


def init_params(key, C):
    ks = jax.random.split(key, 9)
    s = 0.25
    return {
        "dw_w": s * jax.random.normal(ks[0], (C, 7, 7), jnp.float32),   # depthwise (C,1,7,7)
        "pw_w": s * jax.random.normal(ks[1], (C, C), jnp.float32),      # pointwise (C,C,1,1)
        "wq":   s * jax.random.normal(ks[2], (C, C), jnp.float32),
        "wk":   s * jax.random.normal(ks[3], (C, C), jnp.float32),
        "wv":   s * jax.random.normal(ks[4], (C, C), jnp.float32),
        "w1":   s * jax.random.normal(ks[5], (4 * C, C), jnp.float32),  # Conv2d(C,4C,1)
        "b1":   s * jax.random.normal(ks[6], (4 * C,), jnp.float32),
        "w2":   s * jax.random.normal(ks[7], (C, 4 * C), jnp.float32),  # Conv2d(4C,C,1)
        "b2":   s * jax.random.normal(ks[8], (C,), jnp.float32),
    }
    # NOTE: self_attention_linear from __init__ is never used in forward(), so
    # it is intentionally not instantiated here.


if __name__ == "__main__":
    key = jax.random.PRNGKey(0)
    kp, kx = jax.random.split(key)
    B, C, H, W = 2, 4, 16, 16
    pool_k, dk = 2, 4.0

    params = init_params(kp, C)
    images = jax.random.normal(kx, (B, C, H, W), jnp.float32)

    out = hformer_block_forward(images, params, pool_k=pool_k, dk=dk)
    out = jax.block_until_ready(out)

    ref = hformer_block_reference(images, params, pool_k=pool_k, dk=dk)
    err = float(jnp.max(jnp.abs(out - ref)))
    assert out.shape == (B, C, H, W)
    # Loose tolerance: guards structure/semantics; tiny slop allowed for
    # matmul-precision / erf-approx / approx-reciprocal differences.
    assert err < 2e-2, f"max abs err vs reference: {err}"
    print("KERNEL_OK")
</pallas_src>

<mosaic_0001>
module attributes {stable_mosaic.version = 11 : i64} {
  func.func @_hformer_fused_kernel(%arg0: i32, %arg1: memref<1x4x358xf32, #tpu.memory_space<vmem>>, %arg2: memref<1x4x64xf32, #tpu.memory_space<vmem>>, %arg3: memref<7x256xf32, #tpu.memory_space<vmem>>, %arg4: memref<4x256xf32, #tpu.memory_space<vmem>>, %arg5: memref<4x49xf32, #tpu.memory_space<vmem>>, %arg6: memref<4x4xf32, #tpu.memory_space<vmem>>, %arg7: memref<4x4xf32, #tpu.memory_space<vmem>>, %arg8: memref<4x4xf32, #tpu.memory_space<vmem>>, %arg9: memref<4x4xf32, #tpu.memory_space<vmem>>, %arg10: memref<16x4xf32, #tpu.memory_space<vmem>>, %arg11: memref<16x1xf32, #tpu.memory_space<vmem>>, %arg12: memref<4x16xf32, #tpu.memory_space<vmem>>, %arg13: memref<4x1xf32, #tpu.memory_space<vmem>>, %arg14: memref<1x4x256xf32, #tpu.memory_space<vmem>>) attributes {dimension_semantics = [#tpu.dimension_semantics<parallel>], iteration_bounds = array<i64: 2>, scalar_prefetch = 0 : i64, scratch_operands = 0 : i64, tpu.core_type = #tpu.core_type<tc>, window_params = [{transform_indices = @transform_0, window_bounds = array<i64: 1, 4, 358>}, {transform_indices = @transform_1, window_bounds = array<i64: 1, 4, 64>}, {pipeline_mode = #tpu.pipeline_mode<synchronous>, transform_indices = @transform_2, window_bounds = array<i64: 7, 256>}, {pipeline_mode = #tpu.pipeline_mode<synchronous>, transform_indices = @transform_3, window_bounds = array<i64: 4, 256>}, {pipeline_mode = #tpu.pipeline_mode<synchronous>, transform_indices = @transform_4, window_bounds = array<i64: 4, 49>}, {pipeline_mode = #tpu.pipeline_mode<synchronous>, transform_indices = @transform_5, window_bounds = array<i64: 4, 4>}, {pipeline_mode = #tpu.pipeline_mode<synchronous>, transform_indices = @transform_6, window_bounds = array<i64: 4, 4>}, {pipeline_mode = #tpu.pipeline_mode<synchronous>, transform_indices = @transform_7, window_bounds = array<i64: 4, 4>}, {pipeline_mode = #tpu.pipeline_mode<synchronous>, transform_indices = @transform_8, window_bounds = array<i64: 4, 4>}, {pipeline_mode = #tpu.pipeline_mode<synchronous>, transform_indices = @transform_9, window_bounds = array<i64: 16, 4>}, {pipeline_mode = #tpu.pipeline_mode<synchronous>, transform_indices = @transform_10, window_bounds = array<i64: 16, 1>}, {pipeline_mode = #tpu.pipeline_mode<synchronous>, transform_indices = @transform_11, window_bounds = array<i64: 4, 16>}, {pipeline_mode = #tpu.pipeline_mode<synchronous>, transform_indices = @transform_12, window_bounds = array<i64: 4, 1>}, {transform_indices = @transform_13, window_bounds = array<i64: 1, 4, 256>}]} {
    %c0 = arith.constant 0 : index
    %c0_0 = arith.constant 0 : index
    %0 = vector.load %arg5[%c0, %c0_0] : memref<4x49xf32, #tpu.memory_space<vmem>>, vector<4x49xf32>
    %cst = arith.constant 0.000000e+00 : f32
    %1 = vector.broadcast %cst : f32 to vector<4x256xf32>
    %cst_1 = arith.constant 0.000000e+00 : f32
    %2 = vector.broadcast %cst_1 : f32 to vector<4x256xf32>
    %c0_2 = arith.constant 0 : index
    %c0_3 = arith.constant 0 : index
    %c0_4 = arith.constant 0 : index
    %3 = vector.load %arg1[%c0_2, %c0_3, %c0_4] : memref<1x4x358xf32, #tpu.memory_space<vmem>>, vector<1x4x256xf32>
    %4 = vector.shape_cast %3 : vector<1x4x256xf32> to vector<4x256xf32>
    %5 = vector.extract_strided_slice %0 {offsets = [0, 0], sizes = [4, 1], strides = [1, 1]} : vector<4x49xf32> to vector<4x1xf32>
    %6 = vector.broadcast %5 : vector<4x1xf32> to vector<4x256xf32>
    %7 = arith.mulf %6, %4 : vector<4x256xf32>
    %8 = arith.addf %2, %7 : vector<4x256xf32>
    %c0_5 = arith.constant 0 : index
    %c0_6 = arith.constant 0 : index
    %c16 = arith.constant 16 : index
    %9 = vector.load %arg1[%c0_5, %c0_6, %c16] : memref<1x4x358xf32, #tpu.memory_space<vmem>>, vector<1x4x256xf32>
    %10 = vector.shape_cast %9 : vector<1x4x256xf32> to vector<4x256xf32>
    %11 = vector.extract_strided_slice %0 {offsets = [0, 7], sizes = [4, 1], strides = [1, 1]} : vector<4x49xf32> to vector<4x1xf32>
    %12 = vector.broadcast %11 : vector<4x1xf32> to vector<4x256xf32>
    %13 = arith.mulf %12, %10 : vector<4x256xf32>
    %14 = arith.addf %8, %13 : vector<4x256xf32>
    %c0_7 = arith.constant 0 : index
    %c0_8 = arith.constant 0 : index
    %c32 = arith.constant 32 : index
    %15 = vector.load %arg1[%c0_7, %c0_8, %c32] : memref<1x4x358xf32, #tpu.memory_space<vmem>>, vector<1x4x256xf32>
    %16 = vector.shape_cast %15 : vector<1x4x256xf32> to vector<4x256xf32>
    %17 = vector.extract_strided_slice %0 {offsets = [0, 14], sizes = [4, 1], strides = [1, 1]} : vector<4x49xf32> to vector<4x1xf32>
    %18 = vector.broadcast %17 : vector<4x1xf32> to vector<4x256xf32>
    %19 = arith.mulf %18, %16 : vector<4x256xf32>
    %20 = arith.addf %14, %19 : vector<4x256xf32>
    %c0_9 = arith.constant 0 : index
    %c0_10 = arith.constant 0 : index
    %c48 = arith.constant 48 : index
    %21 = vector.load %arg1[%c0_9, %c0_10, %c48] : memref<1x4x358xf32, #tpu.memory_space<vmem>>, vector<1x4x256xf32>
    %22 = vector.shape_cast %21 : vector<1x4x256xf32> to vector<4x256xf32>
    %23 = vector.extract_strided_slice %0 {offsets = [0, 21], sizes = [4, 1], strides = [1, 1]} : vector<4x49xf32> to vector<4x1xf32>
    %24 = vector.broadcast %23 : vector<4x1xf32> to vector<4x256xf32>
    %25 = arith.mulf %24, %22 : vector<4x256xf32>
    %26 = arith.addf %20, %25 : vector<4x256xf32>
    %c0_11 = arith.constant 0 : index
    %c0_12 = arith.constant 0 : index
    %c64 = arith.constant 64 : index
    %27 = vector.load %arg1[%c0_11, %c0_12, %c64] : memref<1x4x358xf32, #tpu.memory_space<vmem>>, vector<1x4x256xf32>
    %28 = vector.shape_cast %27 : vector<1x4x256xf32> to vector<4x256xf32>
    %29 = vector.extract_strided_slice %0 {offsets = [0, 28], sizes = [4, 1], strides = [1, 1]} : vector<4x49xf32> to vector<4x1xf32>
    %30 = vector.broadcast %29 : vector<4x1xf32> to vector<4x256xf32>
    %31 = arith.mulf %30, %28 : vector<4x256xf32>
    %32 = arith.addf %26, %31 : vector<4x256xf32>
    %c0_13 = arith.constant 0 : index
    %c0_14 = arith.constant 0 : index
    %c80 = arith.constant 80 : index
    %33 = vector.load %arg1[%c0_13, %c0_14, %c80] : memref<1x4x358xf32, #tpu.memory_space<vmem>>, vector<1x4x256xf32>
    %34 = vector.shape_cast %33 : vector<1x4x256xf32> to vector<4x256xf32>
    %35 = vector.extract_strided_slice %0 {offsets = [0, 35], sizes = [4, 1], strides = [1, 1]} : vector<4x49xf32> to vector<4x1xf32>
    %36 = vector.broadcast %35 : vector<4x1xf32> to vector<4x256xf32>
    %37 = arith.mulf %36, %34 : vector<4x256xf32>
    %38 = arith.addf %32, %37 : vector<4x256xf32>
    %c0_15 = arith.constant 0 : index
    %c0_16 = arith.constant 0 : index
    %c96 = arith.constant 96 : index
    %39 = vector.load %arg1[%c0_15, %c0_16, %c96] : memref<1x4x358xf32, #tpu.memory_space<vmem>>, vector<1x4x256xf32>
    %40 = vector.shape_cast %39 : vector<1x4x256xf32> to vector<4x256xf32>
    %41 = vector.extract_strided_slice %0 {offsets = [0, 42], sizes = [4, 1], strides = [1, 1]} : vector<4x49xf32> to vector<4x1xf32>
    %42 = vector.broadcast %41 : vector<4x1xf32> to vector<4x256xf32>
    %43 = arith.mulf %42, %40 : vector<4x256xf32>
    %44 = arith.addf %38, %43 : vector<4x256xf32>
    %c0_17 = arith.constant 0 : index
    %c0_18 = arith.constant 0 : index
    %45 = vector.load %arg3[%c0_17, %c0_18] : memref<7x256xf32, #tpu.memory_space<vmem>>, vector<1x256xf32>
    %46 = vector.broadcast %45 : vector<1x256xf32> to vector<4x256xf32>
    %47 = arith.mulf %46, %44 : vector<4x256xf32>
    %48 = arith.addf %1, %47 : vector<4x256xf32>
    %cst_19 = arith.constant 0.000000e+00 : f32
    %49 = vector.broadcast %cst_19 : f32 to vector<4x256xf32>
    %c0_20 = arith.constant 0 : index
    %c0_21 = arith.constant 0 : index
    %c1 = arith.constant 1 : index
    %50 = vector.load %arg1[%c0_20, %c0_21, %c1] : memref<1x4x358xf32, #tpu.memory_space<vmem>>, vector<1x4x256xf32>
    %51 = vector.shape_cast %50 : vector<1x4x256xf32> to vector<4x256xf32>
    %52 = vector.extract_strided_slice %0 {offsets = [0, 1], sizes = [4, 1], strides = [1, 1]} : vector<4x49xf32> to vector<4x1xf32>
    %53 = vector.broadcast %52 : vector<4x1xf32> to vector<4x256xf32>
    %54 = arith.mulf %53, %51 : vector<4x256xf32>
    %55 = arith.addf %49, %54 : vector<4x256xf32>
    %c0_22 = arith.constant 0 : index
    %c0_23 = arith.constant 0 : index
    %c17 = arith.constant 17 : index
    %56 = vector.load %arg1[%c0_22, %c0_23, %c17] : memref<1x4x358xf32, #tpu.memory_space<vmem>>, vector<1x4x256xf32>
    %57 = vector.shape_cast %56 : vector<1x4x256xf32> to vector<4x256xf32>
    %58 = vector.extract_strided_slice %0 {offsets = [0, 8], sizes = [4, 1], strides = [1, 1]} : vector<4x49xf32> to vector<4x1xf32>
    %59 = vector.broadcast %58 : vector<4x1xf32> to vector<4x256xf32>
    %60 = arith.mulf %59, %57 : vector<4x256xf32>
    %61 = arith.addf %55, %60 : vector<4x256xf32>
    %c0_24 = arith.constant 0 : index
    %c0_25 = arith.constant 0 : index
    %c33 = arith.constant 33 : index
    %62 = vector.load %arg1[%c0_24, %c0_25, %c33] : memref<1x4x358xf32, #tpu.memory_space<vmem>>, vector<1x4x256xf32>
    %63 = vector.shape_cast %62 : vector<1x4x256xf32> to vector<4x256xf32>
    %64 = vector.extract_strided_slice %0 {offsets = [0, 15], sizes = [4, 1], strides = [1, 1]} : vector<4x49xf32> to vector<4x1xf32>
    %65 = vector.broadcast %64 : vector<4x1xf32> to vector<4x256xf32>
    %66 = arith.mulf %65, %63 : vector<4x256xf32>
    %67 = arith.addf %61, %66 : vector<4x256xf32>
    %c0_26 = arith.constant 0 : index
    %c0_27 = arith.constant 0 : index
    %c49 = arith.constant 49 : index
    %68 = vector.load %arg1[%c0_26, %c0_27, %c49] : memref<1x4x358xf32, #tpu.memory_space<vmem>>, vector<1x4x256xf32>
    %69 = vector.shape_cast %68 : vector<1x4x256xf32> to vector<4x256xf32>
    %70 = vector.extract_strided_slice %0 {offsets = [0, 22], sizes = [4, 1], strides = [1, 1]} : vector<4x49xf32> to vector<4x1xf32>
    %71 = vector.broadcast %70 : vector<4x1xf32> to vector<4x256xf32>
    %72 = arith.mulf %71, %69 : vector<4x256xf32>
    %73 = arith.addf %67, %72 : vector<4x256xf32>
    %c0_28 = arith.constant 0 : index
    %c0_29 = arith.constant 0 : index
    %c65 = arith.constant 65 : index
    %74 = vector.load %arg1[%c0_28, %c0_29, %c65] : memref<1x4x358xf32, #tpu.memory_space<vmem>>, vector<1x4x256xf32>
    %75 = vector.shape_cast %74 : vector<1x4x256xf32> to vector<4x256xf32>
    %76 = vector.extract_strided_slice %0 {offsets = [0, 29], sizes = [4, 1], strides = [1, 1]} : vector<4x49xf32> to vector<4x1xf32>
    %77 = vector.broadcast %76 : vector<4x1xf32> to vector<4x256xf32>
    %78 = arith.mulf %77, %75 : vector<4x256xf32>
    %79 = arith.addf %73, %78 : vector<4x256xf32>
    %c0_30 = arith.constant 0 : index
    %c0_31 = arith.constant 0 : index
    %c81 = arith.constant 81 : index
    %80 = vector.load %arg1[%c0_30, %c0_31, %c81] : memref<1x4x358xf32, #tpu.memory_space<vmem>>, vector<1x4x256xf32>
    %81 = vector.shape_cast %80 : vector<1x4x256xf32> to vector<4x256xf32>
    %82 = vector.extract_strided_slice %0 {offsets = [0, 36], sizes = [4, 1], strides = [1, 1]} : vector<4x49xf32> to vector<4x1xf32>
    %83 = vector.broadcast %82 : vector<4x1xf32> to vector<4x256xf32>
    %84 = arith.mulf %83, %81 : vector<4x256xf32>
    %85 = arith.addf %79, %84 : vector<4x256xf32>
    %c0_32 = arith.constant 0 : index
    %c0_33 = arith.constant 0 : index
    %c97 = arith.constant 97 : index
    %86 = vector.load %arg1[%c0_32, %c0_33, %c97] : memref<1x4x358xf32, #tpu.memory_space<vmem>>, vector<1x4x256xf32>
    %87 = vector.shape_cast %86 : vector<1x4x256xf32> to vector<4x256xf32>
    %88 = vector.extract_strided_slice %0 {offsets = [0, 43], sizes = [4, 1], strides = [1, 1]} : vector<4x49xf32> to vector<4x1xf32>
    %89 = vector.broadcast %88 : vector<4x1xf32> to vector<4x256xf32>
    %90 = arith.mulf %89, %87 : vector<4x256xf32>
    %91 = arith.addf %85, %90 : vector<4x256xf32>
    %c1_34 = arith.constant 1 : index
    %c0_35 = arith.constant 0 : index
    %92 = vector.load %arg3[%c1_34, %c0_35] : memref<7x256xf32, #tpu.memory_space<vmem>>, vector<1x256xf32>
    %93 = vector.broadcast %92 : vector<1x256xf32> to vector<4x256xf32>
    %94 = arith.mulf %93, %91 : vector<4x256xf32>
    %95 = arith.addf %48, %94 : vector<4x256xf32>
    %cst_36 = arith.constant 0.000000e+00 : f32
    %96 = vector.broadcast %cst_36 : f32 to vector<4x256xf32>
    %c0_37 = arith.constant 0 : index
    %c0_38 = arith.constant 0 : index
    %c2 = arith.constant 2 : index
    %97 = vector.load %arg1[%c0_37, %c0_38, %c2] : memref<1x4x358xf32, #tpu.memory_space<vmem>>, vector<1x4x256xf32>
    %98 = vector.shape_cast %97 : vector<1x4x256xf32> to vector<4x256xf32>
    %99 = vector.extract_strided_slice %0 {offsets = [0, 2], sizes = [4, 1], strides = [1, 1]} : vector<4x49xf32> to vector<4x1xf32>
    %100 = vector.broadcast %99 : vector<4x1xf32> to vector<4x256xf32>
    %101 = arith.mulf %100, %98 : vector<4x256xf32>
    %102 = arith.addf %96, %101 : vector<4x256xf32>
    %c0_39 = arith.constant 0 : index
    %c0_40 = arith.constant 0 : index
    %c18 = arith.constant 18 : index
    %103 = vector.load %arg1[%c0_39, %c0_40, %c18] : memref<1x4x358xf32, #tpu.memory_space<vmem>>, vector<1x4x256xf32>
    %104 = vector.shape_cast %103 : vector<1x4x256xf32> to vector<4x256xf32>
    %105 = vector.extract_strided_slice %0 {offsets = [0, 9], sizes = [4, 1], strides = [1, 1]} : vector<4x49xf32> to vector<4x1xf32>
    %106 = vector.broadcast %105 : vector<4x1xf32> to vector<4x256xf32>
    %107 = arith.mulf %106, %104 : vector<4x256xf32>
    %108 = arith.addf %102, %107 : vector<4x256xf32>
    %c0_41 = arith.constant 0 : index
    %c0_42 = arith.constant 0 : index
    %c34 = arith.constant 34 : index
    %109 = vector.load %arg1[%c0_41, %c0_42, %c34] : memref<1x4x358xf32, #tpu.memory_space<vmem>>, vector<1x4x256xf32>
    %110 = vector.shape_cast %109 : vector<1x4x256xf32> to vector<4x256xf32>
    %111 = vector.extract_strided_slice %0 {offsets = [0, 16], sizes = [4, 1], strides = [1, 1]} : vector<4x49xf32> to vector<4x1xf32>
    %112 = vector.broadcast %111 : vector<4x1xf32> to vector<4x256xf32>
    %113 = arith.mulf %112, %110 : vector<4x256xf32>
    %114 = arith.addf %108, %113 : vector<4x256xf32>
    %c0_43 = arith.constant 0 : index
    %c0_44 = arith.constant 0 : index
    %c50 = arith.constant 50 : index
    %115 = vector.load %arg1[%c0_43, %c0_44, %c50] : memref<1x4x358xf32, #tpu.memory_space<vmem>>, vector<1x4x256xf32>
    %116 = vector.shape_cast %115 : vector<1x4x256xf32> to vector<4x256xf32>
    %117 = vector.extract_strided_slice %0 {offsets = [0, 23], sizes = [4, 1], strides = [1, 1]} : vector<4x49xf32> to vector<4x1xf32>
    %118 = vector.broadcast %117 : vector<4x1xf32> to vector<4x256xf32>
    %119 = arith.mulf %118, %116 : vector<4x256xf32>
    %120 = arith.addf %114, %119 : vector<4x256xf32>
    %c0_45 = arith.constant 0 : index
    %c0_46 = arith.constant 0 : index
    %c66 = arith.constant 66 : index
    %121 = vector.load %arg1[%c0_45, %c0_46, %c66] : memref<1x4x358xf32, #tpu.memory_space<vmem>>, vector<1x4x256xf32>
    %122 = vector.shape_cast %121 : vector<1x4x256xf32> to vector<4x256xf32>
    %123 = vector.extract_strided_slice %0 {offsets = [0, 30], sizes = [4, 1], strides = [1, 1]} : vector<4x49xf32> to vector<4x1xf32>
    %124 = vector.broadcast %123 : vector<4x1xf32> to vector<4x256xf32>
    %125 = arith.mulf %124, %122 : vector<4x256xf32>
    %126 = arith.addf %120, %125 : vector<4x256xf32>
    %c0_47 = arith.constant 0 : index
    %c0_48 = arith.constant 0 : index
    %c82 = arith.constant 82 : index
    %127 = vector.load %arg1[%c0_47, %c0_48, %c82] : memref<1x4x358xf32, #tpu.memory_space<vmem>>, vector<1x4x256xf32>
    %128 = vector.shape_cast %127 : vector<1x4x256xf32> to vector<4x256xf32>
    %129 = vector.extract_strided_slice %0 {offsets = [0, 37], sizes = [4, 1], strides = [1, 1]} : vector<4x49xf32> to vector<4x1xf32>
    %130 = vector.broadcast %129 : vector<4x1xf32> to vector<4x256xf32>
    %131 = arith.mulf %130, %128 : vector<4x256xf32>
    %132 = arith.addf %126, %131 : vector<4x256xf32>
    %c0_49 = arith.constant 0 : index
    %c0_50 = arith.constant 0 : index
    %c98 = arith.constant 98 : index
    %133 = vector.load %arg1[%c0_49, %c0_50, %c98] : memref<1x4x358xf32, #tpu.memory_space<vmem>>, vector<1x4x256xf32>
    %134 = vector.shape_cast %133 : vector<1x4x256xf32> to vector<4x256xf32>
    %135 = vector.extract_strided_slice %0 {offsets = [0, 44], sizes = [4, 1], strides = [1, 1]} : vector<4x49xf32> to vector<4x1xf32>
    %136 = vector.broadcast %135 : vector<4x1xf32> to vector<4x256xf32>
    %137 = arith.mulf %136, %134 : vector<4x256xf32>
    %138 = arith.addf %132, %137 : vector<4x256xf32>
    %c2_51 = arith.constant 2 : index
    %c0_52 = arith.constant 0 : index
    %139 = vector.load %arg3[%c2_51, %c0_52] : memref<7x256xf32, #tpu.memory_space<vmem>>, vector<1x256xf32>
    %140 = vector.broadcast %139 : vector<1x256xf32> to vector<4x256xf32>
    %141 = arith.mulf %140, %138 : vector<4x256xf32>
    %142 = arith.addf %95, %141 : vector<4x256xf32>
    %cst_53 = arith.constant 0.000000e+00 : f32
    %143 = vector.broadcast %cst_53 : f32 to vector<4x256xf32>
    %c0_54 = arith.constant 0 : index
    %c0_55 = arith.constant 0 : index
    %c3 = arith.constant 3 : index
    %144 = vector.load %arg1[%c0_54, %c0_55, %c3] : memref<1x4x358xf32, #tpu.memory_space<vmem>>, vector<1x4x256xf32>
    %145 = vector.shape_cast %144 : vector<1x4x256xf32> to vector<4x256xf32>
    %146 = vector.extract_strided_slice %0 {offsets = [0, 3], sizes = [4, 1], strides = [1, 1]} : vector<4x49xf32> to vector<4x1xf32>
    %147 = vector.broadcast %146 : vector<4x1xf32> to vector<4x256xf32>
    %148 = arith.mulf %147, %145 : vector<4x256xf32>
    %149 = arith.addf %143, %148 : vector<4x256xf32>
    %c0_56 = arith.constant 0 : index
    %c0_57 = arith.constant 0 : index
    %c19 = arith.constant 19 : index
    %150 = vector.load %arg1[%c0_56, %c0_57, %c19] : memref<1x4x358xf32, #tpu.memory_space<vmem>>, vector<1x4x256xf32>
    %151 = vector.shape_cast %150 : vector<1x4x256xf32> to vector<4x256xf32>
    %152 = vector.extract_strided_slice %0 {offsets = [0, 10], sizes = [4, 1], strides = [1, 1]} : vector<4x49xf32> to vector<4x1xf32>
    %153 = vector.broadcast %152 : vector<4x1xf32> to vector<4x256xf32>
    %154 = arith.mulf %153, %151 : vector<4x256xf32>
    %155 = arith.addf %149, %154 : vector<4x256xf32>
    %c0_58 = arith.constant 0 : index
    %c0_59 = arith.constant 0 : index
    %c35 = arith.constant 35 : index
    %156 = vector.load %arg1[%c0_58, %c0_59, %c35] : memref<1x4x358xf32, #tpu.memory_space<vmem>>, vector<1x4x256xf32>
    %157 = vector.shape_cast %156 : vector<1x4x256xf32> to vector<4x256xf32>
    %158 = vector.extract_strided_slice %0 {offsets = [0, 17], sizes = [4, 1], strides = [1, 1]} : vector<4x49xf32> to vector<4x1xf32>
    %159 = vector.broadcast %158 : vector<4x1xf32> to vector<4x256xf32>
    %160 = arith.mulf %159, %157 : vector<4x256xf32>
    %161 = arith.addf %155, %160 : vector<4x256xf32>
    %c0_60 = arith.constant 0 : index
    %c0_61 = arith.constant 0 : index
    %c51 = arith.constant 51 : index
    %162 = vector.load %arg1[%c0_60, %c0_61, %c51] : memref<1x4x358xf32, #tpu.memory_space<vmem>>, vector<1x4x256xf32>
    %163 = vector.shape_cast %162 : vector<1x4x256xf32> to vector<4x256xf32>
    %164 = vector.extract_strided_slice %0 {offsets = [0, 24], sizes = [4, 1], strides = [1, 1]} : vector<4x49xf32> to vector<4x1xf32>
    %165 = vector.broadcast %164 : vector<4x1xf32> to vector<4x256xf32>
    %166 = arith.mulf %165, %163 : vector<4x256xf32>
    %167 = arith.addf %161, %166 : vector<4x256xf32>
    %c0_62 = arith.constant 0 : index
    %c0_63 = arith.constant 0 : index
    %c67 = arith.constant 67 : index
    %168 = vector.load %arg1[%c0_62, %c0_63, %c67] : memref<1x4x358xf32, #tpu.memory_space<vmem>>, vector<1x4x256xf32>
    %169 = vector.shape_cast %168 : vector<1x4x256xf32> to vector<4x256xf32>
    %170 = vector.extract_strided_slice %0 {offsets = [0, 31], sizes = [4, 1], strides = [1, 1]} : vector<4x49xf32> to vector<4x1xf32>
    %171 = vector.broadcast %170 : vector<4x1xf32> to vector<4x256xf32>
    %172 = arith.mulf %171, %169 : vector<4x256xf32>
    %173 = arith.addf %167, %172 : vector<4x256xf32>
    %c0_64 = arith.constant 0 : index
    %c0_65 = arith.constant 0 : index
    %c83 = arith.constant 83 : index
    %174 = vector.load %arg1[%c0_64, %c0_65, %c83] : memref<1x4x358xf32, #tpu.memory_space<vmem>>, vector<1x4x256xf32>
    %175 = vector.shape_cast %174 : vector<1x4x256xf32> to vector<4x256xf32>
    %176 = vector.extract_strided_slice %0 {offsets = [0, 38], sizes = [4, 1], strides = [1, 1]} : vector<4x49xf32> to vector<4x1xf32>
    %177 = vector.broadcast %176 : vector<4x1xf32> to vector<4x256xf32>
    %178 = arith.mulf %177, %175 : vector<4x256xf32>
    %179 = arith.addf %173, %178 : vector<4x256xf32>
    %c0_66 = arith.constant 0 : index
    %c0_67 = arith.constant 0 : index
    %c99 = arith.constant 99 : index
    %180 = vector.load %arg1[%c0_66, %c0_67, %c99] : memref<1x4x358xf32, #tpu.memory_space<vmem>>, vector<1x4x256xf32>
    %181 = vector.shape_cast %180 : vector<1x4x256xf32> to vector<4x256xf32>
    %182 = vector.extract_strided_slice %0 {offsets = [0, 45], sizes = [4, 1], strides = [1, 1]} : vector<4x49xf32> to vector<4x1xf32>
    %183 = vector.broadcast %182 : vector<4x1xf32> to vector<4x256xf32>
    %184 = arith.mulf %183, %181 : vector<4x256xf32>
    %185 = arith.addf %179, %184 : vector<4x256xf32>
    %c3_68 = arith.constant 3 : index
    %c0_69 = arith.constant 0 : index
    %186 = vector.load %arg3[%c3_68, %c0_69] : memref<7x256xf32, #tpu.memory_space<vmem>>, vector<1x256xf32>
    %187 = vector.broadcast %186 : vector<1x256xf32> to vector<4x256xf32>
    %188 = arith.mulf %187, %185 : vector<4x256xf32>
    %189 = arith.addf %142, %188 : vector<4x256xf32>
    %cst_70 = arith.constant 0.000000e+00 : f32
    %190 = vector.broadcast %cst_70 : f32 to vector<4x256xf32>
    %c0_71 = arith.constant 0 : index
    %c0_72 = arith.constant 0 : index
    %c4 = arith.constant 4 : index
    %191 = vector.load %arg1[%c0_71, %c0_72, %c4] : memref<1x4x358xf32, #tpu.memory_space<vmem>>, vector<1x4x256xf32>
    %192 = vector.shape_cast %191 : vector<1x4x256xf32> to vector<4x256xf32>
    %193 = vector.extract_strided_slice %0 {offsets = [0, 4], sizes = [4, 1], strides = [1, 1]} : vector<4x49xf32> to vector<4x1xf32>
    %194 = vector.broadcast %193 : vector<4x1xf32> to vector<4x256xf32>
    %195 = arith.mulf %194, %192 : vector<4x256xf32>
    %196 = arith.addf %190, %195 : vector<4x256xf32>
    %c0_73 = arith.constant 0 : index
    %c0_74 = arith.constant 0 : index
    %c20 = arith.constant 20 : index
    %197 = vector.load %arg1[%c0_73, %c0_74, %c20] : memref<1x4x358xf32, #tpu.memory_space<vmem>>, vector<1x4x256xf32>
    %198 = vector.shape_cast %197 : vector<1x4x256xf32> to vector<4x256xf32>
    %199 = vector.extract_strided_slice %0 {offsets = [0, 11], sizes = [4, 1], strides = [1, 1]} : vector<4x49xf32> to vector<4x1xf32>
    %200 = vector.broadcast %199 : vector<4x1xf32> to vector<4x256xf32>
    %201 = arith.mulf %200, %198 : vector<4x256xf32>
    %202 = arith.addf %196, %201 : vector<4x256xf32>
    %c0_75 = arith.constant 0 : index
    %c0_76 = arith.constant 0 : index
    %c36 = arith.constant 36 : index
    %203 = vector.load %arg1[%c0_75, %c0_76, %c36] : memref<1x4x358xf32, #tpu.memory_space<vmem>>, vector<1x4x256xf32>
    %204 = vector.shape_cast %203 : vector<1x4x256xf32> to vector<4x256xf32>
    %205 = vector.extract_strided_slice %0 {offsets = [0, 18], sizes = [4, 1], strides = [1, 1]} : vector<4x49xf32> to vector<4x1xf32>
    %206 = vector.broadcast %205 : vector<4x1xf32> to vector<4x256xf32>
    %207 = arith.mulf %206, %204 : vector<4x256xf32>
    %208 = arith.addf %202, %207 : vector<4x256xf32>
    %c0_77 = arith.constant 0 : index
    %c0_78 = arith.constant 0 : index
    %c52 = arith.constant 52 : index
    %209 = vector.load %arg1[%c0_77, %c0_78, %c52] : memref<1x4x358xf32, #tpu.memory_space<vmem>>, vector<1x4x256xf32>
    %210 = vector.shape_cast %209 : vector<1x4x256xf32> to vector<4x256xf32>
    %211 = vector.extract_strided_slice %0 {offsets = [0, 25], sizes = [4, 1], strides = [1, 1]} : vector<4x49xf32> to vector<4x1xf32>
    %212 = vector.broadcast %211 : vector<4x1xf32> to vector<4x256xf32>
    %213 = arith.mulf %212, %210 : vector<4x256xf32>
    %214 = arith.addf %208, %213 : vector<4x256xf32>
    %c0_79 = arith.constant 0 : index
    %c0_80 = arith.constant 0 : index
    %c68 = arith.constant 68 : index
    %215 = vector.load %arg1[%c0_79, %c0_80, %c68] : memref<1x4x358xf32, #tpu.memory_space<vmem>>, vector<1x4x256xf32>
    %216 = vector.shape_cast %215 : vector<1x4x256xf32> to vector<4x256xf32>
    %217 = vector.extract_strided_slice %0 {offsets = [0, 32], sizes = [4, 1], strides = [1, 1]} : vector<4x49xf32> to vector<4x1xf32>
    %218 = vector.broadcast %217 : vector<4x1xf32> to vector<4x256xf32>
    %219 = arith.mulf %218, %216 : vector<4x256xf32>
    %220 = arith.addf %214, %219 : vector<4x256xf32>
    %c0_81 = arith.constant 0 : index
    %c0_82 = arith.constant 0 : index
    %c84 = arith.constant 84 : index
    %221 = vector.load %arg1[%c0_81, %c0_82, %c84] : memref<1x4x358xf32, #tpu.memory_space<vmem>>, vector<1x4x256xf32>
    %222 = vector.shape_cast %221 : vector<1x4x256xf32> to vector<4x256xf32>
    %223 = vector.extract_strided_slice %0 {offsets = [0, 39], sizes = [4, 1], strides = [1, 1]} : vector<4x49xf32> to vector<4x1xf32>
    %224 = vector.broadcast %223 : vector<4x1xf32> to vector<4x256xf32>
    %225 = arith.mulf %224, %222 : vector<4x256xf32>
    %226 = arith.addf %220, %225 : vector<4x256xf32>
    %c0_83 = arith.constant 0 : index
    %c0_84 = arith.constant 0 : index
    %c100 = arith.constant 100 : index
    %227 = vector.load %arg1[%c0_83, %c0_84, %c100] : memref<1x4x358xf32, #tpu.memory_space<vmem>>, vector<1x4x256xf32>
    %228 = vector.shape_cast %227 : vector<1x4x256xf32> to vector<4x256xf32>
    %229 = vector.extract_strided_slice %0 {offsets = [0, 46], sizes = [4, 1], strides = [1, 1]} : vector<4x49xf32> to vector<4x1xf32>
    %230 = vector.broadcast %229 : vector<4x1xf32> to vector<4x256xf32>
    %231 = arith.mulf %230, %228 : vector<4x256xf32>
    %232 = arith.addf %226, %231 : vector<4x256xf32>
    %c4_85 = arith.constant 4 : index
    %c0_86 = arith.constant 0 : index
    %233 = vector.load %arg3[%c4_85, %c0_86] : memref<7x256xf32, #tpu.memory_space<vmem>>, vector<1x256xf32>
    %234 = vector.broadcast %233 : vector<1x256xf32> to vector<4x256xf32>
    %235 = arith.mulf %234, %232 : vector<4x256xf32>
    %236 = arith.addf %189, %235 : vector<4x256xf32>
    %cst_87 = arith.constant 0.000000e+00 : f32
    %237 = vector.broadcast %cst_87 : f32 to vector<4x256xf32>
    %c0_88 = arith.constant 0 : index
    %c0_89 = arith.constant 0 : index
    %c5 = arith.constant 5 : index
    %238 = vector.load %arg1[%c0_88, %c0_89, %c5] : memref<1x4x358xf32, #tpu.memory_space<vmem>>, vector<1x4x256xf32>
    %239 = vector.shape_cast %238 : vector<1x4x256xf32> to vector<4x256xf32>
    %240 = vector.extract_strided_slice %0 {offsets = [0, 5], sizes = [4, 1], strides = [1, 1]} : vector<4x49xf32> to vector<4x1xf32>
    %241 = vector.broadcast %240 : vector<4x1xf32> to vector<4x256xf32>
    %242 = arith.mulf %241, %239 : vector<4x256xf32>
    %243 = arith.addf %237, %242 : vector<4x256xf32>
    %c0_90 = arith.constant 0 : index
    %c0_91 = arith.constant 0 : index
    %c21 = arith.constant 21 : index
    %244 = vector.load %arg1[%c0_90, %c0_91, %c21] : memref<1x4x358xf32, #tpu.memory_space<vmem>>, vector<1x4x256xf32>
    %245 = vector.shape_cast %244 : vector<1x4x256xf32> to vector<4x256xf32>
    %246 = vector.extract_strided_slice %0 {offsets = [0, 12], sizes = [4, 1], strides = [1, 1]} : vector<4x49xf32> to vector<4x1xf32>
    %247 = vector.broadcast %246 : vector<4x1xf32> to vector<4x256xf32>
    %248 = arith.mulf %247, %245 : vector<4x256xf32>
    %249 = arith.addf %243, %248 : vector<4x256xf32>
    %c0_92 = arith.constant 0 : index
    %c0_93 = arith.constant 0 : index
    %c37 = arith.constant 37 : index
    %250 = vector.load %arg1[%c0_92, %c0_93, %c37] : memref<1x4x358xf32, #tpu.memory_space<vmem>>, vector<1x4x256xf32>
    %251 = vector.shape_cast %250 : vector<1x4x256xf32> to vector<4x256xf32>
    %252 = vector.extract_strided_slice %0 {offsets = [0, 19], sizes = [4, 1], strides = [1, 1]} : vector<4x49xf32> to vector<4x1xf32>
    %253 = vector.broadcast %252 : vector<4x1xf32> to vector<4x256xf32>
    %254 = arith.mulf %253, %251 : vector<4x256xf32>
    %255 = arith.addf %249, %254 : vector<4x256xf32>
    %c0_94 = arith.constant 0 : index
    %c0_95 = arith.constant 0 : index
    %c53 = arith.constant 53 : index
    %256 = vector.load %arg1[%c0_94, %c0_95, %c53] : memref<1x4x358xf32, #tpu.memory_space<vmem>>, vector<1x4x256xf32>
    %257 = vector.shape_cast %256 : vector<1x4x256xf32> to vector<4x256xf32>
    %258 = vector.extract_strided_slice %0 {offsets = [0, 26], sizes = [4, 1], strides = [1, 1]} : vector<4x49xf32> to vector<4x1xf32>
    %259 = vector.broadcast %258 : vector<4x1xf32> to vector<4x256xf32>
    %260 = arith.mulf %259, %257 : vector<4x256xf32>
    %261 = arith.addf %255, %260 : vector<4x256xf32>
    %c0_96 = arith.constant 0 : index
    %c0_97 = arith.constant 0 : index
    %c69 = arith.constant 69 : index
    %262 = vector.load %arg1[%c0_96, %c0_97, %c69] : memref<1x4x358xf32, #tpu.memory_space<vmem>>, vector<1x4x256xf32>
    %263 = vector.shape_cast %262 : vector<1x4x256xf32> to vector<4x256xf32>
    %264 = vector.extract_strided_slice %0 {offsets = [0, 33], sizes = [4, 1], strides = [1, 1]} : vector<4x49xf32> to vector<4x1xf32>
    %265 = vector.broadcast %264 : vector<4x1xf32> to vector<4x256xf32>
    %266 = arith.mulf %265, %263 : vector<4x256xf32>
    %267 = arith.addf %261, %266 : vector<4x256xf32>
    %c0_98 = arith.constant 0 : index
    %c0_99 = arith.constant 0 : index
    %c85 = arith.constant 85 : index
    %268 = vector.load %arg1[%c0_98, %c0_99, %c85] : memref<1x4x358xf32, #tpu.memory_space<vmem>>, vector<1x4x256xf32>
    %269 = vector.shape_cast %268 : vector<1x4x256xf32> to vector<4x256xf32>
    %270 = vector.extract_strided_slice %0 {offsets = [0, 40], sizes = [4, 1], strides = [1, 1]} : vector<4x49xf32> to vector<4x1xf32>
    %271 = vector.broadcast %270 : vector<4x1xf32> to vector<4x256xf32>
    %272 = arith.mulf %271, %269 : vector<4x256xf32>
    %273 = arith.addf %267, %272 : vector<4x256xf32>
    %c0_100 = arith.constant 0 : index
    %c0_101 = arith.constant 0 : index
    %c101 = arith.constant 101 : index
    %274 = vector.load %arg1[%c0_100, %c0_101, %c101] : memref<1x4x358xf32, #tpu.memory_space<vmem>>, vector<1x4x256xf32>
    %275 = vector.shape_cast %274 : vector<1x4x256xf32> to vector<4x256xf32>
    %276 = vector.extract_strided_slice %0 {offsets = [0, 47], sizes = [4, 1], strides = [1, 1]} : vector<4x49xf32> to vector<4x1xf32>
    %277 = vector.broadcast %276 : vector<4x1xf32> to vector<4x256xf32>
    %278 = arith.mulf %277, %275 : vector<4x256xf32>
    %279 = arith.addf %273, %278 : vector<4x256xf32>
    %c5_102 = arith.constant 5 : index
    %c0_103 = arith.constant 0 : index
    %280 = vector.load %arg3[%c5_102, %c0_103] : memref<7x256xf32, #tpu.memory_space<vmem>>, vector<1x256xf32>
    %281 = vector.broadcast %280 : vector<1x256xf32> to vector<4x256xf32>
    %282 = arith.mulf %281, %279 : vector<4x256xf32>
    %283 = arith.addf %236, %282 : vector<4x256xf32>
    %cst_104 = arith.constant 0.000000e+00 : f32
    %284 = vector.broadcast %cst_104 : f32 to vector<4x256xf32>
    %c0_105 = arith.constant 0 : index
    %c0_106 = arith.constant 0 : index
    %c6 = arith.constant 6 : index
    %285 = vector.load %arg1[%c0_105, %c0_106, %c6] : memref<1x4x358xf32, #tpu.memory_space<vmem>>, vector<1x4x256xf32>
    %286 = vector.shape_cast %285 : vector<1x4x256xf32> to vector<4x256xf32>
    %287 = vector.extract_strided_slice %0 {offsets = [0, 6], sizes = [4, 1], strides = [1, 1]} : vector<4x49xf32> to vector<4x1xf32>
    %288 = vector.broadcast %287 : vector<4x1xf32> to vector<4x256xf32>
    %289 = arith.mulf %288, %286 : vector<4x256xf32>
    %290 = arith.addf %284, %289 : vector<4x256xf32>
    %c0_107 = arith.constant 0 : index
    %c0_108 = arith.constant 0 : index
    %c22 = arith.constant 22 : index
    %291 = vector.load %arg1[%c0_107, %c0_108, %c22] : memref<1x4x358xf32, #tpu.memory_space<vmem>>, vector<1x4x256xf32>
    %292 = vector.shape_cast %291 : vector<1x4x256xf32> to vector<4x256xf32>
    %293 = vector.extract_strided_slice %0 {offsets = [0, 13], sizes = [4, 1], strides = [1, 1]} : vector<4x49xf32> to vector<4x1xf32>
    %294 = vector.broadcast %293 : vector<4x1xf32> to vector<4x256xf32>
    %295 = arith.mulf %294, %292 : vector<4x256xf32>
    %296 = arith.addf %290, %295 : vector<4x256xf32>
    %c0_109 = arith.constant 0 : index
    %c0_110 = arith.constant 0 : index
    %c38 = arith.constant 38 : index
    %297 = vector.load %arg1[%c0_109, %c0_110, %c38] : memref<1x4x358xf32, #tpu.memory_space<vmem>>, vector<1x4x256xf32>
    %298 = vector.shape_cast %297 : vector<1x4x256xf32> to vector<4x256xf32>
    %299 = vector.extract_strided_slice %0 {offsets = [0, 20], sizes = [4, 1], strides = [1, 1]} : vector<4x49xf32> to vector<4x1xf32>
    %300 = vector.broadcast %299 : vector<4x1xf32> to vector<4x256xf32>
    %301 = arith.mulf %300, %298 : vector<4x256xf32>
    %302 = arith.addf %296, %301 : vector<4x256xf32>
    %c0_111 = arith.constant 0 : index
    %c0_112 = arith.constant 0 : index
    %c54 = arith.constant 54 : index
    %303 = vector.load %arg1[%c0_111, %c0_112, %c54] : memref<1x4x358xf32, #tpu.memory_space<vmem>>, vector<1x4x256xf32>
    %304 = vector.shape_cast %303 : vector<1x4x256xf32> to vector<4x256xf32>
    %305 = vector.extract_strided_slice %0 {offsets = [0, 27], sizes = [4, 1], strides = [1, 1]} : vector<4x49xf32> to vector<4x1xf32>
    %306 = vector.broadcast %305 : vector<4x1xf32> to vector<4x256xf32>
    %307 = arith.mulf %306, %304 : vector<4x256xf32>
    %308 = arith.addf %302, %307 : vector<4x256xf32>
    %c0_113 = arith.constant 0 : index
    %c0_114 = arith.constant 0 : index
    %c70 = arith.constant 70 : index
    %309 = vector.load %arg1[%c0_113, %c0_114, %c70] : memref<1x4x358xf32, #tpu.memory_space<vmem>>, vector<1x4x256xf32>
    %310 = vector.shape_cast %309 : vector<1x4x256xf32> to vector<4x256xf32>
    %311 = vector.extract_strided_slice %0 {offsets = [0, 34], sizes = [4, 1], strides = [1, 1]} : vector<4x49xf32> to vector<4x1xf32>
    %312 = vector.broadcast %311 : vector<4x1xf32> to vector<4x256xf32>
    %313 = arith.mulf %312, %310 : vector<4x256xf32>
    %314 = arith.addf %308, %313 : vector<4x256xf32>
    %c0_115 = arith.constant 0 : index
    %c0_116 = arith.constant 0 : index
    %c86 = arith.constant 86 : index
    %315 = vector.load %arg1[%c0_115, %c0_116, %c86] : memref<1x4x358xf32, #tpu.memory_space<vmem>>, vector<1x4x256xf32>
    %316 = vector.shape_cast %315 : vector<1x4x256xf32> to vector<4x256xf32>
    %317 = vector.extract_strided_slice %0 {offsets = [0, 41], sizes = [4, 1], strides = [1, 1]} : vector<4x49xf32> to vector<4x1xf32>
    %318 = vector.broadcast %317 : vector<4x1xf32> to vector<4x256xf32>
    %319 = arith.mulf %318, %316 : vector<4x256xf32>
    %320 = arith.addf %314, %319 : vector<4x256xf32>
    %c0_117 = arith.constant 0 : index
    %c0_118 = arith.constant 0 : index
    %c102 = arith.constant 102 : index
    %321 = vector.load %arg1[%c0_117, %c0_118, %c102] : memref<1x4x358xf32, #tpu.memory_space<vmem>>, vector<1x4x256xf32>
    %322 = vector.shape_cast %321 : vector<1x4x256xf32> to vector<4x256xf32>
    %323 = vector.extract_strided_slice %0 {offsets = [0, 48], sizes = [4, 1], strides = [1, 1]} : vector<4x49xf32> to vector<4x1xf32>
    %324 = vector.broadcast %323 : vector<4x1xf32> to vector<4x256xf32>
    %325 = arith.mulf %324, %322 : vector<4x256xf32>
    %326 = arith.addf %320, %325 : vector<4x256xf32>
    %c6_119 = arith.constant 6 : index
    %c0_120 = arith.constant 0 : index
    %327 = vector.load %arg3[%c6_119, %c0_120] : memref<7x256xf32, #tpu.memory_space<vmem>>, vector<1x256xf32>
    %328 = vector.broadcast %327 : vector<1x256xf32> to vector<4x256xf32>
    %329 = arith.mulf %328, %326 : vector<4x256xf32>
    %330 = arith.addf %283, %329 : vector<4x256xf32>
    %c0_121 = arith.constant 0 : index
    %c0_122 = arith.constant 0 : index
    %331 = vector.load %arg6[%c0_121, %c0_122] : memref<4x4xf32, #tpu.memory_space<vmem>>, vector<4x4xf32>
    %cst_123 = arith.constant dense<0.000000e+00> : vector<4x256xf32>
    %332 = tpu.matmul %331, %330, %cst_123 {dimension_numbers = #tpu.dot_dimension_numbers<[1], [0], [0], [1], [0, 0, 1, 1], [], []>, precision = #tpu.contract_precision<fp32>} : vector<4x4xf32>, vector<4x256xf32>, vector<4x256xf32> -> vector<4x256xf32>
    %c0_124 = arith.constant 0 : index
    %c0_125 = arith.constant 0 : index
    %c0_126 = arith.constant 0 : index
    %333 = vector.load %arg2[%c0_124, %c0_125, %c0_126] : memref<1x4x64xf32, #tpu.memory_space<vmem>>, vector<1x4x64xf32>
    %334 = vector.shape_cast %333 : vector<1x4x64xf32> to vector<4x64xf32>
    %c0_127 = arith.constant 0 : index
    %c0_128 = arith.constant 0 : index
    %335 = vector.load %arg7[%c0_127, %c0_128] : memref<4x4xf32, #tpu.memory_space<vmem>>, vector<4x4xf32>
    %cst_129 = arith.constant dense<0.000000e+00> : vector<4x64xf32>
    %336 = tpu.matmul %335, %334, %cst_129 {dimension_numbers = #tpu.dot_dimension_numbers<[1], [0], [0], [1], [0, 0, 1, 1], [], []>, precision = #tpu.contract_precision<fp32>} : vector<4x4xf32>, vector<4x64xf32>, vector<4x64xf32> -> vector<4x64xf32>
    %c0_130 = arith.constant 0 : index
    %c0_131 = arith.constant 0 : index
    %337 = vector.load %arg8[%c0_130, %c0_131] : memref<4x4xf32, #tpu.memory_space<vmem>>, vector<4x4xf32>
    %cst_132 = arith.constant dense<0.000000e+00> : vector<4x64xf32>
    %338 = tpu.matmul %337, %334, %cst_132 {dimension_numbers = #tpu.dot_dimension_numbers<[1], [0], [0], [1], [0, 0, 1, 1], [], []>, precision = #tpu.contract_precision<fp32>} : vector<4x4xf32>, vector<4x64xf32>, vector<4x64xf32> -> vector<4x64xf32>
    %cst_133 = arith.constant dense<0.000000e+00> : vector<4x4xf32>
    %339 = tpu.matmul %336, %338, %cst_133 {dimension_numbers = #tpu.dot_dimension_numbers<[1], [1], [0], [0], [0, 0, 1, 0], [], []>, precision = #tpu.contract_precision<fp32>} : vector<4x64xf32>, vector<4x64xf32>, vector<4x4xf32> -> vector<4x4xf32>
    %cst_134 = arith.constant dense<0xFF800000> : vector<4xf32>
    %340 = vector.multi_reduction <maximumf>, %339, %cst_134 [1] : vector<4x4xf32> to vector<4xf32>
    %341 = vector.shape_cast %340 : vector<4xf32> to vector<4x1xf32>
    %342 = vector.broadcast %341 : vector<4x1xf32> to vector<4x4xf32>
    %343 = arith.subf %339, %342 : vector<4x4xf32>
    %344 = math.exp %343 : vector<4x4xf32>
    %cst_135 = arith.constant dense<0.000000e+00> : vector<4xf32>
    %345 = vector.multi_reduction <add>, %344, %cst_135 [1] : vector<4x4xf32> to vector<4xf32>
    %346 = vector.shape_cast %345 : vector<4xf32> to vector<4x1xf32>
    %347 = tpu.reciprocal %346 {approx = true} : vector<4x1xf32> -> vector<4x1xf32>
    %348 = vector.broadcast %347 : vector<4x1xf32> to vector<4x4xf32>
    %349 = arith.mulf %344, %348 : vector<4x4xf32>
    %c0_136 = arith.constant 0 : index
    %c0_137 = arith.constant 0 : index
    %350 = vector.load %arg9[%c0_136, %c0_137] : memref<4x4xf32, #tpu.memory_space<vmem>>, vector<4x4xf32>
    %cst_138 = arith.constant dense<0.000000e+00> : vector<4x4xf32>
    %351 = tpu.matmul %350, %349, %cst_138 {dimension_numbers = #tpu.dot_dimension_numbers<[1], [0], [0], [1], [0, 0, 1, 1], [], []>, precision = #tpu.contract_precision<fp32>} : vector<4x4xf32>, vector<4x4xf32>, vector<4x4xf32> -> vector<4x4xf32>
    %c0_139 = arith.constant 0 : index
    %c0_140 = arith.constant 0 : index
    %c48_141 = arith.constant 48 : index
    %352 = vector.load %arg1[%c0_139, %c0_140, %c48_141] : memref<1x4x358xf32, #tpu.memory_space<vmem>>, vector<1x4x256xf32>
    %353 = vector.shape_cast %352 : vector<1x4x256xf32> to vector<4x256xf32>
    %c0_142 = arith.constant 0 : index
    %c0_143 = arith.constant 0 : index
    %c49_144 = arith.constant 49 : index
    %354 = vector.load %arg1[%c0_142, %c0_143, %c49_144] : memref<1x4x358xf32, #tpu.memory_space<vmem>>, vector<1x4x256xf32>
    %355 = vector.shape_cast %354 : vector<1x4x256xf32> to vector<4x256xf32>
    %c0_145 = arith.constant 0 : index
    %c0_146 = arith.constant 0 : index
    %c50_147 = arith.constant 50 : index
    %356 = vector.load %arg1[%c0_145, %c0_146, %c50_147] : memref<1x4x358xf32, #tpu.memory_space<vmem>>, vector<1x4x256xf32>
    %357 = vector.shape_cast %356 : vector<1x4x256xf32> to vector<4x256xf32>
    %c0_148 = arith.constant 0 : index
    %c0_149 = arith.constant 0 : index
    %c51_150 = arith.constant 51 : index
    %358 = vector.load %arg1[%c0_148, %c0_149, %c51_150] : memref<1x4x358xf32, #tpu.memory_space<vmem>>, vector<1x4x256xf32>
    %359 = vector.shape_cast %358 : vector<1x4x256xf32> to vector<4x256xf32>
    %c0_151 = arith.constant 0 : index
    %c0_152 = arith.constant 0 : index
    %c52_153 = arith.constant 52 : index
    %360 = vector.load %arg1[%c0_151, %c0_152, %c52_153] : memref<1x4x358xf32, #tpu.memory_space<vmem>>, vector<1x4x256xf32>
    %361 = vector.shape_cast %360 : vector<1x4x256xf32> to vector<4x256xf32>
    %c0_154 = arith.constant 0 : index
    %c0_155 = arith.constant 0 : index
    %c53_156 = arith.constant 53 : index
    %362 = vector.load %arg1[%c0_154, %c0_155, %c53_156] : memref<1x4x358xf32, #tpu.memory_space<vmem>>, vector<1x4x256xf32>
    %363 = vector.shape_cast %362 : vector<1x4x256xf32> to vector<4x256xf32>
    %c0_157 = arith.constant 0 : index
    %c0_158 = arith.constant 0 : index
    %c54_159 = arith.constant 54 : index
    %364 = vector.load %arg1[%c0_157, %c0_158, %c54_159] : memref<1x4x358xf32, #tpu.memory_space<vmem>>, vector<1x4x256xf32>
    %365 = vector.shape_cast %364 : vector<1x4x256xf32> to vector<4x256xf32>
    %cst_160 = arith.constant 0.000000e+00 : f32
    %366 = vector.broadcast %cst_160 : f32 to vector<4x256xf32>
    %c0_161 = arith.constant 0 : index
    %c0_162 = arith.constant 0 : index
    %367 = vector.load %arg4[%c0_161, %c0_162] : memref<4x256xf32, #tpu.memory_space<vmem>>, vector<1x256xf32>
    %368 = vector.extract_strided_slice %351 {offsets = [0, 0], sizes = [1, 1], strides = [1, 1]} : vector<4x4xf32> to vector<1x1xf32>
    %369 = vector.broadcast %368 : vector<1x1xf32> to vector<1x256xf32>
    %370 = arith.mulf %369, %367 : vector<1x256xf32>
    %371 = vector.broadcast %370 : vector<1x256xf32> to vector<4x256xf32>
    %372 = arith.mulf %371, %359 : vector<4x256xf32>
    %373 = arith.addf %366, %372 : vector<4x256xf32>
    %374 = vector.extract_strided_slice %351 {offsets = [1, 0], sizes = [1, 1], strides = [1, 1]} : vector<4x4xf32> to vector<1x1xf32>
    %375 = vector.broadcast %374 : vector<1x1xf32> to vector<1x256xf32>
    %376 = arith.mulf %375, %367 : vector<1x256xf32>
    %377 = vector.broadcast %376 : vector<1x256xf32> to vector<4x256xf32>
    %378 = arith.mulf %377, %361 : vector<4x256xf32>
    %379 = arith.addf %373, %378 : vector<4x256xf32>
    %380 = vector.extract_strided_slice %351 {offsets = [2, 0], sizes = [1, 1], strides = [1, 1]} : vector<4x4xf32> to vector<1x1xf32>
    %381 = vector.broadcast %380 : vector<1x1xf32> to vector<1x256xf32>
    %382 = arith.mulf %381, %367 : vector<1x256xf32>
    %383 = vector.broadcast %382 : vector<1x256xf32> to vector<4x256xf32>
    %384 = arith.mulf %383, %363 : vector<4x256xf32>
    %385 = arith.addf %379, %384 : vector<4x256xf32>
    %386 = vector.extract_strided_slice %351 {offsets = [3, 0], sizes = [1, 1], strides = [1, 1]} : vector<4x4xf32> to vector<1x1xf32>
    %387 = vector.broadcast %386 : vector<1x1xf32> to vector<1x256xf32>
    %388 = arith.mulf %387, %367 : vector<1x256xf32>
    %389 = vector.broadcast %388 : vector<1x256xf32> to vector<4x256xf32>
    %390 = arith.mulf %389, %365 : vector<4x256xf32>
    %391 = arith.addf %385, %390 : vector<4x256xf32>
    %c1_163 = arith.constant 1 : index
    %c0_164 = arith.constant 0 : index
    %392 = vector.load %arg4[%c1_163, %c0_164] : memref<4x256xf32, #tpu.memory_space<vmem>>, vector<1x256xf32>
    %393 = vector.extract_strided_slice %351 {offsets = [0, 1], sizes = [1, 1], strides = [1, 1]} : vector<4x4xf32> to vector<1x1xf32>
    %394 = vector.broadcast %393 : vector<1x1xf32> to vector<1x256xf32>
    %395 = arith.mulf %394, %392 : vector<1x256xf32>
    %396 = vector.broadcast %395 : vector<1x256xf32> to vector<4x256xf32>
    %397 = arith.mulf %396, %357 : vector<4x256xf32>
    %398 = arith.addf %391, %397 : vector<4x256xf32>
    %399 = vector.extract_strided_slice %351 {offsets = [1, 1], sizes = [1, 1], strides = [1, 1]} : vector<4x4xf32> to vector<1x1xf32>
    %400 = vector.broadcast %399 : vector<1x1xf32> to vector<1x256xf32>
    %401 = arith.mulf %400, %392 : vector<1x256xf32>
    %402 = vector.broadcast %401 : vector<1x256xf32> to vector<4x256xf32>
    %403 = arith.mulf %402, %359 : vector<4x256xf32>
    %404 = arith.addf %398, %403 : vector<4x256xf32>
    %405 = vector.extract_strided_slice %351 {offsets = [2, 1], sizes = [1, 1], strides = [1, 1]} : vector<4x4xf32> to vector<1x1xf32>
    %406 = vector.broadcast %405 : vector<1x1xf32> to vector<1x256xf32>
    %407 = arith.mulf %406, %392 : vector<1x256xf32>
    %408 = vector.broadcast %407 : vector<1x256xf32> to vector<4x256xf32>
    %409 = arith.mulf %408, %361 : vector<4x256xf32>
    %410 = arith.addf %404, %409 : vector<4x256xf32>
    %411 = vector.extract_strided_slice %351 {offsets = [3, 1], sizes = [1, 1], strides = [1, 1]} : vector<4x4xf32> to vector<1x1xf32>
    %412 = vector.broadcast %411 : vector<1x1xf32> to vector<1x256xf32>
    %413 = arith.mulf %412, %392 : vector<1x256xf32>
    %414 = vector.broadcast %413 : vector<1x256xf32> to vector<4x256xf32>
    %415 = arith.mulf %414, %363 : vector<4x256xf32>
    %416 = arith.addf %410, %415 : vector<4x256xf32>
    %c2_165 = arith.constant 2 : index
    %c0_166 = arith.constant 0 : index
    %417 = vector.load %arg4[%c2_165, %c0_166] : memref<4x256xf32, #tpu.memory_space<vmem>>, vector<1x256xf32>
    %418 = vector.extract_strided_slice %351 {offsets = [0, 2], sizes = [1, 1], strides = [1, 1]} : vector<4x4xf32> to vector<1x1xf32>
    %419 = vector.broadcast %418 : vector<1x1xf32> to vector<1x256xf32>
    %420 = arith.mulf %419, %417 : vector<1x256xf32>
    %421 = vector.broadcast %420 : vector<1x256xf32> to vector<4x256xf32>
    %422 = arith.mulf %421, %355 : vector<4x256xf32>
    %423 = arith.addf %416, %422 : vector<4x256xf32>
    %424 = vector.extract_strided_slice %351 {offsets = [1, 2], sizes = [1, 1], strides = [1, 1]} : vector<4x4xf32> to vector<1x1xf32>
    %425 = vector.broadcast %424 : vector<1x1xf32> to vector<1x256xf32>
    %426 = arith.mulf %425, %417 : vector<1x256xf32>
    %427 = vector.broadcast %426 : vector<1x256xf32> to vector<4x256xf32>
    %428 = arith.mulf %427, %357 : vector<4x256xf32>
    %429 = arith.addf %423, %428 : vector<4x256xf32>
    %430 = vector.extract_strided_slice %351 {offsets = [2, 2], sizes = [1, 1], strides = [1, 1]} : vector<4x4xf32> to vector<1x1xf32>
    %431 = vector.broadcast %430 : vector<1x1xf32> to vector<1x256xf32>
    %432 = arith.mulf %431, %417 : vector<1x256xf32>
    %433 = vector.broadcast %432 : vector<1x256xf32> to vector<4x256xf32>
    %434 = arith.mulf %433, %359 : vector<4x256xf32>
    %435 = arith.addf %429, %434 : vector<4x256xf32>
    %436 = vector.extract_strided_slice %351 {offsets = [3, 2], sizes = [1, 1], strides = [1, 1]} : vector<4x4xf32> to vector<1x1xf32>
    %437 = vector.broadcast %436 : vector<1x1xf32> to vector<1x256xf32>
    %438 = arith.mulf %437, %417 : vector<1x256xf32>
    %439 = vector.broadcast %438 : vector<1x256xf32> to vector<4x256xf32>
    %440 = arith.mulf %439, %361 : vector<4x256xf32>
    %441 = arith.addf %435, %440 : vector<4x256xf32>
    %c3_167 = arith.constant 3 : index
    %c0_168 = arith.constant 0 : index
    %442 = vector.load %arg4[%c3_167, %c0_168] : memref<4x256xf32, #tpu.memory_space<vmem>>, vector<1x256xf32>
    %443 = vector.extract_strided_slice %351 {offsets = [0, 3], sizes = [1, 1], strides = [1, 1]} : vector<4x4xf32> to vector<1x1xf32>
    %444 = vector.broadcast %443 : vector<1x1xf32> to vector<1x256xf32>
    %445 = arith.mulf %444, %442 : vector<1x256xf32>
    %446 = vector.broadcast %445 : vector<1x256xf32> to vector<4x256xf32>
    %447 = arith.mulf %446, %353 : vector<4x256xf32>
    %448 = arith.addf %441, %447 : vector<4x256xf32>
    %449 = vector.extract_strided_slice %351 {offsets = [1, 3], sizes = [1, 1], strides = [1, 1]} : vector<4x4xf32> to vector<1x1xf32>
    %450 = vector.broadcast %449 : vector<1x1xf32> to vector<1x256xf32>
    %451 = arith.mulf %450, %442 : vector<1x256xf32>
    %452 = vector.broadcast %451 : vector<1x256xf32> to vector<4x256xf32>
    %453 = arith.mulf %452, %355 : vector<4x256xf32>
    %454 = arith.addf %448, %453 : vector<4x256xf32>
    %455 = vector.extract_strided_slice %351 {offsets = [2, 3], sizes = [1, 1], strides = [1, 1]} : vector<4x4xf32> to vector<1x1xf32>
    %456 = vector.broadcast %455 : vector<1x1xf32> to vector<1x256xf32>
    %457 = arith.mulf %456, %442 : vector<1x256xf32>
    %458 = vector.broadcast %457 : vector<1x256xf32> to vector<4x256xf32>
    %459 = arith.mulf %458, %357 : vector<4x256xf32>
    %460 = arith.addf %454, %459 : vector<4x256xf32>
    %461 = vector.extract_strided_slice %351 {offsets = [3, 3], sizes = [1, 1], strides = [1, 1]} : vector<4x4xf32> to vector<1x1xf32>
    %462 = vector.broadcast %461 : vector<1x1xf32> to vector<1x256xf32>
    %463 = arith.mulf %462, %442 : vector<1x256xf32>
    %464 = vector.broadcast %463 : vector<1x256xf32> to vector<4x256xf32>
    %465 = arith.mulf %464, %359 : vector<4x256xf32>
    %466 = arith.addf %460, %465 : vector<4x256xf32>
    %467 = arith.addf %332, %466 : vector<4x256xf32>
    %468 = vector.shape_cast %467 : vector<4x256xf32> to vector<1x4x256xf32>
    %cst_169 = arith.constant dense<0.000000e+00> : vector<1xf32>
    %469 = vector.multi_reduction <add>, %468, %cst_169 [1, 2] : vector<1x4x256xf32> to vector<1xf32>
    %470 = vector.shape_cast %469 : vector<1xf32> to vector<1x1x1xf32>
    %471 = vector.extract %470[0, 0, 0] : f32 from vector<1x1x1xf32>
    %472 = vector.broadcast %471 : f32 to vector<1x1xf32>
    %cst_170 = arith.constant 9.765625E-4 : f32
    %473 = vector.broadcast %cst_170 : f32 to vector<1x1xf32>
    %474 = arith.mulf %472, %473 : vector<1x1xf32>
    %475 = vector.broadcast %474 : vector<1x1xf32> to vector<4x256xf32>
    %476 = arith.subf %467, %475 : vector<4x256xf32>
    %477 = arith.mulf %476, %476 : vector<4x256xf32>
    %478 = vector.shape_cast %477 : vector<4x256xf32> to vector<1x4x256xf32>
    %cst_171 = arith.constant dense<0.000000e+00> : vector<1xf32>
    %479 = vector.multi_reduction <add>, %478, %cst_171 [1, 2] : vector<1x4x256xf32> to vector<1xf32>
    %480 = vector.shape_cast %479 : vector<1xf32> to vector<1x1x1xf32>
    %481 = vector.extract %480[0, 0, 0] : f32 from vector<1x1x1xf32>
    %482 = vector.broadcast %481 : f32 to vector<1x1xf32>
    %cst_172 = arith.constant 9.765625E-4 : f32
    %483 = vector.broadcast %cst_172 : f32 to vector<1x1xf32>
    %484 = arith.mulf %482, %483 : vector<1x1xf32>
    %cst_173 = arith.constant 9.99999974E-6 : f32
    %485 = vector.broadcast %cst_173 : f32 to vector<1x1xf32>
    %486 = arith.addf %484, %485 : vector<1x1xf32>
    %487 = math.rsqrt %486 : vector<1x1xf32>
    %488 = vector.broadcast %487 : vector<1x1xf32> to vector<4x256xf32>
    %489 = arith.mulf %476, %488 : vector<4x256xf32>
    %c0_174 = arith.constant 0 : index
    %c0_175 = arith.constant 0 : index
    %490 = vector.load %arg10[%c0_174, %c0_175] : memref<16x4xf32, #tpu.memory_space<vmem>>, vector<16x4xf32>
    %cst_176 = arith.constant dense<0.000000e+00> : vector<16x256xf32>
    %491 = tpu.matmul %490, %489, %cst_176 {dimension_numbers = #tpu.dot_dimension_numbers<[1], [0], [0], [1], [0, 0, 1, 1], [], []>, precision = #tpu.contract_precision<fp32>} : vector<16x4xf32>, vector<4x256xf32>, vector<16x256xf32> -> vector<16x256xf32>
    %c0_177 = arith.constant 0 : index
    %c0_178 = arith.constant 0 : index
    %492 = vector.load %arg11[%c0_177, %c0_178] : memref<16x1xf32, #tpu.memory_space<vmem>>, vector<16x1xf32>
    %493 = vector.broadcast %492 : vector<16x1xf32> to vector<16x256xf32>
    %494 = arith.addf %491, %493 : vector<16x256xf32>
    %cst_179 = arith.constant 5.000000e-01 : f32
    %495 = vector.broadcast %cst_179 : f32 to vector<16x256xf32>
    %496 = arith.mulf %495, %494 : vector<16x256xf32>
    %cst_180 = arith.constant 0.707106769 : f32
    %497 = vector.broadcast %cst_180 : f32 to vector<16x256xf32>
    %498 = arith.mulf %494, %497 : vector<16x256xf32>
    %cst_181 = arith.constant 0.000000e+00 : f32
    %499 = vector.broadcast %cst_181 : f32 to vector<16x256xf32>
    %500 = arith.cmpf oge, %498, %499 : vector<16x256xf32>
    %cst_182 = arith.constant 1.000000e+00 : f32
    %cst_183 = arith.constant -1.000000e+00 : f32
    %501 = vector.broadcast %cst_182 : f32 to vector<16x256xf32>
    %502 = vector.broadcast %cst_183 : f32 to vector<16x256xf32>
    %503 = arith.select %500, %501, %502 : vector<16x256xi1>, vector<16x256xf32>
    %504 = math.absf %498 : vector<16x256xf32>
    %cst_184 = arith.constant 0.327591091 : f32
    %505 = vector.broadcast %cst_184 : f32 to vector<16x256xf32>
    %506 = arith.mulf %505, %504 : vector<16x256xf32>
    %cst_185 = arith.constant 1.000000e+00 : f32
    %507 = vector.broadcast %cst_185 : f32 to vector<16x256xf32>
    %508 = arith.addf %507, %506 : vector<16x256xf32>
    %cst_186 = arith.constant 1.000000e+00 : f32
    %509 = vector.broadcast %cst_186 : f32 to vector<16x256xf32>
    %510 = arith.divf %509, %508 : vector<16x256xf32>
    %cst_187 = arith.constant 1.06140542 : f32
    %511 = vector.broadcast %cst_187 : f32 to vector<16x256xf32>
    %512 = arith.mulf %511, %510 : vector<16x256xf32>
    %cst_188 = arith.constant -1.45315206 : f32
    %513 = vector.broadcast %cst_188 : f32 to vector<16x256xf32>
    %514 = arith.addf %512, %513 : vector<16x256xf32>
    %515 = arith.mulf %514, %510 : vector<16x256xf32>
    %cst_189 = arith.constant 1.42141378 : f32
    %516 = vector.broadcast %cst_189 : f32 to vector<16x256xf32>
    %517 = arith.addf %515, %516 : vector<16x256xf32>
    %518 = arith.mulf %517, %510 : vector<16x256xf32>
    %cst_190 = arith.constant -0.284496725 : f32
    %519 = vector.broadcast %cst_190 : f32 to vector<16x256xf32>
    %520 = arith.addf %518, %519 : vector<16x256xf32>
    %521 = arith.mulf %520, %510 : vector<16x256xf32>
    %cst_191 = arith.constant 0.254829586 : f32
    %522 = vector.broadcast %cst_191 : f32 to vector<16x256xf32>
    %523 = arith.addf %521, %522 : vector<16x256xf32>
    %524 = arith.mulf %523, %510 : vector<16x256xf32>
    %cst_192 = arith.constant 0.000000e+00 : f32
    %525 = vector.broadcast %cst_192 : f32 to vector<16x256xf32>
    %526 = arith.subf %525, %504 : vector<16x256xf32>
    %527 = arith.mulf %526, %504 : vector<16x256xf32>
    %528 = math.exp %527 : vector<16x256xf32>
    %529 = arith.mulf %524, %528 : vector<16x256xf32>
    %cst_193 = arith.constant 1.000000e+00 : f32
    %530 = vector.broadcast %cst_193 : f32 to vector<16x256xf32>
    %531 = arith.subf %530, %529 : vector<16x256xf32>
    %532 = arith.mulf %503, %531 : vector<16x256xf32>
    %cst_194 = arith.constant 1.000000e+00 : f32
    %533 = vector.broadcast %cst_194 : f32 to vector<16x256xf32>
    %534 = arith.addf %533, %532 : vector<16x256xf32>
    %535 = arith.mulf %496, %534 : vector<16x256xf32>
    %c0_195 = arith.constant 0 : index
    %c0_196 = arith.constant 0 : index
    %536 = vector.load %arg12[%c0_195, %c0_196] : memref<4x16xf32, #tpu.memory_space<vmem>>, vector<4x16xf32>
    %cst_197 = arith.constant dense<0.000000e+00> : vector<4x256xf32>
    %537 = tpu.matmul %536, %535, %cst_197 {dimension_numbers = #tpu.dot_dimension_numbers<[1], [0], [0], [1], [0, 0, 1, 1], [], []>, precision = #tpu.contract_precision<fp32>} : vector<4x16xf32>, vector<16x256xf32>, vector<4x256xf32> -> vector<4x256xf32>
    %c0_198 = arith.constant 0 : index
    %c0_199 = arith.constant 0 : index
    %538 = vector.load %arg13[%c0_198, %c0_199] : memref<4x1xf32, #tpu.memory_space<vmem>>, vector<4x1xf32>
    %539 = vector.broadcast %538 : vector<4x1xf32> to vector<4x256xf32>
    %540 = arith.addf %537, %539 : vector<4x256xf32>
    %c0_200 = arith.constant 0 : index
    %c0_201 = arith.constant 0 : index
    %c0_202 = arith.constant 0 : index
    %541 = vector.load %arg14[%c0_200, %c0_201, %c0_202] : memref<1x4x256xf32, #tpu.memory_space<vmem>>, vector<1x4x256xf32>
    %542 = vector.shape_cast %541 : vector<1x4x256xf32> to vector<4x256xf32>
    %543 = vector.shape_cast %540 : vector<4x256xf32> to vector<1x4x256xf32>
    tpu.vector_store %arg14[%c0_200, %c0_201, %c0_202], %543 {strides = array<i32>} : memref<1x4x256xf32, #tpu.memory_space<vmem>>, vector<1x4x256xf32>,
    return
  }
  func.func @transform_0(%arg0: i32) -> (i32, i32, i32) {
    %c0_i32 = arith.constant 0 : i32
    %c0_i32_0 = arith.constant 0 : i32
    %c0_i32_1 = arith.constant 0 : i32
    return %arg0, %c0_i32, %c0_i32_0 : i32, i32, i32
  }
  func.func @transform_1(%arg0: i32) -> (i32, i32, i32) {
    %c0_i32 = arith.constant 0 : i32
    %c0_i32_0 = arith.constant 0 : i32
    %c0_i32_1 = arith.constant 0 : i32
    return %arg0, %c0_i32, %c0_i32_0 : i32, i32, i32
  }
  func.func @transform_2(%arg0: i32) -> (i32, i32) {
    %c0_i32 = arith.constant 0 : i32
    %c0_i32_0 = arith.constant 0 : i32
    %c0_i32_1 = arith.constant 0 : i32
    return %c0_i32, %c0_i32_0 : i32, i32
  }
  func.func @transform_3(%arg0: i32) -> (i32, i32) {
    %c0_i32 = arith.constant 0 : i32
    %c0_i32_0 = arith.constant 0 : i32
    %c0_i32_1 = arith.constant 0 : i32
    return %c0_i32, %c0_i32_0 : i32, i32
  }
  func.func @transform_4(%arg0: i32) -> (i32, i32) {
    %c0_i32 = arith.constant 0 : i32
    %c0_i32_0 = arith.constant 0 : i32
    %c0_i32_1 = arith.constant 0 : i32
    return %c0_i32, %c0_i32_0 : i32, i32
  }
  func.func @transform_5(%arg0: i32) -> (i32, i32) {
    %c0_i32 = arith.constant 0 : i32
    %c0_i32_0 = arith.constant 0 : i32
    %c0_i32_1 = arith.constant 0 : i32
    return %c0_i32, %c0_i32_0 : i32, i32
  }
  func.func @transform_6(%arg0: i32) -> (i32, i32) {
    %c0_i32 = arith.constant 0 : i32
    %c0_i32_0 = arith.constant 0 : i32
    %c0_i32_1 = arith.constant 0 : i32
    return %c0_i32, %c0_i32_0 : i32, i32
  }
  func.func @transform_7(%arg0: i32) -> (i32, i32) {
    %c0_i32 = arith.constant 0 : i32
    %c0_i32_0 = arith.constant 0 : i32
    %c0_i32_1 = arith.constant 0 : i32
    return %c0_i32, %c0_i32_0 : i32, i32
  }
  func.func @transform_8(%arg0: i32) -> (i32, i32) {
    %c0_i32 = arith.constant 0 : i32
    %c0_i32_0 = arith.constant 0 : i32
    %c0_i32_1 = arith.constant 0 : i32
    return %c0_i32, %c0_i32_0 : i32, i32
  }
  func.func @transform_9(%arg0: i32) -> (i32, i32) {
    %c0_i32 = arith.constant 0 : i32
    %c0_i32_0 = arith.constant 0 : i32
    %c0_i32_1 = arith.constant 0 : i32
    return %c0_i32, %c0_i32_0 : i32, i32
  }
  func.func @transform_10(%arg0: i32) -> (i32, i32) {
    %c0_i32 = arith.constant 0 : i32
    %c0_i32_0 = arith.constant 0 : i32
    %c0_i32_1 = arith.constant 0 : i32
    return %c0_i32, %c0_i32_0 : i32, i32
  }
  func.func @transform_11(%arg0: i32) -> (i32, i32) {
    %c0_i32 = arith.constant 0 : i32
    %c0_i32_0 = arith.constant 0 : i32
    %c0_i32_1 = arith.constant 0 : i32
    return %c0_i32, %c0_i32_0 : i32, i32
  }
  func.func @transform_12(%arg0: i32) -> (i32, i32) {
    %c0_i32 = arith.constant 0 : i32
    %c0_i32_0 = arith.constant 0 : i32
    %c0_i32_1 = arith.constant 0 : i32
    return %c0_i32, %c0_i32_0 : i32, i32
  }
  func.func @transform_13(%arg0: i32) -> (i32, i32, i32) {
    %c0_i32 = arith.constant 0 : i32
    %c0_i32_0 = arith.constant 0 : i32
    %c0_i32_1 = arith.constant 0 : i32
    return %arg0, %c0_i32, %c0_i32_0 : i32, i32, i32
  }
}

</mosaic_0001>

<llo_original>
// kernel: hformer_block_forward.1
$region0: #{hformer_block_forward.1}
  #allocation0 [shape = 'u32[]', space=smem, size = 0x4, offset = 0x4, fixed_abs, tag = 'smem constant byte address 0x4 - core index']
  #allocation1 [shape = 'u32[144,128]{1,0:T(1,128)}', space=vmem, size = 0x12000, scoped, tag = 'internal scratch']
  %s0 = inlined_call_operand.vmem [shape: f32[2,4,358], index: 0, kind: input, shape index: {}]
  %s1 = inlined_call_operand.vmem [shape: f32[2,4,64], index: 1, kind: input, shape index: {}]
  %s2 = inlined_call_operand.vmem [shape: f32[7,256], index: 2, kind: input, shape index: {}]
  %s3 = inlined_call_operand.vmem [shape: f32[4,256], index: 3, kind: input, shape index: {}]
  %s4 = inlined_call_operand.vmem [shape: f32[4,49], index: 4, kind: input, shape index: {}]
  %s5 = inlined_call_operand.vmem [shape: f32[4,4], index: 5, kind: input, shape index: {}]
  %s6 = inlined_call_operand.vmem [shape: f32[4,4], index: 6, kind: input, shape index: {}]
  %s7 = inlined_call_operand.vmem [shape: f32[4,4], index: 7, kind: input, shape index: {}]
  %s8 = inlined_call_operand.vmem [shape: f32[4,4], index: 8, kind: input, shape index: {}]
  %s9 = inlined_call_operand.vmem [shape: f32[16,4], index: 9, kind: input, shape index: {}]
  %s10 = inlined_call_operand.vmem [shape: f32[16,1], index: 10, kind: input, shape index: {}]
  %s11 = inlined_call_operand.vmem [shape: f32[4,16], index: 11, kind: input, shape index: {}]
  %s12 = inlined_call_operand.vmem [shape: f32[4,1], index: 12, kind: input, shape index: {}]
  %s13 = inlined_call_operand.vmem [shape: f32[2,4,256], index: 13, kind: output, shape index: {}]
  %s14 = sld [smem:[#allocation0]]
  $region85: #{hformer_block_forward.1} parent=0
    _
  %s16 = ssub.s32 1, %s14
  %s17 = scalar_select 0, %s16, %s14
  loop: start=0, step=1, limit=4
  $region2: #{hformer_block_forward.1} parent=0 // loop_pre_header
    _
  $region3: #{hformer_block_forward.1} parent=0 // loop_header
    %s19 = sphi 0, %s23
    %p20 = scmp.ge.s32.totalorder %s19, 4
    %s29 = sphi 0, %s31
    %s32 = sphi 0, %s29
    %s33 = sphi 0, %s32
    %s49 = sphi 0, %s33
    %s55 = sphi 0, %s57
    %s58 = sphi 0, %s55
    %s59 = sphi 0, %s58
    %s75 = sphi 0, %s59
    %s79 = sphi 0, %s79
    %s81 = sphi 0, %s79
    %s82 = sphi 0, %s81
    %s96 = sphi 0, %s82
    %s100 = sphi 0, %s100
    %s102 = sphi 0, %s100
    %s103 = sphi 0, %s102
    %s117 = sphi 0, %s103
    %s121 = sphi 0, %s121
    %s123 = sphi 0, %s121
    %s124 = sphi 0, %s123
    %s138 = sphi 0, %s124
    %s142 = sphi 0, %s142
    %s144 = sphi 0, %s142
    %s145 = sphi 0, %s144
    %s159 = sphi 0, %s145
    %s163 = sphi 0, %s163
    %s165 = sphi 0, %s163
    %s166 = sphi 0, %s165
    %s180 = sphi 0, %s166
    %s184 = sphi 0, %s184
    %s186 = sphi 0, %s184
    %s187 = sphi 0, %s186
    %s201 = sphi 0, %s187
    %s205 = sphi 0, %s205
    %s207 = sphi 0, %s205
    %s208 = sphi 0, %s207
    %s222 = sphi 0, %s208
    %s226 = sphi 0, %s226
    %s228 = sphi 0, %s226
    %s229 = sphi 0, %s228
    %s243 = sphi 0, %s229
    %s247 = sphi 0, %s247
    %s249 = sphi 0, %s247
    %s250 = sphi 0, %s249
    %s264 = sphi 0, %s250
    %s268 = sphi 0, %s268
    %s270 = sphi 0, %s268
    %s271 = sphi 0, %s270
    %s285 = sphi 0, %s271
    %s289 = sphi 0, %s289
    %s291 = sphi 0, %s289
    %s292 = sphi 0, %s291
    %s306 = sphi 0, %s292
    %s312 = sphi 0, %s314
    %s315 = sphi 0, %s312
    %s316 = sphi 0, %s315
    %s332 = sphi 0, %s316
  $region4: #{hformer_block_forward.1} parent=0 // loop_header_branch
    %22 = sbr.rel (%p20) target = $region8
  $region5: #{hformer_block_forward.1} parent=0 // loop_body
    %s24 = ssub.s32 %s19, 1
    %s25 = ssub.s32 %s19, 2
    %s26 = sadd.s32 %s19, 1
    %s27 = ssub.s32 %s19, %s26
    %p28 = scmp.eq.s32.totalorder %s27, 0
    %s30 = sadd.s32 %s29, 1
    %s31 = scalar_select %p28, %s29, %s30
    %p34 = pneg %p28
    %p35 = scmp.eq.s32.totalorder %s19, 1
    %p36 = por %p34, %p35
    %p37 = scmp.ne.s32.totalorder %s29, %s32
    %p38 = scmp.eq.s32.totalorder %s19, 0
    %p39 = por %p37, %p38
    %p40 = scmp.ne.s32.totalorder %s29, %s32
    %p41 = scmp.eq.s32.totalorder %s24, 1
    %p42 = por %p40, %p41
    %p43 = scmp.ne.s32.totalorder %s32, %s33
    %p44 = scmp.eq.s32.totalorder %s24, 0
    %p45 = por %p43, %p44
    %p46 = scmp.ne.s32.totalorder %s32, %s33
    %p47 = scmp.eq.s32.totalorder %s25, 1
    %p48 = por %p46, %p47
    %p50 = scmp.ne.s32.totalorder %s33, %s49
    %p51 = scmp.eq.s32.totalorder %s25, 0
    %p52 = por %p50, %p51
    %s53 = ssub.s32 %s19, %s26
    %p54 = scmp.eq.s32.totalorder %s53, 0
    %s56 = sadd.s32 %s55, 1
    %s57 = scalar_select %p54, %s55, %s56
    %p60 = pneg %p54
    %p61 = scmp.eq.s32.totalorder %s19, 1
    %p62 = por %p60, %p61
    %p63 = scmp.ne.s32.totalorder %s55, %s58
    %p64 = scmp.eq.s32.totalorder %s19, 0
    %p65 = por %p63, %p64
    %p66 = scmp.ne.s32.totalorder %s55, %s58
    %p67 = scmp.eq.s32.totalorder %s24, 1
    %p68 = por %p66, %p67
    %p69 = scmp.ne.s32.totalorder %s58, %s59
    %p70 = scmp.eq.s32.totalorder %s24, 0
    %p71 = por %p69, %p70
    %p72 = scmp.ne.s32.totalorder %s58, %s59
    %p73 = scmp.eq.s32.totalorder %s25, 1
    %p74 = por %p72, %p73
    %p76 = scmp.ne.s32.totalorder %s59, %s75
    %p77 = scmp.eq.s32.totalorder %s25, 0
    %p78 = por %p76, %p77
    %s80 = sadd.s32 %s79, 1
    %p83 = scmp.eq.s32.totalorder %s19, 1
    %p84 = scmp.ne.s32.totalorder %s79, %s81
    %p85 = scmp.eq.s32.totalorder %s19, 0
    %p86 = por %p84, %p85
    %p87 = scmp.ne.s32.totalorder %s79, %s81
    %p88 = scmp.eq.s32.totalorder %s24, 1
    %p89 = por %p87, %p88
    %p90 = scmp.ne.s32.totalorder %s81, %s82
    %p91 = scmp.eq.s32.totalorder %s24, 0
    %p92 = por %p90, %p91
    %p93 = scmp.ne.s32.totalorder %s81, %s82
    %p94 = scmp.eq.s32.totalorder %s25, 1
    %p95 = por %p93, %p94
    %p97 = scmp.ne.s32.totalorder %s82, %s96
    %p98 = scmp.eq.s32.totalorder %s25, 0
    %p99 = por %p97, %p98
    %s101 = sadd.s32 %s100, 1
    %p104 = scmp.eq.s32.totalorder %s19, 1
    %p105 = scmp.ne.s32.totalorder %s100, %s102
    %p106 = scmp.eq.s32.totalorder %s19, 0
    %p107 = por %p105, %p106
    %p108 = scmp.ne.s32.totalorder %s100, %s102
    %p109 = scmp.eq.s32.totalorder %s24, 1
    %p110 = por %p108, %p109
    %p111 = scmp.ne.s32.totalorder %s102, %s103
    %p112 = scmp.eq.s32.totalorder %s24, 0
    %p113 = por %p111, %p112
    %p114 = scmp.ne.s32.totalorder %s102, %s103
    %p115 = scmp.eq.s32.totalorder %s25, 1
    %p116 = por %p114, %p115
    %p118 = scmp.ne.s32.totalorder %s103, %s117
    %p119 = scmp.eq.s32.totalorder %s25, 0
    %p120 = por %p118, %p119
    %s122 = sadd.s32 %s121, 1
    %p125 = scmp.eq.s32.totalorder %s19, 1
    %p126 = scmp.ne.s32.totalorder %s121, %s123
    %p127 = scmp.eq.s32.totalorder %s19, 0
    %p128 = por %p126, %p127
    %p129 = scmp.ne.s32.totalorder %s121, %s123
    %p130 = scmp.eq.s32.totalorder %s24, 1
    %p131 = por %p129, %p130
    %p132 = scmp.ne.s32.totalorder %s123, %s124
    %p133 = scmp.eq.s32.totalorder %s24, 0
    %p134 = por %p132, %p133
    %p135 = scmp.ne.s32.totalorder %s123, %s124
    %p136 = scmp.eq.s32.totalorder %s25, 1
    %p137 = por %p135, %p136
    %p139 = scmp.ne.s32.totalorder %s124, %s138
    %p140 = scmp.eq.s32.totalorder %s25, 0
    %p141 = por %p139, %p140
    %s143 = sadd.s32 %s142, 1
    %p146 = scmp.eq.s32.totalorder %s19, 1
    %p147 = scmp.ne.s32.totalorder %s142, %s144
    %p148 = scmp.eq.s32.totalorder %s19, 0
    %p149 = por %p147, %p148
    %p150 = scmp.ne.s32.totalorder %s142, %s144
    %p151 = scmp.eq.s32.totalorder %s24, 1
    %p152 = por %p150, %p151
    %p153 = scmp.ne.s32.totalorder %s144, %s145
    %p154 = scmp.eq.s32.totalorder %s24, 0
    %p155 = por %p153, %p154
    %p156 = scmp.ne.s32.totalorder %s144, %s145
    %p157 = scmp.eq.s32.totalorder %s25, 1
    %p158 = por %p156, %p157
    %p160 = scmp.ne.s32.totalorder %s145, %s159
    %p161 = scmp.eq.s32.totalorder %s25, 0
    %p162 = por %p160, %p161
    %s164 = sadd.s32 %s163, 1
    %p167 = scmp.eq.s32.totalorder %s19, 1
    %p168 = scmp.ne.s32.totalorder %s163, %s165
    %p169 = scmp.eq.s32.totalorder %s19, 0
    %p170 = por %p168, %p169
    %p171 = scmp.ne.s32.totalorder %s163, %s165
    %p172 = scmp.eq.s32.totalorder %s24, 1
    %p173 = por %p171, %p172
    %p174 = scmp.ne.s32.totalorder %s165, %s166
    %p175 = scmp.eq.s32.totalorder %s24, 0
    %p176 = por %p174, %p175
    %p177 = scmp.ne.s32.totalorder %s165, %s166
    %p178 = scmp.eq.s32.totalorder %s25, 1
    %p179 = por %p177, %p178
    %p181 = scmp.ne.s32.totalorder %s166, %s180
    %p182 = scmp.eq.s32.totalorder %s25, 0
    %p183 = por %p181, %p182
    %s185 = sadd.s32 %s184, 1
    %p188 = scmp.eq.s32.totalorder %s19, 1
    %p189 = scmp.ne.s32.totalorder %s184, %s186
    %p190 = scmp.eq.s32.totalorder %s19, 0
    %p191 = por %p189, %p190
    %p192 = scmp.ne.s32.totalorder %s184, %s186
    %p193 = scmp.eq.s32.totalorder %s24, 1
    %p194 = por %p192, %p193
    %p195 = scmp.ne.s32.totalorder %s186, %s187
    %p196 = scmp.eq.s32.totalorder %s24, 0
    %p197 = por %p195, %p196
    %p198 = scmp.ne.s32.totalorder %s186, %s187
    %p199 = scmp.eq.s32.totalorder %s25, 1
    %p200 = por %p198, %p199
    %p202 = scmp.ne.s32.totalorder %s187, %s201
    %p203 = scmp.eq.s32.totalorder %s25, 0
    %p204 = por %p202, %p203
    %s206 = sadd.s32 %s205, 1
    %p209 = scmp.eq.s32.totalorder %s19, 1
    %p210 = scmp.ne.s32.totalorder %s205, %s207
    %p211 = scmp.eq.s32.totalorder %s19, 0
    %p212 = por %p210, %p211
    %p213 = scmp.ne.s32.totalorder %s205, %s207
    %p214 = scmp.eq.s32.totalorder %s24, 1
    %p215 = por %p213, %p214
    %p216 = scmp.ne.s32.totalorder %s207, %s208
    %p217 = scmp.eq.s32.totalorder %s24, 0
    %p218 = por %p216, %p217
    %p219 = scmp.ne.s32.totalorder %s207, %s208
    %p220 = scmp.eq.s32.totalorder %s25, 1
    %p221 = por %p219, %p220
    %p223 = scmp.ne.s32.totalorder %s208, %s222
    %p224 = scmp.eq.s32.totalorder %s25, 0
    %p225 = por %p223, %p224
    %s227 = sadd.s32 %s226, 1
    %p230 = scmp.eq.s32.totalorder %s19, 1
    %p231 = scmp.ne.s32.totalorder %s226, %s228
    %p232 = scmp.eq.s32.totalorder %s19, 0
    %p233 = por %p231, %p232
    %p234 = scmp.ne.s32.totalorder %s226, %s228
    %p235 = scmp.eq.s32.totalorder %s24, 1
    %p236 = por %p234, %p235
    %p237 = scmp.ne.s32.totalorder %s228, %s229
    %p238 = scmp.eq.s32.totalorder %s24, 0
    %p239 = por %p237, %p238
    %p240 = scmp.ne.s32.totalorder %s228, %s229
    %p241 = scmp.eq.s32.totalorder %s25, 1
    %p242 = por %p240, %p241
    %p244 = scmp.ne.s32.totalorder %s229, %s243
    %p245 = scmp.eq.s32.totalorder %s25, 0
    %p246 = por %p244, %p245
    %s248 = sadd.s32 %s247, 1
    %p251 = scmp.eq.s32.totalorder %s19, 1
    %p252 = scmp.ne.s32.totalorder %s247, %s249
    %p253 = scmp.eq.s32.totalorder %s19, 0
    %p254 = por %p252, %p253
    %p255 = scmp.ne.s32.totalorder %s247, %s249
    %p256 = scmp.eq.s32.totalorder %s24, 1
    %p257 = por %p255, %p256
    %p258 = scmp.ne.s32.totalorder %s249, %s250
    %p259 = scmp.eq.s32.totalorder %s24, 0
    %p260 = por %p258, %p259
    %p261 = scmp.ne.s32.totalorder %s249, %s250
    %p262 = scmp.eq.s32.totalorder %s25, 1
    %p263 = por %p261, %p262
    %p265 = scmp.ne.s32.totalorder %s250, %s264
    %p266 = scmp.eq.s32.totalorder %s25, 0
    %p267 = por %p265, %p266
    %s269 = sadd.s32 %s268, 1
    %p272 = scmp.eq.s32.totalorder %s19, 1
    %p273 = scmp.ne.s32.totalorder %s268, %s270
    %p274 = scmp.eq.s32.totalorder %s19, 0
    %p275 = por %p273, %p274
    %p276 = scmp.ne.s32.totalorder %s268, %s270
    %p277 = scmp.eq.s32.totalorder %s24, 1
    %p278 = por %p276, %p277
    %p279 = scmp.ne.s32.totalorder %s270, %s271
    %p280 = scmp.eq.s32.totalorder %s24, 0
    %p281 = por %p279, %p280
    %p282 = scmp.ne.s32.totalorder %s270, %s271
    %p283 = scmp.eq.s32.totalorder %s25, 1
    %p284 = por %p282, %p283
    %p286 = scmp.ne.s32.totalorder %s271, %s285
    %p287 = scmp.eq.s32.totalorder %s25, 0
    %p288 = por %p286, %p287
    %s290 = sadd.s32 %s289, 1
    %p293 = scmp.eq.s32.totalorder %s19, 1
    %p294 = scmp.ne.s32.totalorder %s289, %s291
    %p295 = scmp.eq.s32.totalorder %s19, 0
    %p296 = por %p294, %p295
    %p297 = scmp.ne.s32.totalorder %s289, %s291
    %p298 = scmp.eq.s32.totalorder %s24, 1
    %p299 = por %p297, %p298
    %p300 = scmp.ne.s32.totalorder %s291, %s292
    %p301 = scmp.eq.s32.totalorder %s24, 0
    %p302 = por %p300, %p301
    %p303 = scmp.ne.s32.totalorder %s291, %s292
    %p304 = scmp.eq.s32.totalorder %s25, 1
    %p305 = por %p303, %p304
    %p307 = scmp.ne.s32.totalorder %s292, %s306
    %p308 = scmp.eq.s32.totalorder %s25, 0
    %p309 = por %p307, %p308
    %s310 = ssub.s32 %s19, %s26
    %p311 = scmp.eq.s32.totalorder %s310, 0
    %s313 = sadd.s32 %s312, 1
    %s314 = scalar_select %p311, %s312, %s313
    %p317 = pneg %p311
    %p318 = scmp.eq.s32.totalorder %s19, 1
    %p319 = por %p317, %p318
    %p320 = scmp.ne.s32.totalorder %s312, %s315
    %p321 = scmp.eq.s32.totalorder %s19, 0
    %p322 = por %p320, %p321
    %p323 = scmp.ne.s32.totalorder %s312, %s315
    %p324 = scmp.eq.s32.totalorder %s24, 1
    %p325 = por %p323, %p324
    %p326 = scmp.ne.s32.totalorder %s315, %s316
    %p327 = scmp.eq.s32.totalorder %s24, 0
    %p328 = por %p326, %p327
    %p329 = scmp.ne.s32.totalorder %s315, %s316
    %p330 = scmp.eq.s32.totalorder %s25, 1
    %p331 = por %p329, %p330
    %p333 = scmp.ne.s32.totalorder %s316, %s332
    %p334 = scmp.eq.s32.totalorder %s25, 0
    %p335 = por %p333, %p334
    %p336 = scmp.le.s32.totalorder 1, %s19
    %p337 = scmp.lt.s32.totalorder %s19, 3
    %p338 = pnand %p336, %p337
    %p339 = pneg %p338
    // Predicated region
    $region9: #{hformer_block_forward.1} parent=5 // pred_check
      _
    $region10: #{hformer_block_forward.1} parent=5 // pred_check_branch
      %341 = sbr.rel (%p338) target = $region12
    $region11: #{hformer_block_forward.1} parent=5 // pred_region
      %s342 = ssub.s32 %s19, 1
      // Predicated region
      $region13: #{hformer_block_forward.1} parent=11 // pred_check
        %p343 = pneg %p92
      $region14: #{hformer_block_forward.1} parent=11 // pred_check_branch
        %345 = sbr.rel (%p343) target = $region16
      $region15: #{hformer_block_forward.1} parent=11 // pred_region
        _
      $region16: #{hformer_block_forward.1} parent=11 // pred_fallthru
        _
      // Predicated region
      $region17: #{hformer_block_forward.1} parent=11 // pred_check
        %p346 = pneg %p113
      $region18: #{hformer_block_forward.1} parent=11 // pred_check_branch
        %348 = sbr.rel (%p346) target = $region20
      $region19: #{hformer_block_forward.1} parent=11 // pred_region
        _
      $region20: #{hformer_block_forward.1} parent=11 // pred_fallthru
        _
      // Predicated region
      $region21: #{hformer_block_forward.1} parent=11 // pred_check
        %p349 = pneg %p134
      $region22: #{hformer_block_forward.1} parent=11 // pred_check_branch
        %351 = sbr.rel (%p349) target = $region24
      $region23: #{hformer_block_forward.1} parent=11 // pred_region
        _
      $region24: #{hformer_block_forward.1} parent=11 // pred_fallthru
        _
      // Predicated region
      $region25: #{hformer_block_forward.1} parent=11 // pred_check
        %p352 = pneg %p155
      $region26: #{hformer_block_forward.1} parent=11 // pred_check_branch
        %354 = sbr.rel (%p352) target = $region28
      $region27: #{hformer_block_forward.1} parent=11 // pred_region
        _
      $region28: #{hformer_block_forward.1} parent=11 // pred_fallthru
        _
      // Predicated region
      $region29: #{hformer_block_forward.1} parent=11 // pred_check
        %p355 = pneg %p176
      $region30: #{hformer_block_forward.1} parent=11 // pred_check_branch
        %357 = sbr.rel (%p355) target = $region32
      $region31: #{hformer_block_forward.1} parent=11 // pred_region
        _
      $region32: #{hformer_block_forward.1} parent=11 // pred_fallthru
        _
      // Predicated region
      $region33: #{hformer_block_forward.1} parent=11 // pred_check
        %p358 = pneg %p197
      $region34: #{hformer_block_forward.1} parent=11 // pred_check_branch
        %360 = sbr.rel (%p358) target = $region36
      $region35: #{hformer_block_forward.1} parent=11 // pred_region
        _
      $region36: #{hformer_block_forward.1} parent=11 // pred_fallthru
        _
      // Predicated region
      $region37: #{hformer_block_forward.1} parent=11 // pred_check
        %p361 = pneg %p218
      $region38: #{hformer_block_forward.1} parent=11 // pred_check_branch
        %363 = sbr.rel (%p361) target = $region40
      $region39: #{hformer_block_forward.1} parent=11 // pred_region
        _
      $region40: #{hformer_block_forward.1} parent=11 // pred_fallthru
        _
      // Predicated region
      $region41: #{hformer_block_forward.1} parent=11 // pred_check
        %p364 = pneg %p239
      $region42: #{hformer_block_forward.1} parent=11 // pred_check_branch
        %366 = sbr.rel (%p364) target = $region44
      $region43: #{hformer_block_forward.1} parent=11 // pred_region
        _
      $region44: #{hformer_block_forward.1} parent=11 // pred_fallthru
        _
      // Predicated region
      $region45: #{hformer_block_forward.1} parent=11 // pred_check
        %p367 = pneg %p260
      $region46: #{hformer_block_forward.1} parent=11 // pred_check_branch
        %369 = sbr.rel (%p367) target = $region48
      $region47: #{hformer_block_forward.1} parent=11 // pred_region
        _
      $region48: #{hformer_block_forward.1} parent=11 // pred_fallthru
        _
      // Predicated region
      $region49: #{hformer_block_forward.1} parent=11 // pred_check
        %p370 = pneg %p281
      $region50: #{hformer_block_forward.1} parent=11 // pred_check_branch
        %372 = sbr.rel (%p370) target = $region52
      $region51: #{hformer_block_forward.1} parent=11 // pred_region
        _
      $region52: #{hformer_block_forward.1} parent=11 // pred_fallthru
        _
      // Predicated region
      $region53: #{hformer_block_forward.1} parent=11 // pred_check
        %p373 = pneg %p302
      $region54: #{hformer_block_forward.1} parent=11 // pred_check_branch
        %375 = sbr.rel (%p373) target = $region56
      $region55: #{hformer_block_forward.1} parent=11 // pred_region
        _
      $region56: #{hformer_block_forward.1} parent=11 // pred_fallthru
        _
    $region12: #{hformer_block_forward.1} parent=5 // pred_fallthru
      _
    %p376 = scmp.lt.s32.totalorder %s19, 2
    // Predicated region
    $region57: #{hformer_block_forward.1} parent=5 // pred_check
      %p377 = pneg %p376
    $region58: #{hformer_block_forward.1} parent=5 // pred_check_branch
      %379 = sbr.rel (%p377) target = $region60
    $region59: #{hformer_block_forward.1} parent=5 // pred_region
      // Predicated region
      $region61: #{hformer_block_forward.1} parent=59 // pred_check
        %p380 = pneg %p39
      $region62: #{hformer_block_forward.1} parent=59 // pred_check_branch
        %382 = sbr.rel (%p380) target = $region64
      $region63: #{hformer_block_forward.1} parent=59 // pred_region
        %p383 = scmp.lt.s32.totalorder %s19, 1
        %s384 = scalar_select %p383, %s19, 1
        %s385 = smul.addr %s384, 3
        %s386 = smul.addr %s385, 4
        %s387 = scalar_lea.vmem %s0, %s386
      $region64: #{hformer_block_forward.1} parent=59 // pred_fallthru
        _
      // Predicated region
      $region65: #{hformer_block_forward.1} parent=59 // pred_check
        %p388 = pneg %p65
      $region66: #{hformer_block_forward.1} parent=59 // pred_check_branch
        %390 = sbr.rel (%p388) target = $region68
      $region67: #{hformer_block_forward.1} parent=59 // pred_region
        %p391 = scmp.lt.s32.totalorder %s19, 1
        %s392 = scalar_select %p391, %s19, 1
        %s393 = smul.addr %s392, 4
        %s394 = scalar_lea.vmem %s1, %s393
      $region68: #{hformer_block_forward.1} parent=59 // pred_fallthru
        _
    $region60: #{hformer_block_forward.1} parent=5 // pred_fallthru
      _
    %p395 = scmp.le.s32.totalorder 1, %s19
    %p396 = scmp.lt.s32.totalorder %s19, 3
    %p397 = pnand %p395, %p396
    %p398 = pneg %p397
    // Predicated region
    $region69: #{hformer_block_forward.1} parent=5 // pred_check
      _
    $region70: #{hformer_block_forward.1} parent=5 // pred_check_branch
      %400 = sbr.rel (%p397) target = $region72
    $region71: #{hformer_block_forward.1} parent=5 // pred_region
      %s401 = ssub.s32 %s19, 1
      %p402 = scmp.lt.s32.totalorder %s24, 1
      %s403 = scalar_select %p402, %s24, 1
      %s404 = smul.addr %s403, 3
      %s405 = smul.addr %s404, 4
      %s406 = scalar_lea.vmem %s0, %s405
      %p407 = pneg %p45
      %p408 = pneg %p42
      %p409 = scmp.lt.s32.totalorder %s24, 1
      %s410 = scalar_select %p409, %s24, 1
      %s411 = smul.addr %s410, 4
      %s412 = scalar_lea.vmem %s1, %s411
      %p413 = pneg %p71
      %p414 = pneg %p68
      %p415 = pneg %p92
      %p416 = pneg %p89
      %p417 = pneg %p113
      %p418 = pneg %p110
      %p419 = pneg %p134
      %p420 = pneg %p131
      %p421 = pneg %p155
      %p422 = pneg %p152
      %p423 = pneg %p176
      %p424 = pneg %p173
      %p425 = pneg %p197
      %p426 = pneg %p194
      %p427 = pneg %p218
      %p428 = pneg %p215
      %p429 = pneg %p239
      %p430 = pneg %p236
      %p431 = pneg %p260
      %p432 = pneg %p257
      %p433 = pneg %p281
      %p434 = pneg %p278
      %p435 = pneg %p302
      %p436 = pneg %p299
      %p437 = pneg %p328
      %p438 = pneg %p325
      %p439 = scmp.lt.s32.totalorder %s24, 1
      %s440 = scalar_select %p439, %s24, 1
      %s441 = smul.addr %s440, 2
      %s442 = smul.addr %s441, 4
      %s443 = scalar_lea.vmem %s13, %s442
      %p444 = scmp.lt.s32.totalorder %s24, 1
      %s445 = scalar_select %p444, %s24, 1
      %s446 = smul.addr %s445, 3
      %s447 = smul.addr %s446, 4
      %s448 = scalar_lea.vmem %s0, %s447
      %p449 = scmp.lt.s32.totalorder %s24, 1
      %s450 = scalar_select %p449, %s24, 1
      %s451 = smul.addr %s450, 4
      %s452 = scalar_lea.vmem %s1, %s451
      %p453 = scmp.lt.s32.totalorder %s24, 1
      %s454 = scalar_select %p453, %s24, 1
      %s455 = smul.addr %s454, 2
      %s456 = smul.addr %s455, 4
      %s457 = scalar_lea.vmem %s13, %s456
      %v458 = vld [vmem:[%s4] sm:$0xf]
      %v459 = vld [vmem:[%s448] sm:$0xff]
      %461 = vset.pattern.permute.xlu0 0
      %462 = vperm.xlu0 %461, %v458
      %v463 = vpop.permute.xlu0 %462
      %v466 = vcombine.high %v459, %v459
      %v468 = vmul.f32 %v463, %v459
      %v469 = vmul.f32 %v463, %v466
      %v470 = vadd.f32 %v468, 0.0
      %v471 = vadd.f32 %v469, 0.0
      %v472 = vld [vmem:[%s448] sm:$0xff]
      %v473 = vld [vmem:[%s448 + $0x8] sm:$0xf]
      %474 = vset.pattern.permute.xlu0 7
      %475 = vperm.xlu0 %474, %v458
      %v476 = vpop.permute.xlu0 %475
      %v480 = vcombine.high %v472, %v472
      %481 = vrot.lane.b32.xlu0 %v472, 112
      %v482 = vpop.permute.xlu0 %481
      %483 = vrot.lane.b32.xlu0 %v480, 112
      %v484 = vpop.permute.xlu0 %483
      %485 = vrot.lane.b32.xlu0 %v473, 112
      %v486 = vpop.permute.xlu0 %485
      %vm487 = vcmask 916480
      %v488 = vsel %vm487, %v482, %v484
      %v489 = vsel %vm487, %v484, %v486
      %v492 = vmul.f32 %v476, %v488
      %v493 = vmul.f32 %v476, %v489
      %v494 = vadd.f32 %v470, %v492
      %v495 = vadd.f32 %v471, %v493
      %v496 = vld [vmem:[%s448] sm:$0xff]
      %v497 = vld [vmem:[%s448 + $0x8] sm:$0xf]
      %498 = vset.pattern.permute.xlu0 14
      %499 = vperm.xlu0 %498, %v458
      %v500 = vpop.permute.xlu0 %499
      %v504 = vcombine.high %v496, %v496
      %505 = vrot.lane.b32.xlu0 %v496, 96
      %v506 = vpop.permute.xlu0 %505
      %507 = vrot.lane.b32.xlu0 %v504, 96
      %v508 = vpop.permute.xlu0 %507
      %509 = vrot.lane.b32.xlu0 %v497, 96
      %v510 = vpop.permute.xlu0 %509
      %vm511 = vcmask 785408
      %v512 = vsel %vm511, %v506, %v508
      %v513 = vsel %vm511, %v508, %v510
      %v516 = vmul.f32 %v500, %v512
      %v517 = vmul.f32 %v500, %v513
      %v518 = vadd.f32 %v494, %v516
      %v519 = vadd.f32 %v495, %v517
      %v520 = vld [vmem:[%s448] sm:$0xff]
      %v521 = vld [vmem:[%s448 + $0x8] sm:$0xf]
      %522 = vset.pattern.permute.xlu0 21
      %523 = vperm.xlu0 %522, %v458
      %v524 = vpop.permute.xlu0 %523
      %v528 = vcombine.high %v520, %v520
      %529 = vrot.lane.b32.xlu0 %v520, 80
      %v530 = vpop.permute.xlu0 %529
      %531 = vrot.lane.b32.xlu0 %v528, 80
      %v532 = vpop.permute.xlu0 %531
      %533 = vrot.lane.b32.xlu0 %v521, 80
      %v534 = vpop.permute.xlu0 %533
      %vm535 = vcmask 654336
      %v536 = vsel %vm535, %v530, %v532
      %v537 = vsel %vm535, %v532, %v534
      %v540 = vmul.f32 %v524, %v536
      %v541 = vmul.f32 %v524, %v537
      %v542 = vadd.f32 %v518, %v540
      %v543 = vadd.f32 %v519, %v541
      %v544 = vld [vmem:[%s448] sm:$0xff]
      %v545 = vld [vmem:[%s448 + $0x8] sm:$0xf]
      %546 = vset.pattern.permute.xlu0 28
      %547 = vperm.xlu0 %546, %v458
      %v548 = vpop.permute.xlu0 %547
      %v552 = vcombine.high %v544, %v544
      %553 = vrot.lane.b32.xlu0 %v544, 64
      %v554 = vpop.permute.xlu0 %553
      %555 = vrot.lane.b32.xlu0 %v552, 64
      %v556 = vpop.permute.xlu0 %555
      %557 = vrot.lane.b32.xlu0 %v545, 64
      %v558 = vpop.permute.xlu0 %557
      %vm559 = vcmask 523264
      %v560 = vsel %vm559, %v554, %v556
      %v561 = vsel %vm559, %v556, %v558
      %v564 = vmul.f32 %v548, %v560
      %v565 = vmul.f32 %v548, %v561
      %v566 = vadd.f32 %v542, %v564
      %v567 = vadd.f32 %v543, %v565
      %v568 = vld [vmem:[%s448] sm:$0xff]
      %v569 = vld [vmem:[%s448 + $0x8] sm:$0xf]
      %570 = vset.pattern.permute.xlu0 35
      %571 = vperm.xlu0 %570, %v458
      %v572 = vpop.permute.xlu0 %571
      %v576 = vcombine.high %v568, %v568
      %577 = vrot.lane.b32.xlu0 %v568, 48
      %v578 = vpop.permute.xlu0 %577
      %579 = vrot.lane.b32.xlu0 %v576, 48
      %v580 = vpop.permute.xlu0 %579
      %581 = vrot.lane.b32.xlu0 %v569, 48
      %v582 = vpop.permute.xlu0 %581
      %vm583 = vcmask 392192
      %v584 = vsel %vm583, %v578, %v580
      %v585 = vsel %vm583, %v580, %v582
      %v588 = vmul.f32 %v572, %v584
      %v589 = vmul.f32 %v572, %v585
      %v590 = vadd.f32 %v566, %v588
      %v591 = vadd.f32 %v567, %v589
      %v592 = vld [vmem:[%s448] sm:$0xff]
      %v593 = vld [vmem:[%s448 + $0x8] sm:$0xf]
      %594 = vset.pattern.permute.xlu0 42
      %595 = vperm.xlu0 %594, %v458
      %v596 = vpop.permute.xlu0 %595
      %v600 = vcombine.high %v592, %v592
      %601 = vrot.lane.b32.xlu0 %v592, 32
      %v602 = vpop.permute.xlu0 %601
      %603 = vrot.lane.b32.xlu0 %v600, 32
      %v604 = vpop.permute.xlu0 %603
      %605 = vrot.lane.b32.xlu0 %v593, 32
      %v606 = vpop.permute.xlu0 %605
      %vm607 = vcmask 261120
      %v608 = vsel %vm607, %v602, %v604
      %v609 = vsel %vm607, %v604, %v606
      %v612 = vmul.f32 %v596, %v608
      %v613 = vmul.f32 %v596, %v609
      %v614 = vadd.f32 %v590, %v612
      %v615 = vadd.f32 %v591, %v613
      %v616 = vld [vmem:[%s2] ss:$8 sm:$0x3]
      %v618 = vlaneseq
      %v619 = vshrl.u32 %v618, 7
      %v620 = vsub.s32 0, %v619
      %v621 = vrot.slane %v616, %v620
      %v622 = vlaneseq
      %v623 = vshrl.u32 %v622, 7
      %v624 = vsub.s32 1, %v623
      %v625 = vrot.slane %v616, %v624
      %v628 = vmul.f32 %v621, %v614
      %v629 = vmul.f32 %v625, %v615
      %v630 = vadd.f32 %v628, 0.0
      %v631 = vadd.f32 %v629, 0.0
      %v632 = vld [vmem:[%s448] sm:$0xff]
      %v633 = vld [vmem:[%s448 + $0x8] sm:$0xf]
      %634 = vset.pattern.permute.xlu0 1
      %635 = vperm.xlu0 %634, %v458
      %v636 = vpop.permute.xlu0 %635
      %v640 = vcombine.high %v632, %v632
      %641 = vrot.lane.b32.xlu0 %v632, 127
      %v642 = vpop.permute.xlu0 %641
      %643 = vrot.lane.b32.xlu0 %v640, 127
      %v644 = vpop.permute.xlu0 %643
      %645 = vrot.lane.b32.xlu0 %v633, 127
      %v646 = vpop.permute.xlu0 %645
      %vm647 = vcmask 1039360
      %v648 = vsel %vm647, %v642, %v644
      %v649 = vsel %vm647, %v644, %v646
      %v652 = vmul.f32 %v636, %v648
      %v653 = vmul.f32 %v636, %v649
      %v654 = vadd.f32 %v652, 0.0
      %v655 = vadd.f32 %v653, 0.0
      %v656 = vld [vmem:[%s448] sm:$0xff]
      %v657 = vld [vmem:[%s448 + $0x8] sm:$0xf]
      %658 = vset.pattern.permute.xlu0 8
      %659 = vperm.xlu0 %658, %v458
      %v660 = vpop.permute.xlu0 %659
      %v664 = vcombine.high %v656, %v656
      %665 = vrot.lane.b32.xlu0 %v656, 111
      %v666 = vpop.permute.xlu0 %665
      %667 = vrot.lane.b32.xlu0 %v664, 111
      %v668 = vpop.permute.xlu0 %667
      %669 = vrot.lane.b32.xlu0 %v657, 111
      %v670 = vpop.permute.xlu0 %669
      %vm671 = vcmask 908288
      %v672 = vsel %vm671, %v666, %v668
      %v673 = vsel %vm671, %v668, %v670
      %v676 = vmul.f32 %v660, %v672
      %v677 = vmul.f32 %v660, %v673
      %v678 = vadd.f32 %v654, %v676
      %v679 = vadd.f32 %v655, %v677
      %v680 = vld [vmem:[%s448] sm:$0xff]
      %v681 = vld [vmem:[%s448 + $0x8] sm:$0xf]
      %682 = vset.pattern.permute.xlu0 15
      %683 = vperm.xlu0 %682, %v458
      %v684 = vpop.permute.xlu0 %683
      %v688 = vcombine.high %v680, %v680
      %689 = vrot.lane.b32.xlu0 %v680, 95
      %v690 = vpop.permute.xlu0 %689
      %691 = vrot.lane.b32.xlu0 %v688, 95
      %v692 = vpop.permute.xlu0 %691
      %693 = vrot.lane.b32.xlu0 %v681, 95
      %v694 = vpop.permute.xlu0 %693
      %vm695 = vcmask 777216
      %v696 = vsel %vm695, %v690, %v692
      %v697 = vsel %vm695, %v692, %v694
      %v700 = vmul.f32 %v684, %v696
      %v701 = vmul.f32 %v684, %v697
      %v702 = vadd.f32 %v678, %v700
      %v703 = vadd.f32 %v679, %v701
      %v704 = vld [vmem:[%s448] sm:$0xff]
      %v705 = vld [vmem:[%s448 + $0x8] sm:$0xf]
      %706 = vset.pattern.permute.xlu0 22
      %707 = vperm.xlu0 %706, %v458
      %v708 = vpop.permute.xlu0 %707
      %v712 = vcombine.high %v704, %v704
      %713 = vrot.lane.b32.xlu0 %v704, 79
      %v714 = vpop.permute.xlu0 %713
      %715 = vrot.lane.b32.xlu0 %v712, 79
      %v716 = vpop.permute.xlu0 %715
      %717 = vrot.lane.b32.xlu0 %v705, 79
      %v718 = vpop.permute.xlu0 %717
      %vm719 = vcmask 646144
      %v720 = vsel %vm719, %v714, %v716
      %v721 = vsel %vm719, %v716, %v718
      %v724 = vmul.f32 %v708, %v720
      %v725 = vmul.f32 %v708, %v721
      %v726 = vadd.f32 %v702, %v724
      %v727 = vadd.f32 %v703, %v725
      %v728 = vld [vmem:[%s448] sm:$0xff]
      %v729 = vld [vmem:[%s448 + $0x8] sm:$0xf]
      %730 = vset.pattern.permute.xlu0 29
      %731 = vperm.xlu0 %730, %v458
      %v732 = vpop.permute.xlu0 %731
      %v736 = vcombine.high %v728, %v728
      %737 = vrot.lane.b32.xlu0 %v728, 63
      %v738 = vpop.permute.xlu0 %737
      %739 = vrot.lane.b32.xlu0 %v736, 63
      %v740 = vpop.permute.xlu0 %739
      %741 = vrot.lane.b32.xlu0 %v729, 63
      %v742 = vpop.permute.xlu0 %741
      %vm743 = vcmask 515072
      %v744 = vsel %vm743, %v738, %v740
      %v745 = vsel %vm743, %v740, %v742
      %v748 = vmul.f32 %v732, %v744
      %v749 = vmul.f32 %v732, %v745
      %v750 = vadd.f32 %v726, %v748
      %v751 = vadd.f32 %v727, %v749
      %v752 = vld [vmem:[%s448] sm:$0xff]
      %v753 = vld [vmem:[%s448 + $0x8] sm:$0xf]
      %754 = vset.pattern.permute.xlu0 36
      %755 = vperm.xlu0 %754, %v458
      %v756 = vpop.permute.xlu0 %755
      %v760 = vcombine.high %v752, %v752
      %761 = vrot.lane.b32.xlu0 %v752, 47
      %v762 = vpop.permute.xlu0 %761
      %763 = vrot.lane.b32.xlu0 %v760, 47
      %v764 = vpop.permute.xlu0 %763
      %765 = vrot.lane.b32.xlu0 %v753, 47
      %v766 = vpop.permute.xlu0 %765
      %vm767 = vcmask 384000
      %v768 = vsel %vm767, %v762, %v764
      %v769 = vsel %vm767, %v764, %v766
      %v772 = vmul.f32 %v756, %v768
      %v773 = vmul.f32 %v756, %v769
      %v774 = vadd.f32 %v750, %v772
      %v775 = vadd.f32 %v751, %v773
      %v776 = vld [vmem:[%s448] sm:$0xff]
      %v777 = vld [vmem:[%s448 + $0x8] sm:$0xf]
      %778 = vset.pattern.permute.xlu0 43
      %779 = vperm.xlu0 %778, %v458
      %v780 = vpop.permute.xlu0 %779
      %v784 = vcombine.high %v776, %v776
      %785 = vrot.lane.b32.xlu0 %v776, 31
      %v786 = vpop.permute.xlu0 %785
      %787 = vrot.lane.b32.xlu0 %v784, 31
      %v788 = vpop.permute.xlu0 %787
      %789 = vrot.lane.b32.xlu0 %v777, 31
      %v790 = vpop.permute.xlu0 %789
      %vm791 = vcmask 252928
      %v792 = vsel %vm791, %v786, %v788
      %v793 = vsel %vm791, %v788, %v790
      %v796 = vmul.f32 %v780, %v792
      %v797 = vmul.f32 %v780, %v793
      %v798 = vadd.f32 %v774, %v796
      %v799 = vadd.f32 %v775, %v797
      %s800 = scalar_lea.vmem %s2, 1
      %v801 = vld [vmem:[%s800] ss:$8 sm:$0x3]
      %v803 = vlaneseq
      %v804 = vshrl.u32 %v803, 7
      %v805 = vsub.s32 0, %v804
      %v806 = vrot.slane %v801, %v805
      %v807 = vlaneseq
      %v808 = vshrl.u32 %v807, 7
      %v809 = vsub.s32 1, %v808
      %v810 = vrot.slane %v801, %v809
      %v813 = vmul.f32 %v806, %v798
      %v814 = vmul.f32 %v810, %v799
      %v815 = vadd.f32 %v630, %v813
      %v816 = vadd.f32 %v631, %v814
      %v817 = vld [vmem:[%s448] sm:$0xff]
      %v818 = vld [vmem:[%s448 + $0x8] sm:$0xf]
      %819 = vset.pattern.permute.xlu0 2
      %820 = vperm.xlu0 %819, %v458
      %v821 = vpop.permute.xlu0 %820
      %v825 = vcombine.high %v817, %v817
      %826 = vrot.lane.b32.xlu0 %v817, 126
      %v827 = vpop.permute.xlu0 %826
      %828 = vrot.lane.b32.xlu0 %v825, 126
      %v829 = vpop.permute.xlu0 %828
      %830 = vrot.lane.b32.xlu0 %v818, 126
      %v831 = vpop.permute.xlu0 %830
      %vm832 = vcmask 1031168
      %v833 = vsel %vm832, %v827, %v829
      %v834 = vsel %vm832, %v829, %v831
      %v837 = vmul.f32 %v821, %v833
      %v838 = vmul.f32 %v821, %v834
      %v839 = vadd.f32 %v837, 0.0
      %v840 = vadd.f32 %v838, 0.0
      %v841 = vld [vmem:[%s448] sm:$0xff]
      %v842 = vld [vmem:[%s448 + $0x8] sm:$0xf]
      %843 = vset.pattern.permute.xlu0 9
      %844 = vperm.xlu0 %843, %v458
      %v845 = vpop.permute.xlu0 %844
      %v849 = vcombine.high %v841, %v841
      %850 = vrot.lane.b32.xlu0 %v841, 110
      %v851 = vpop.permute.xlu0 %850
      %852 = vrot.lane.b32.xlu0 %v849, 110
      %v853 = vpop.permute.xlu0 %852
      %854 = vrot.lane.b32.xlu0 %v842, 110
      %v855 = vpop.permute.xlu0 %854
      %vm856 = vcmask 900096
      %v857 = vsel %vm856, %v851, %v853
      %v858 = vsel %vm856, %v853, %v855
      %v861 = vmul.f32 %v845, %v857
      %v862 = vmul.f32 %v845, %v858
      %v863 = vadd.f32 %v839, %v861
      %v864 = vadd.f32 %v840, %v862
      %v865 = vld [vmem:[%s448] sm:$0xff]
      %v866 = vld [vmem:[%s448 + $0x8] sm:$0xf]
      %867 = vset.pattern.permute.xlu0 16
      %868 = vperm.xlu0 %867, %v458
      %v869 = vpop.permute.xlu0 %868
      %v873 = vcombine.high %v865, %v865
      %874 = vrot.lane.b32.xlu0 %v865, 94
      %v875 = vpop.permute.xlu0 %874
      %876 = vrot.lane.b32.xlu0 %v873, 94
      %v877 = vpop.permute.xlu0 %876
      %878 = vrot.lane.b32.xlu0 %v866, 94
      %v879 = vpop.permute.xlu0 %878
      %vm880 = vcmask 769024
      %v881 = vsel %vm880, %v875, %v877
      %v882 = vsel %vm880, %v877, %v879
      %v885 = vmul.f32 %v869, %v881
      %v886 = vmul.f32 %v869, %v882
      %v887 = vadd.f32 %v863, %v885
      %v888 = vadd.f32 %v864, %v886
      %v889 = vld [vmem:[%s448] sm:$0xff]
      %v890 = vld [vmem:[%s448 + $0x8] sm:$0xf]
      %891 = vset.pattern.permute.xlu0 23
      %892 = vperm.xlu0 %891, %v458
      %v893 = vpop.permute.xlu0 %892
      %v897 = vcombine.high %v889, %v889
      %898 = vrot.lane.b32.xlu0 %v889, 78
      %v899 = vpop.permute.xlu0 %898
      %900 = vrot.lane.b32.xlu0 %v897, 78
      %v901 = vpop.permute.xlu0 %900
      %902 = vrot.lane.b32.xlu0 %v890, 78
      %v903 = vpop.permute.xlu0 %902
      %vm904 = vcmask 637952
      %v905 = vsel %vm904, %v899, %v901
      %v906 = vsel %vm904, %v901, %v903
      %v909 = vmul.f32 %v893, %v905
      %v910 = vmul.f32 %v893, %v906
      %v911 = vadd.f32 %v887, %v909
      %v912 = vadd.f32 %v888, %v910
      %v913 = vld [vmem:[%s448] sm:$0xff]
      %v914 = vld [vmem:[%s448 + $0x8] sm:$0xf]
      %915 = vset.pattern.permute.xlu0 30
      %916 = vperm.xlu0 %915, %v458
      %v917 = vpop.permute.xlu0 %916
      %v921 = vcombine.high %v913, %v913
      %922 = vrot.lane.b32.xlu0 %v913, 62
      %v923 = vpop.permute.xlu0 %922
      %924 = vrot.lane.b32.xlu0 %v921, 62
      %v925 = vpop.permute.xlu0 %924
      %926 = vrot.lane.b32.xlu0 %v914, 62
      %v927 = vpop.permute.xlu0 %926
      %vm928 = vcmask 506880
      %v929 = vsel %vm928, %v923, %v925
      %v930 = vsel %vm928, %v925, %v927
      %v933 = vmul.f32 %v917, %v929
      %v934 = vmul.f32 %v917, %v930
      %v935 = vadd.f32 %v911, %v933
      %v936 = vadd.f32 %v912, %v934
      %v937 = vld [vmem:[%s448] sm:$0xff]
      %v938 = vld [vmem:[%s448 + $0x8] sm:$0xf]
      %939 = vset.pattern.permute.xlu0 37
      %940 = vperm.xlu0 %939, %v458
      %v941 = vpop.permute.xlu0 %940
      %v945 = vcombine.high %v937, %v937
      %946 = vrot.lane.b32.xlu0 %v937, 46
      %v947 = vpop.permute.xlu0 %946
      %948 = vrot.lane.b32.xlu0 %v945, 46
      %v949 = vpop.permute.xlu0 %948
      %950 = vrot.lane.b32.xlu0 %v938, 46
      %v951 = vpop.permute.xlu0 %950
      %vm952 = vcmask 375808
      %v953 = vsel %vm952, %v947, %v949
      %v954 = vsel %vm952, %v949, %v951
      %v957 = vmul.f32 %v941, %v953
      %v958 = vmul.f32 %v941, %v954
      %v959 = vadd.f32 %v935, %v957
      %v960 = vadd.f32 %v936, %v958
      %v961 = vld [vmem:[%s448] sm:$0xff]
      %v962 = vld [vmem:[%s448 + $0x8] sm:$0xf]
      %963 = vset.pattern.permute.xlu0 44
      %964 = vperm.xlu0 %963, %v458
      %v965 = vpop.permute.xlu0 %964
      %v969 = vcombine.high %v961, %v961
      %970 = vrot.lane.b32.xlu0 %v961, 30
      %v971 = vpop.permute.xlu0 %970
      %972 = vrot.lane.b32.xlu0 %v969, 30
      %v973 = vpop.permute.xlu0 %972
      %974 = vrot.lane.b32.xlu0 %v962, 30
      %v975 = vpop.permute.xlu0 %974
      %vm976 = vcmask 244736
      %v977 = vsel %vm976, %v971, %v973
      %v978 = vsel %vm976, %v973, %v975
      %v981 = vmul.f32 %v965, %v977
      %v982 = vmul.f32 %v965, %v978
      %v983 = vadd.f32 %v959, %v981
      %v984 = vadd.f32 %v960, %v982
      %s985 = scalar_lea.vmem %s2, 2
      %v986 = vld [vmem:[%s985] ss:$8 sm:$0x3]
      %v988 = vlaneseq
      %v989 = vshrl.u32 %v988, 7
      %v990 = vsub.s32 0, %v989
      %v991 = vrot.slane %v986, %v990
      %v992 = vlaneseq
      %v993 = vshrl.u32 %v992, 7
      %v994 = vsub.s32 1, %v993
      %v995 = vrot.slane %v986, %v994
      %v998 = vmul.f32 %v991, %v983
      %v999 = vmul.f32 %v995, %v984
      %v1000 = vadd.f32 %v815, %v998
      %v1001 = vadd.f32 %v816, %v999
      %v1002 = vld [vmem:[%s448] sm:$0xff]
      %v1003 = vld [vmem:[%s448 + $0x8] sm:$0xf]
      %1004 = vset.pattern.permute.xlu0 3
      %1005 = vperm.xlu0 %1004, %v458
      %v1006 = vpop.permute.xlu0 %1005
      %v1010 = vcombine.high %v1002, %v1002
      %1011 = vrot.lane.b32.xlu0 %v1002, 125
      %v1012 = vpop.permute.xlu0 %1011
      %1013 = vrot.lane.b32.xlu0 %v1010, 125
      %v1014 = vpop.permute.xlu0 %1013
      %1015 = vrot.lane.b32.xlu0 %v1003, 125
      %v1016 = vpop.permute.xlu0 %1015
      %vm1017 = vcmask 1022976
      %v1018 = vsel %vm1017, %v1012, %v1014
      %v1019 = vsel %vm1017, %v1014, %v1016
      %v1022 = vmul.f32 %v1006, %v1018
      %v1023 = vmul.f32 %v1006, %v1019
      %v1024 = vadd.f32 %v1022, 0.0
      %v1025 = vadd.f32 %v1023, 0.0
      %v1026 = vld [vmem:[%s448] sm:$0xff]
      %v1027 = vld [vmem:[%s448 + $0x8] sm:$0xf]
      %1028 = vset.pattern.permute.xlu0 10
      %1029 = vperm.xlu0 %1028, %v458
      %v1030 = vpop.permute.xlu0 %1029
      %v1034 = vcombine.high %v1026, %v1026
      %1035 = vrot.lane.b32.xlu0 %v1026, 109
      %v1036 = vpop.permute.xlu0 %1035
      %1037 = vrot.lane.b32.xlu0 %v1034, 109
      %v1038 = vpop.permute.xlu0 %1037
      %1039 = vrot.lane.b32.xlu0 %v1027, 109
      %v1040 = vpop.permute.xlu0 %1039
      %vm1041 = vcmask 891904
      %v1042 = vsel %vm1041, %v1036, %v1038
      %v1043 = vsel %vm1041, %v1038, %v1040
      %v1046 = vmul.f32 %v1030, %v1042
      %v1047 = vmul.f32 %v1030, %v1043
      %v1048 = vadd.f32 %v1024, %v1046
      %v1049 = vadd.f32 %v1025, %v1047
      %v1050 = vld [vmem:[%s448] sm:$0xff]
      %v1051 = vld [vmem:[%s448 + $0x8] sm:$0xf]
      %1052 = vset.pattern.permute.xlu0 17
      %1053 = vperm.xlu0 %1052, %v458
      %v1054 = vpop.permute.xlu0 %1053
      %v1058 = vcombine.high %v1050, %v1050
      %1059 = vrot.lane.b32.xlu0 %v1050, 93
      %v1060 = vpop.permute.xlu0 %1059
      %1061 = vrot.lane.b32.xlu0 %v1058, 93
      %v1062 = vpop.permute.xlu0 %1061
      %1063 = vrot.lane.b32.xlu0 %v1051, 93
      %v1064 = vpop.permute.xlu0 %1063
      %vm1065 = vcmask 760832
      %v1066 = vsel %vm1065, %v1060, %v1062
      %v1067 = vsel %vm1065, %v1062, %v1064
      %v1070 = vmul.f32 %v1054, %v1066
      %v1071 = vmul.f32 %v1054, %v1067
      %v1072 = vadd.f32 %v1048, %v1070
      %v1073 = vadd.f32 %v1049, %v1071
      %v1074 = vld [vmem:[%s448] sm:$0xff]
      %v1075 = vld [vmem:[%s448 + $0x8] sm:$0xf]
      %1076 = vset.pattern.permute.xlu0 24
      %1077 = vperm.xlu0 %1076, %v458
      %v1078 = vpop.permute.xlu0 %1077
      %v1082 = vcombine.high %v1074, %v1074
      %1083 = vrot.lane.b32.xlu0 %v1074, 77
      %v1084 = vpop.permute.xlu0 %1083
      %1085 = vrot.lane.b32.xlu0 %v1082, 77
      %v1086 = vpop.permute.xlu0 %1085
      %1087 = vrot.lane.b32.xlu0 %v1075, 77
      %v1088 = vpop.permute.xlu0 %1087
      %vm1089 = vcmask 629760
      %v1090 = vsel %vm1089, %v1084, %v1086
      %v1091 = vsel %vm1089, %v1086, %v1088
      %v1094 = vmul.f32 %v1078, %v1090
      %v1095 = vmul.f32 %v1078, %v1091
      %v1096 = vadd.f32 %v1072, %v1094
      %v1097 = vadd.f32 %v1073, %v1095
      %v1098 = vld [vmem:[%s448] sm:$0xff]
      %v1099 = vld [vmem:[%s448 + $0x8] sm:$0xf]
      %1100 = vset.pattern.permute.xlu0 31
      %1101 = vperm.xlu0 %1100, %v458
      %v1102 = vpop.permute.xlu0 %1101
      %v1106 = vcombine.high %v1098, %v1098
      %1107 = vrot.lane.b32.xlu0 %v1098, 61
      %v1108 = vpop.permute.xlu0 %1107
      %1109 = vrot.lane.b32.xlu0 %v1106, 61
      %v1110 = vpop.permute.xlu0 %1109
      %1111 = vrot.lane.b32.xlu0 %v1099, 61
      %v1112 = vpop.permute.xlu0 %1111
      %vm1113 = vcmask 498688
      %v1114 = vsel %vm1113, %v1108, %v1110
      %v1115 = vsel %vm1113, %v1110, %v1112
      %v1118 = vmul.f32 %v1102, %v1114
      %v1119 = vmul.f32 %v1102, %v1115
      %v1120 = vadd.f32 %v1096, %v1118
      %v1121 = vadd.f32 %v1097, %v1119
      %v1122 = vld [vmem:[%s448] sm:$0xff]
      %v1123 = vld [vmem:[%s448 + $0x8] sm:$0xf]
      %1124 = vset.pattern.permute.xlu0 38
      %1125 = vperm.xlu0 %1124, %v458
      %v1126 = vpop.permute.xlu0 %1125
      %v1130 = vcombine.high %v1122, %v1122
      %1131 = vrot.lane.b32.xlu0 %v1122, 45
      %v1132 = vpop.permute.xlu0 %1131
      %1133 = vrot.lane.b32.xlu0 %v1130, 45
      %v1134 = vpop.permute.xlu0 %1133
      %1135 = vrot.lane.b32.xlu0 %v1123, 45
      %v1136 = vpop.permute.xlu0 %1135
      %vm1137 = vcmask 367616
      %v1138 = vsel %vm1137, %v1132, %v1134
      %v1139 = vsel %vm1137, %v1134, %v1136
      %v1142 = vmul.f32 %v1126, %v1138
      %v1143 = vmul.f32 %v1126, %v1139
      %v1144 = vadd.f32 %v1120, %v1142
      %v1145 = vadd.f32 %v1121, %v1143
      %v1146 = vld [vmem:[%s448] sm:$0xff]
      %v1147 = vld [vmem:[%s448 + $0x8] sm:$0xf]
      %1148 = vset.pattern.permute.xlu0 45
      %1149 = vperm.xlu0 %1148, %v458
      %v1150 = vpop.permute.xlu0 %1149
      %v1154 = vcombine.high %v1146, %v1146
      %1155 = vrot.lane.b32.xlu0 %v1146, 29
      %v1156 = vpop.permute.xlu0 %1155
      %1157 = vrot.lane.b32.xlu0 %v1154, 29
      %v1158 = vpop.permute.xlu0 %1157
      %1159 = vrot.lane.b32.xlu0 %v1147, 29
      %v1160 = vpop.permute.xlu0 %1159
      %vm1161 = vcmask 236544
      %v1162 = vsel %vm1161, %v1156, %v1158
      %v1163 = vsel %vm1161, %v1158, %v1160
      %v1166 = vmul.f32 %v1150, %v1162
      %v1167 = vmul.f32 %v1150, %v1163
      %v1168 = vadd.f32 %v1144, %v1166
      %v1169 = vadd.f32 %v1145, %v1167
      %s1170 = scalar_lea.vmem %s2, 3
      %v1171 = vld [vmem:[%s1170] ss:$8 sm:$0x3]
      %v1173 = vlaneseq
      %v1174 = vshrl.u32 %v1173, 7
      %v1175 = vsub.s32 0, %v1174
      %v1176 = vrot.slane %v1171, %v1175
      %v1177 = vlaneseq
      %v1178 = vshrl.u32 %v1177, 7
      %v1179 = vsub.s32 1, %v1178
      %v1180 = vrot.slane %v1171, %v1179
      %v1183 = vmul.f32 %v1176, %v1168
      %v1184 = vmul.f32 %v1180, %v1169
      %v1185 = vadd.f32 %v1000, %v1183
      %v1186 = vadd.f32 %v1001, %v1184
      %v1187 = vld [vmem:[%s448] sm:$0xff]
      %v1188 = vld [vmem:[%s448 + $0x8] sm:$0xf]
      %1189 = vset.pattern.permute.xlu0 4
      %1190 = vperm.xlu0 %1189, %v458
      %v1191 = vpop.permute.xlu0 %1190
      %v1195 = vcombine.high %v1187, %v1187
      %1196 = vrot.lane.b32.xlu0 %v1187, 124
      %v1197 = vpop.permute.xlu0 %1196
      %1198 = vrot.lane.b32.xlu0 %v1195, 124
      %v1199 = vpop.permute.xlu0 %1198
      %1200 = vrot.lane.b32.xlu0 %v1188, 124
      %v1201 = vpop.permute.xlu0 %1200
      %vm1202 = vcmask 1014784
      %v1203 = vsel %vm1202, %v1197, %v1199
      %v1204 = vsel %vm1202, %v1199, %v1201
      %v1207 = vmul.f32 %v1191, %v1203
      %v1208 = vmul.f32 %v1191, %v1204
      %v1209 = vadd.f32 %v1207, 0.0
      %v1210 = vadd.f32 %v1208, 0.0
      %v1211 = vld [vmem:[%s448] sm:$0xff]
      %v1212 = vld [vmem:[%s448 + $0x8] sm:$0xf]
      %1213 = vset.pattern.permute.xlu0 11
      %1214 = vperm.xlu0 %1213, %v458
      %v1215 = vpop.permute.xlu0 %1214
      %v1219 = vcombine.high %v1211, %v1211
      %1220 = vrot.lane.b32.xlu0 %v1211, 108
      %v1221 = vpop.permute.xlu0 %1220
      %1222 = vrot.lane.b32.xlu0 %v1219, 108
      %v1223 = vpop.permute.xlu0 %1222
      %1224 = vrot.lane.b32.xlu0 %v1212, 108
      %v1225 = vpop.permute.xlu0 %1224
      %vm1226 = vcmask 883712
      %v1227 = vsel %vm1226, %v1221, %v1223
      %v1228 = vsel %vm1226, %v1223, %v1225
      %v1231 = vmul.f32 %v1215, %v1227
      %v1232 = vmul.f32 %v1215, %v1228
      %v1233 = vadd.f32 %v1209, %v1231
      %v1234 = vadd.f32 %v1210, %v1232
      %v1235 = vld [vmem:[%s448] sm:$0xff]
      %v1236 = vld [vmem:[%s448 + $0x8] sm:$0xf]
      %1237 = vset.pattern.permute.xlu0 18
      %1238 = vperm.xlu0 %1237, %v458
      %v1239 = vpop.permute.xlu0 %1238
      %v1243 = vcombine.high %v1235, %v1235
      %1244 = vrot.lane.b32.xlu0 %v1235, 92
      %v1245 = vpop.permute.xlu0 %1244
      %1246 = vrot.lane.b32.xlu0 %v1243, 92
      %v1247 = vpop.permute.xlu0 %1246
      %1248 = vrot.lane.b32.xlu0 %v1236, 92
      %v1249 = vpop.permute.xlu0 %1248
      %vm1250 = vcmask 752640
      %v1251 = vsel %vm1250, %v1245, %v1247
      %v1252 = vsel %vm1250, %v1247, %v1249
      %v1255 = vmul.f32 %v1239, %v1251
      %v1256 = vmul.f32 %v1239, %v1252
      %v1257 = vadd.f32 %v1233, %v1255
      %v1258 = vadd.f32 %v1234, %v1256
      %v1259 = vld [vmem:[%s448] sm:$0xff]
      %v1260 = vld [vmem:[%s448 + $0x8] sm:$0xf]
      %1261 = vset.pattern.permute.xlu0 25
      %1262 = vperm.xlu0 %1261, %v458
      %v1263 = vpop.permute.xlu0 %1262
      %v1267 = vcombine.high %v1259, %v1259
      %1268 = vrot.lane.b32.xlu0 %v1259, 76
      %v1269 = vpop.permute.xlu0 %1268
      %1270 = vrot.lane.b32.xlu0 %v1267, 76
      %v1271 = vpop.permute.xlu0 %1270
      %1272 = vrot.lane.b32.xlu0 %v1260, 76
      %v1273 = vpop.permute.xlu0 %1272
      %vm1274 = vcmask 621568
      %v1275 = vsel %vm1274, %v1269, %v1271
      %v1276 = vsel %vm1274, %v1271, %v1273
      %v1279 = vmul.f32 %v1263, %v1275
      %v1280 = vmul.f32 %v1263, %v1276
      %v1281 = vadd.f32 %v1257, %v1279
      %v1282 = vadd.f32 %v1258, %v1280
      %v1283 = vld [vmem:[%s448] sm:$0xff]
      %v1284 = vld [vmem:[%s448 + $0x8] sm:$0xf]
      %1285 = vset.pattern.permute.xlu0 32
      %1286 = vperm.xlu0 %1285, %v458
      %v1287 = vpop.permute.xlu0 %1286
      %v1291 = vcombine.high %v1283, %v1283
      %1292 = vrot.lane.b32.xlu0 %v1283, 60
      %v1293 = vpop.permute.xlu0 %1292
      %1294 = vrot.lane.b32.xlu0 %v1291, 60
      %v1295 = vpop.permute.xlu0 %1294
      %1296 = vrot.lane.b32.xlu0 %v1284, 60
      %v1297 = vpop.permute.xlu0 %1296
      %vm1298 = vcmask 490496
      %v1299 = vsel %vm1298, %v1293, %v1295
      %v1300 = vsel %vm1298, %v1295, %v1297
      %v1303 = vmul.f32 %v1287, %v1299
      %v1304 = vmul.f32 %v1287, %v1300
      %v1305 = vadd.f32 %v1281, %v1303
      %v1306 = vadd.f32 %v1282, %v1304
      %v1307 = vld [vmem:[%s448] sm:$0xff]
      %v1308 = vld [vmem:[%s448 + $0x8] sm:$0xf]
      %1309 = vset.pattern.permute.xlu0 39
      %1310 = vperm.xlu0 %1309, %v458
      %v1311 = vpop.permute.xlu0 %1310
      %v1315 = vcombine.high %v1307, %v1307
      %1316 = vrot.lane.b32.xlu0 %v1307, 44
      %v1317 = vpop.permute.xlu0 %1316
      %1318 = vrot.lane.b32.xlu0 %v1315, 44
      %v1319 = vpop.permute.xlu0 %1318
      %1320 = vrot.lane.b32.xlu0 %v1308, 44
      %v1321 = vpop.permute.xlu0 %1320
      %vm1322 = vcmask 359424
      %v1323 = vsel %vm1322, %v1317, %v1319
      %v1324 = vsel %vm1322, %v1319, %v1321
      %v1327 = vmul.f32 %v1311, %v1323
      %v1328 = vmul.f32 %v1311, %v1324
      %v1329 = vadd.f32 %v1305, %v1327
      %v1330 = vadd.f32 %v1306, %v1328
      %v1331 = vld [vmem:[%s448] sm:$0xff]
      %v1332 = vld [vmem:[%s448 + $0x8] sm:$0xf]
      %1333 = vset.pattern.permute.xlu0 46
      %1334 = vperm.xlu0 %1333, %v458
      %v1335 = vpop.permute.xlu0 %1334
      %v1339 = vcombine.high %v1331, %v1331
      %1340 = vrot.lane.b32.xlu0 %v1331, 28
      %v1341 = vpop.permute.xlu0 %1340
      %1342 = vrot.lane.b32.xlu0 %v1339, 28
      %v1343 = vpop.permute.xlu0 %1342
      %1344 = vrot.lane.b32.xlu0 %v1332, 28
      %v1345 = vpop.permute.xlu0 %1344
      %vm1346 = vcmask 228352
      %v1347 = vsel %vm1346, %v1341, %v1343
      %v1348 = vsel %vm1346, %v1343, %v1345
      %v1351 = vmul.f32 %v1335, %v1347
      %v1352 = vmul.f32 %v1335, %v1348
      %v1353 = vadd.f32 %v1329, %v1351
      %v1354 = vadd.f32 %v1330, %v1352
      %s1355 = scalar_lea.vmem %s2, 4
      %v1356 = vld [vmem:[%s1355] ss:$8 sm:$0x3]
      %v1358 = vlaneseq
      %v1359 = vshrl.u32 %v1358, 7
      %v1360 = vsub.s32 0, %v1359
      %v1361 = vrot.slane %v1356, %v1360
      %v1362 = vlaneseq
      %v1363 = vshrl.u32 %v1362, 7
      %v1364 = vsub.s32 1, %v1363
      %v1365 = vrot.slane %v1356, %v1364
      %v1368 = vmul.f32 %v1361, %v1353
      %v1369 = vmul.f32 %v1365, %v1354
      %v1370 = vadd.f32 %v1185, %v1368
      %v1371 = vadd.f32 %v1186, %v1369
      %v1372 = vld [vmem:[%s448] sm:$0xff]
      %v1373 = vld [vmem:[%s448 + $0x8] sm:$0xf]
      %1374 = vset.pattern.permute.xlu0 5
      %1375 = vperm.xlu0 %1374, %v458
      %v1376 = vpop.permute.xlu0 %1375
      %v1380 = vcombine.high %v1372, %v1372
      %1381 = vrot.lane.b32.xlu0 %v1372, 123
      %v1382 = vpop.permute.xlu0 %1381
      %1383 = vrot.lane.b32.xlu0 %v1380, 123
      %v1384 = vpop.permute.xlu0 %1383
      %1385 = vrot.lane.b32.xlu0 %v1373, 123
      %v1386 = vpop.permute.xlu0 %1385
      %vm1387 = vcmask 1006592
      %v1388 = vsel %vm1387, %v1382, %v1384
      %v1389 = vsel %vm1387, %v1384, %v1386
      %v1392 = vmul.f32 %v1376, %v1388
      %v1393 = vmul.f32 %v1376, %v1389
      %v1394 = vadd.f32 %v1392, 0.0
      %v1395 = vadd.f32 %v1393, 0.0
      %v1396 = vld [vmem:[%s448] sm:$0xff]
      %v1397 = vld [vmem:[%s448 + $0x8] sm:$0xf]
      %1398 = vset.pattern.permute.xlu0 12
      %1399 = vperm.xlu0 %1398, %v458
      %v1400 = vpop.permute.xlu0 %1399
      %v1404 = vcombine.high %v1396, %v1396
      %1405 = vrot.lane.b32.xlu0 %v1396, 107
      %v1406 = vpop.permute.xlu0 %1405
      %1407 = vrot.lane.b32.xlu0 %v1404, 107
      %v1408 = vpop.permute.xlu0 %1407
      %1409 = vrot.lane.b32.xlu0 %v1397, 107
      %v1410 = vpop.permute.xlu0 %1409
      %vm1411 = vcmask 875520
      %v1412 = vsel %vm1411, %v1406, %v1408
      %v1413 = vsel %vm1411, %v1408, %v1410
      %v1416 = vmul.f32 %v1400, %v1412
      %v1417 = vmul.f32 %v1400, %v1413
      %v1418 = vadd.f32 %v1394, %v1416
      %v1419 = vadd.f32 %v1395, %v1417
      %v1420 = vld [vmem:[%s448] sm:$0xff]
      %v1421 = vld [vmem:[%s448 + $0x8] sm:$0xf]
      %1422 = vset.pattern.permute.xlu0 19
      %1423 = vperm.xlu0 %1422, %v458
      %v1424 = vpop.permute.xlu0 %1423
      %v1428 = vcombine.high %v1420, %v1420
      %1429 = vrot.lane.b32.xlu0 %v1420, 91
      %v1430 = vpop.permute.xlu0 %1429
      %1431 = vrot.lane.b32.xlu0 %v1428, 91
      %v1432 = vpop.permute.xlu0 %1431
      %1433 = vrot.lane.b32.xlu0 %v1421, 91
      %v1434 = vpop.permute.xlu0 %1433
      %vm1435 = vcmask 744448
      %v1436 = vsel %vm1435, %v1430, %v1432
      %v1437 = vsel %vm1435, %v1432, %v1434
      %v1440 = vmul.f32 %v1424, %v1436
      %v1441 = vmul.f32 %v1424, %v1437
      %v1442 = vadd.f32 %v1418, %v1440
      %v1443 = vadd.f32 %v1419, %v1441
      %v1444 = vld [vmem:[%s448] sm:$0xff]
      %v1445 = vld [vmem:[%s448 + $0x8] sm:$0xf]
      %1446 = vset.pattern.permute.xlu0 26
      %1447 = vperm.xlu0 %1446, %v458
      %v1448 = vpop.permute.xlu0 %1447
      %v1452 = vcombine.high %v1444, %v1444
      %1453 = vrot.lane.b32.xlu0 %v1444, 75
      %v1454 = vpop.permute.xlu0 %1453
      %1455 = vrot.lane.b32.xlu0 %v1452, 75
      %v1456 = vpop.permute.xlu0 %1455
      %1457 = vrot.lane.b32.xlu0 %v1445, 75
      %v1458 = vpop.permute.xlu0 %1457
      %vm1459 = vcmask 613376
      %v1460 = vsel %vm1459, %v1454, %v1456
      %v1461 = vsel %vm1459, %v1456, %v1458
      %v1464 = vmul.f32 %v1448, %v1460
      %v1465 = vmul.f32 %v1448, %v1461
      %v1466 = vadd.f32 %v1442, %v1464
      %v1467 = vadd.f32 %v1443, %v1465
      %v1468 = vld [vmem:[%s448] sm:$0xff]
      %v1469 = vld [vmem:[%s448 + $0x8] sm:$0xf]
      %1470 = vset.pattern.permute.xlu0 33
      %1471 = vperm.xlu0 %1470, %v458
      %v1472 = vpop.permute.xlu0 %1471
      %v1476 = vcombine.high %v1468, %v1468
      %1477 = vrot.lane.b32.xlu0 %v1468, 59
      %v1478 = vpop.permute.xlu0 %1477
      %1479 = vrot.lane.b32.xlu0 %v1476, 59
      %v1480 = vpop.permute.xlu0 %1479
      %1481 = vrot.lane.b32.xlu0 %v1469, 59
      %v1482 = vpop.permute.xlu0 %1481
      %vm1483 = vcmask 482304
      %v1484 = vsel %vm1483, %v1478, %v1480
      %v1485 = vsel %vm1483, %v1480, %v1482
      %v1488 = vmul.f32 %v1472, %v1484
      %v1489 = vmul.f32 %v1472, %v1485
      %v1490 = vadd.f32 %v1466, %v1488
      %v1491 = vadd.f32 %v1467, %v1489
      %v1492 = vld [vmem:[%s448] sm:$0xff]
      %v1493 = vld [vmem:[%s448 + $0x8] sm:$0xf]
      %1494 = vset.pattern.permute.xlu0 40
      %1495 = vperm.xlu0 %1494, %v458
      %v1496 = vpop.permute.xlu0 %1495
      %v1500 = vcombine.high %v1492, %v1492
      %1501 = vrot.lane.b32.xlu0 %v1492, 43
      %v1502 = vpop.permute.xlu0 %1501
      %1503 = vrot.lane.b32.xlu0 %v1500, 43
      %v1504 = vpop.permute.xlu0 %1503
      %1505 = vrot.lane.b32.xlu0 %v1493, 43
      %v1506 = vpop.permute.xlu0 %1505
      %vm1507 = vcmask 351232
      %v1508 = vsel %vm1507, %v1502, %v1504
      %v1509 = vsel %vm1507, %v1504, %v1506
      %v1512 = vmul.f32 %v1496, %v1508
      %v1513 = vmul.f32 %v1496, %v1509
      %v1514 = vadd.f32 %v1490, %v1512
      %v1515 = vadd.f32 %v1491, %v1513
      %v1516 = vld [vmem:[%s448] sm:$0xff]
      %v1517 = vld [vmem:[%s448 + $0x8] sm:$0xf]
      %1518 = vset.pattern.permute.xlu0 47
      %1519 = vperm.xlu0 %1518, %v458
      %v1520 = vpop.permute.xlu0 %1519
      %v1524 = vcombine.high %v1516, %v1516
      %1525 = vrot.lane.b32.xlu0 %v1516, 27
      %v1526 = vpop.permute.xlu0 %1525
      %1527 = vrot.lane.b32.xlu0 %v1524, 27
      %v1528 = vpop.permute.xlu0 %1527
      %1529 = vrot.lane.b32.xlu0 %v1517, 27
      %v1530 = vpop.permute.xlu0 %1529
      %vm1531 = vcmask 220160
      %v1532 = vsel %vm1531, %v1526, %v1528
      %v1533 = vsel %vm1531, %v1528, %v1530
      %v1536 = vmul.f32 %v1520, %v1532
      %v1537 = vmul.f32 %v1520, %v1533
      %v1538 = vadd.f32 %v1514, %v1536
      %v1539 = vadd.f32 %v1515, %v1537
      %s1540 = scalar_lea.vmem %s2, 5
      %v1541 = vld [vmem:[%s1540] ss:$8 sm:$0x3]
      %v1543 = vlaneseq
      %v1544 = vshrl.u32 %v1543, 7
      %v1545 = vsub.s32 0, %v1544
      %v1546 = vrot.slane %v1541, %v1545
      %v1547 = vlaneseq
      %v1548 = vshrl.u32 %v1547, 7
      %v1549 = vsub.s32 1, %v1548
      %v1550 = vrot.slane %v1541, %v1549
      %v1553 = vmul.f32 %v1546, %v1538
      %v1554 = vmul.f32 %v1550, %v1539
      %v1555 = vadd.f32 %v1370, %v1553
      %v1556 = vadd.f32 %v1371, %v1554
      %v1557 = vld [vmem:[%s448] sm:$0xff]
      %v1558 = vld [vmem:[%s448 + $0x8] sm:$0xf]
      %1559 = vset.pattern.permute.xlu0 6
      %1560 = vperm.xlu0 %1559, %v458
      %v1561 = vpop.permute.xlu0 %1560
      %v1565 = vcombine.high %v1557, %v1557
      %1566 = vrot.lane.b32.xlu0 %v1557, 122
      %v1567 = vpop.permute.xlu0 %1566
      %1568 = vrot.lane.b32.xlu0 %v1565, 122
      %v1569 = vpop.permute.xlu0 %1568
      %1570 = vrot.lane.b32.xlu0 %v1558, 122
      %v1571 = vpop.permute.xlu0 %1570
      %vm1572 = vcmask 998400
      %v1573 = vsel %vm1572, %v1567, %v1569
      %v1574 = vsel %vm1572, %v1569, %v1571
      %v1577 = vmul.f32 %v1561, %v1573
      %v1578 = vmul.f32 %v1561, %v1574
      %v1579 = vadd.f32 %v1577, 0.0
      %v1580 = vadd.f32 %v1578, 0.0
      %v1581 = vld [vmem:[%s448] sm:$0xff]
      %v1582 = vld [vmem:[%s448 + $0x8] sm:$0xf]
      %1583 = vset.pattern.permute.xlu0 13
      %1584 = vperm.xlu0 %1583, %v458
      %v1585 = vpop.permute.xlu0 %1584
      %v1589 = vcombine.high %v1581, %v1581
      %1590 = vrot.lane.b32.xlu0 %v1581, 106
      %v1591 = vpop.permute.xlu0 %1590
      %1592 = vrot.lane.b32.xlu0 %v1589, 106
      %v1593 = vpop.permute.xlu0 %1592
      %1594 = vrot.lane.b32.xlu0 %v1582, 106
      %v1595 = vpop.permute.xlu0 %1594
      %vm1596 = vcmask 867328
      %v1597 = vsel %vm1596, %v1591, %v1593
      %v1598 = vsel %vm1596, %v1593, %v1595
      %v1601 = vmul.f32 %v1585, %v1597
      %v1602 = vmul.f32 %v1585, %v1598
      %v1603 = vadd.f32 %v1579, %v1601
      %v1604 = vadd.f32 %v1580, %v1602
      %v1605 = vld [vmem:[%s448] sm:$0xff]
      %v1606 = vld [vmem:[%s448 + $0x8] sm:$0xf]
      %1607 = vset.pattern.permute.xlu0 20
      %1608 = vperm.xlu0 %1607, %v458
      %v1609 = vpop.permute.xlu0 %1608
      %v1613 = vcombine.high %v1605, %v1605
      %1614 = vrot.lane.b32.xlu0 %v1605, 90
      %v1615 = vpop.permute.xlu0 %1614
      %1616 = vrot.lane.b32.xlu0 %v1613, 90
      %v1617 = vpop.permute.xlu0 %1616
      %1618 = vrot.lane.b32.xlu0 %v1606, 90
      %v1619 = vpop.permute.xlu0 %1618
      %vm1620 = vcmask 736256
      %v1621 = vsel %vm1620, %v1615, %v1617
      %v1622 = vsel %vm1620, %v1617, %v1619
      %v1625 = vmul.f32 %v1609, %v1621
      %v1626 = vmul.f32 %v1609, %v1622
      %v1627 = vadd.f32 %v1603, %v1625
      %v1628 = vadd.f32 %v1604, %v1626
      %v1629 = vld [vmem:[%s448] sm:$0xff]
      %v1630 = vld [vmem:[%s448 + $0x8] sm:$0xf]
      %1631 = vset.pattern.permute.xlu0 27
      %1632 = vperm.xlu0 %1631, %v458
      %v1633 = vpop.permute.xlu0 %1632
      %v1637 = vcombine.high %v1629, %v1629
      %1638 = vrot.lane.b32.xlu0 %v1629, 74
      %v1639 = vpop.permute.xlu0 %1638
      %1640 = vrot.lane.b32.xlu0 %v1637, 74
      %v1641 = vpop.permute.xlu0 %1640
      %1642 = vrot.lane.b32.xlu0 %v1630, 74
      %v1643 = vpop.permute.xlu0 %1642
      %vm1644 = vcmask 605184
      %v1645 = vsel %vm1644, %v1639, %v1641
      %v1646 = vsel %vm1644, %v1641, %v1643
      %v1649 = vmul.f32 %v1633, %v1645
      %v1650 = vmul.f32 %v1633, %v1646
      %v1651 = vadd.f32 %v1627, %v1649
      %v1652 = vadd.f32 %v1628, %v1650
      %v1653 = vld [vmem:[%s448] sm:$0xff]
      %v1654 = vld [vmem:[%s448 + $0x8] sm:$0xf]
      %1655 = vset.pattern.permute.xlu0 34
      %1656 = vperm.xlu0 %1655, %v458
      %v1657 = vpop.permute.xlu0 %1656
      %v1661 = vcombine.high %v1653, %v1653
      %1662 = vrot.lane.b32.xlu0 %v1653, 58
      %v1663 = vpop.permute.xlu0 %1662
      %1664 = vrot.lane.b32.xlu0 %v1661, 58
      %v1665 = vpop.permute.xlu0 %1664
      %1666 = vrot.lane.b32.xlu0 %v1654, 58
      %v1667 = vpop.permute.xlu0 %1666
      %vm1668 = vcmask 474112
      %v1669 = vsel %vm1668, %v1663, %v1665
      %v1670 = vsel %vm1668, %v1665, %v1667
      %v1673 = vmul.f32 %v1657, %v1669
      %v1674 = vmul.f32 %v1657, %v1670
      %v1675 = vadd.f32 %v1651, %v1673
      %v1676 = vadd.f32 %v1652, %v1674
      %v1677 = vld [vmem:[%s448] sm:$0xff]
      %v1678 = vld [vmem:[%s448 + $0x8] sm:$0xf]
      %1679 = vset.pattern.permute.xlu0 41
      %1680 = vperm.xlu0 %1679, %v458
      %v1681 = vpop.permute.xlu0 %1680
      %v1685 = vcombine.high %v1677, %v1677
      %1686 = vrot.lane.b32.xlu0 %v1677, 42
      %v1687 = vpop.permute.xlu0 %1686
      %1688 = vrot.lane.b32.xlu0 %v1685, 42
      %v1689 = vpop.permute.xlu0 %1688
      %1690 = vrot.lane.b32.xlu0 %v1678, 42
      %v1691 = vpop.permute.xlu0 %1690
      %vm1692 = vcmask 343040
      %v1693 = vsel %vm1692, %v1687, %v1689
      %v1694 = vsel %vm1692, %v1689, %v1691
      %v1697 = vmul.f32 %v1681, %v1693
      %v1698 = vmul.f32 %v1681, %v1694
      %v1699 = vadd.f32 %v1675, %v1697
      %v1700 = vadd.f32 %v1676, %v1698
      %v1701 = vld [vmem:[%s448] sm:$0xff]
      %v1702 = vld [vmem:[%s448 + $0x8] sm:$0xf]
      %1703 = vset.pattern.permute.xlu0 48
      %1704 = vperm.xlu0 %1703, %v458
      %v1705 = vpop.permute.xlu0 %1704
      %v1709 = vcombine.high %v1701, %v1701
      %1710 = vrot.lane.b32.xlu0 %v1701, 26
      %v1711 = vpop.permute.xlu0 %1710
      %1712 = vrot.lane.b32.xlu0 %v1709, 26
      %v1713 = vpop.permute.xlu0 %1712
      %1714 = vrot.lane.b32.xlu0 %v1702, 26
      %v1715 = vpop.permute.xlu0 %1714
      %vm1716 = vcmask 211968
      %v1717 = vsel %vm1716, %v1711, %v1713
      %v1718 = vsel %vm1716, %v1713, %v1715
      %v1721 = vmul.f32 %v1705, %v1717
      %v1722 = vmul.f32 %v1705, %v1718
      %v1723 = vadd.f32 %v1699, %v1721
      %v1724 = vadd.f32 %v1700, %v1722
      %s1725 = scalar_lea.vmem %s2, 6
      %v1726 = vld [vmem:[%s1725] ss:$8 sm:$0x3]
      %v1728 = vlaneseq
      %v1729 = vshrl.u32 %v1728, 7
      %v1730 = vsub.s32 0, %v1729
      %v1731 = vrot.slane %v1726, %v1730
      %v1732 = vlaneseq
      %v1733 = vshrl.u32 %v1732, 7
      %v1734 = vsub.s32 1, %v1733
      %v1735 = vrot.slane %v1726, %v1734
      %v1738 = vmul.f32 %v1731, %v1723
      %v1739 = vmul.f32 %v1735, %v1724
      %v1740 = vadd.f32 %v1555, %v1738
      %v1741 = vadd.f32 %v1556, %v1739
      %v1742 = vld [vmem:[%s5] sm:$0xf]
      %v1743 = vld [vmem:[%s452] sm:$0xf]
      %v1744 = vld [vmem:[%s6] sm:$0xf]
      %vm1745 = vcmask 31744
      %v1747 = vsel %vm1745, %v1744, 0
      %vm1749 = vcmask 1043456
      %v1751 = vsel %vm1749, %v1743, 0
      %1753 = vmatprep.subr.mxu0 0.0
      %v1754 = vand.u32 %v1751, 4294901760
      %1755 = vmatpush1.msra.mxu0 %v1754
      %1756 = vmatprep.subr.mxu0 0.0
      %1757 = vmatpush1.msra.mxu0 0.0
      %1758 = vmatprep.subr.mxu0 0.0
      %1759 = vmatpush1.msra.mxu0 0.0
      %1760 = vmatprep.subr.mxu0 0.0
      %1761 = vmatpush1.msra.mxu0 0.0
      %1762 = vmatprep.subr.mxu0 0.0
      %1763 = vmatpush1.msra.mxu0 0.0
      %1764 = vmatprep.subr.mxu0 0.0
      %1765 = vmatpush1.msra.mxu0 0.0
      %1766 = vmatprep.subr.mxu0 0.0
      %1767 = vmatpush1.msra.mxu0 0.0
      %1768 = vmatprep.subr.mxu0 0.0
      %1769 = vmatpush1.msra.mxu0 0.0
      %1770 = vmatprep.subr.mxu0 0.0
      %1771 = vmatpush1.msra.mxu0 0.0
      %1772 = vmatprep.subr.mxu0 0.0
      %1773 = vmatpush1.msra.mxu0 0.0
      %1774 = vmatprep.subr.mxu0 0.0
      %1775 = vmatpush1.msra.mxu0 0.0
      %1776 = vmatprep.subr.mxu0 0.0
      %1777 = vmatpush1.msra.mxu0 0.0
      %1778 = vmatprep.subr.mxu0 0.0
      %1779 = vmatpush1.msra.mxu0 0.0
      %1780 = vmatprep.subr.mxu0 0.0
      %1781 = vmatpush1.msra.mxu0 0.0
      %1782 = vmatprep.subr.mxu0 0.0
      %1783 = vmatpush1.msra.mxu0 0.0
      %1784 = vmatprep.subr.mxu0 0.0
      %1785 = vmatpush1.msra.mxu0 0.0
      %1786 = vmatprep.subr.mxu0 0.0
      %1787 = vmatpush1.msra.mxu0 0.0
      %1788 = vmatprep.subr.mxu0 0.0
      %1789 = vmatpush1.msra.mxu0 0.0
      %1790 = vmatprep.subr.mxu0 0.0
      %1791 = vmatpush1.msra.mxu0 0.0
      %1792 = vmatprep.subr.mxu0 0.0
      %1793 = vmatpush1.msra.mxu0 0.0
      %1794 = vmatprep.subr.mxu0 0.0
      %1795 = vmatpush1.msra.mxu0 0.0
      %1796 = vmatprep.subr.mxu0 0.0
      %1797 = vmatpush1.msra.mxu0 0.0
      %1798 = vmatprep.subr.mxu0 0.0
      %1799 = vmatpush1.msra.mxu0 0.0
      %1800 = vmatprep.subr.mxu0 0.0
      %1801 = vmatpush1.msra.mxu0 0.0
      %1802 = vmatprep.subr.mxu0 0.0
      %1803 = vmatpush1.msra.mxu0 0.0
      %1804 = vmatprep.subr.mxu0 0.0
      %1805 = vmatpush1.msra.mxu0 0.0
      %1806 = vmatprep.subr.mxu0 0.0
      %1807 = vmatpush1.msra.mxu0 0.0
      %1808 = vmatprep.subr.mxu0 0.0
      %1809 = vmatpush1.msra.mxu0 0.0
      %1810 = vmatprep.subr.mxu0 0.0
      %1811 = vmatpush1.msra.mxu0 0.0
      %1812 = vmatprep.subr.mxu0 0.0
      %1813 = vmatpush1.msra.mxu0 0.0
      %1814 = vmatprep.subr.mxu0 0.0
      %1815 = vmatpush1.msra.mxu0 0.0
      %1816 = vmatprep.subr.mxu0 0.0
      %1817 = vmatpush1.msra.mxu0 0.0
      %1818 = vmatprep.mubr.f32.mxu0 0.0
      %v1819 = vand.u32 %v1747, 4294901760
      %v1820 = vsub.f32 %v1747, %v1819
      %v1821 = vand.u32 %v1820, 4294901760
      %v1822 = vsub.f32 %v1820, %v1821
      %v1823 = vand.u32 %v1822, 4294901760
      %1824 = vmatmul.mubr.f32.gmra.mrb[0].mxu0 %v1823
      %v1825 = vpop.f32.mrb[0].mxu0
      %v1826 = vadd.f32 0.0, %v1825
      %v1827 = vpop.f32.mrb[0].mxu0
      %1828 = vdwg.mxu0
      %1829 = vmatprep.subr.mxu0 0.0
      %v1830 = vand.u32 %v1751, 4294901760
      %v1831 = vsub.f32 %v1751, %v1830
      %v1832 = vand.u32 %v1831, 4294901760
      %v1833 = vsub.f32 %v1831, %v1832
      %v1834 = vand.u32 %v1833, 4294901760
      %1835 = vmatpush1.msra.mxu0 %v1834
      %1836 = vmatprep.subr.mxu0 0.0
      %1837 = vmatpush1.msra.mxu0 0.0
      %1838 = vmatprep.subr.mxu0 0.0
      %1839 = vmatpush1.msra.mxu0 0.0
      %1840 = vmatprep.subr.mxu0 0.0
      %1841 = vmatpush1.msra.mxu0 0.0
      %1842 = vmatprep.subr.mxu0 0.0
      %1843 = vmatpush1.msra.mxu0 0.0
      %1844 = vmatprep.subr.mxu0 0.0
      %1845 = vmatpush1.msra.mxu0 0.0
      %1846 = vmatprep.subr.mxu0 0.0
      %1847 = vmatpush1.msra.mxu0 0.0
      %1848 = vmatprep.subr.mxu0 0.0
      %1849 = vmatpush1.msra.mxu0 0.0
      %1850 = vmatprep.subr.mxu0 0.0
      %1851 = vmatpush1.msra.mxu0 0.0
      %1852 = vmatprep.subr.mxu0 0.0
      %1853 = vmatpush1.msra.mxu0 0.0
      %1854 = vmatprep.subr.mxu0 0.0
      %1855 = vmatpush1.msra.mxu0 0.0
      %1856 = vmatprep.subr.mxu0 0.0
      %1857 = vmatpush1.msra.mxu0 0.0
      %1858 = vmatprep.subr.mxu0 0.0
      %1859 = vmatpush1.msra.mxu0 0.0
      %1860 = vmatprep.subr.mxu0 0.0
      %1861 = vmatpush1.msra.mxu0 0.0
      %1862 = vmatprep.subr.mxu0 0.0
      %1863 = vmatpush1.msra.mxu0 0.0
      %1864 = vmatprep.subr.mxu0 0.0
      %1865 = vmatpush1.msra.mxu0 0.0
      %1866 = vmatprep.subr.mxu0 0.0
      %1867 = vmatpush1.msra.mxu0 0.0
      %1868 = vmatprep.subr.mxu0 0.0
      %1869 = vmatpush1.msra.mxu0 0.0
      %1870 = vmatprep.subr.mxu0 0.0
      %1871 = vmatpush1.msra.mxu0 0.0
      %1872 = vmatprep.subr.mxu0 0.0
      %1873 = vmatpush1.msra.mxu0 0.0
      %1874 = vmatprep.subr.mxu0 0.0
      %1875 = vmatpush1.msra.mxu0 0.0
      %1876 = vmatprep.subr.mxu0 0.0
      %1877 = vmatpush1.msra.mxu0 0.0
      %1878 = vmatprep.subr.mxu0 0.0
      %1879 = vmatpush1.msra.mxu0 0.0
      %1880 = vmatprep.subr.mxu0 0.0
      %1881 = vmatpush1.msra.mxu0 0.0
      %1882 = vmatprep.subr.mxu0 0.0
      %1883 = vmatpush1.msra.mxu0 0.0
      %1884 = vmatprep.subr.mxu0 0.0
      %1885 = vmatpush1.msra.mxu0 0.0
      %1886 = vmatprep.subr.mxu0 0.0
      %1887 = vmatpush1.msra.mxu0 0.0
      %1888 = vmatprep.subr.mxu0 0.0
      %1889 = vmatpush1.msra.mxu0 0.0
      %1890 = vmatprep.subr.mxu0 0.0
      %1891 = vmatpush1.msra.mxu0 0.0
      %1892 = vmatprep.subr.mxu0 0.0
      %1893 = vmatpush1.msra.mxu0 0.0
      %1894 = vmatprep.subr.mxu0 0.0
      %1895 = vmatpush1.msra.mxu0 0.0
      %1896 = vmatprep.subr.mxu0 0.0
      %1897 = vmatpush1.msra.mxu0 0.0
      %1898 = vmatprep.mubr.f32.mxu0 0.0
      %v1899 = vand.u32 %v1747, 4294901760
      %1900 = vmatmul.mubr.f32.gmra.mrb[0].mxu0 %v1899
      %v1901 = vpop.f32.mrb[0].mxu0
      %v1902 = vadd.f32 %v1826, %v1901
      %v1903 = vpop.f32.mrb[0].mxu0
      %1904 = vdwg.mxu0
      %1905 = vmatprep.subr.mxu0 0.0
      %v1906 = vand.u32 %v1751, 4294901760
      %v1907 = vsub.f32 %v1751, %v1906
      %1908 = vmatpush1.msra.mxu0 %v1907
      %1909 = vmatprep.subr.mxu0 0.0
      %1910 = vmatpush1.msra.mxu0 0.0
      %1911 = vmatprep.subr.mxu0 0.0
      %1912 = vmatpush1.msra.mxu0 0.0
      %1913 = vmatprep.subr.mxu0 0.0
      %1914 = vmatpush1.msra.mxu0 0.0
      %1915 = vmatprep.subr.mxu0 0.0
      %1916 = vmatpush1.msra.mxu0 0.0
      %1917 = vmatprep.subr.mxu0 0.0
      %1918 = vmatpush1.msra.mxu0 0.0
      %1919 = vmatprep.subr.mxu0 0.0
      %1920 = vmatpush1.msra.mxu0 0.0
      %1921 = vmatprep.subr.mxu0 0.0
      %1922 = vmatpush1.msra.mxu0 0.0
      %1923 = vmatprep.subr.mxu0 0.0
      %1924 = vmatpush1.msra.mxu0 0.0
      %1925 = vmatprep.subr.mxu0 0.0
      %1926 = vmatpush1.msra.mxu0 0.0
      %1927 = vmatprep.subr.mxu0 0.0
      %1928 = vmatpush1.msra.mxu0 0.0
      %1929 = vmatprep.subr.mxu0 0.0
      %1930 = vmatpush1.msra.mxu0 0.0
      %1931 = vmatprep.subr.mxu0 0.0
      %1932 = vmatpush1.msra.mxu0 0.0
      %1933 = vmatprep.subr.mxu0 0.0
      %1934 = vmatpush1.msra.mxu0 0.0
      %1935 = vmatprep.subr.mxu0 0.0
      %1936 = vmatpush1.msra.mxu0 0.0
      %1937 = vmatprep.subr.mxu0 0.0
      %1938 = vmatpush1.msra.mxu0 0.0
      %1939 = vmatprep.subr.mxu0 0.0
      %1940 = vmatpush1.msra.mxu0 0.0
      %1941 = vmatprep.subr.mxu0 0.0
      %1942 = vmatpush1.msra.mxu0 0.0
      %1943 = vmatprep.subr.mxu0 0.0
      %1944 = vmatpush1.msra.mxu0 0.0
      %1945 = vmatprep.subr.mxu0 0.0
      %1946 = vmatpush1.msra.mxu0 0.0
      %1947 = vmatprep.subr.mxu0 0.0
      %1948 = vmatpush1.msra.mxu0 0.0
      %1949 = vmatprep.subr.mxu0 0.0
      %1950 = vmatpush1.msra.mxu0 0.0
      %1951 = vmatprep.subr.mxu0 0.0
      %1952 = vmatpush1.msra.mxu0 0.0
      %1953 = vmatprep.subr.mxu0 0.0
      %1954 = vmatpush1.msra.mxu0 0.0
      %1955 = vmatprep.subr.mxu0 0.0
      %1956 = vmatpush1.msra.mxu0 0.0
      %1957 = vmatprep.subr.mxu0 0.0
      %1958 = vmatpush1.msra.mxu0 0.0
      %1959 = vmatprep.subr.mxu0 0.0
      %1960 = vmatpush1.msra.mxu0 0.0
      %1961 = vmatprep.subr.mxu0 0.0
      %1962 = vmatpush1.msra.mxu0 0.0
      %1963 = vmatprep.subr.mxu0 0.0
      %1964 = vmatpush1.msra.mxu0 0.0
      %1965 = vmatprep.subr.mxu0 0.0
      %1966 = vmatpush1.msra.mxu0 0.0
      %1967 = vmatprep.subr.mxu0 0.0
      %1968 = vmatpush1.msra.mxu0 0.0
      %1969 = vmatprep.subr.mxu0 0.0
      %1970 = vmatpush1.msra.mxu0 0.0
      %1971 = vmatprep.mubr.f32.mxu0 0.0
      %v1972 = vand.u32 %v1747, 4294901760
      %v1973 = vsub.f32 %v1747, %v1972
      %1974 = vmatmul.mubr.f32.gmra.mrb[0].mxu0 %v1973
      %v1975 = vpop.f32.mrb[0].mxu0
      %v1976 = vadd.f32 %v1902, %v1975
      %v1977 = vpop.f32.mrb[0].mxu0
      %1978 = vdwg.mxu0
      %1979 = vmatprep.subr.mxu0 0.0
      %v1980 = vand.u32 %v1751, 4294901760
      %1981 = vmatpush1.msra.mxu0 %v1980
      %1982 = vmatprep.subr.mxu0 0.0
      %1983 = vmatpush1.msra.mxu0 0.0
      %1984 = vmatprep.subr.mxu0 0.0
      %1985 = vmatpush1.msra.mxu0 0.0
      %1986 = vmatprep.subr.mxu0 0.0
      %1987 = vmatpush1.msra.mxu0 0.0
      %1988 = vmatprep.subr.mxu0 0.0
      %1989 = vmatpush1.msra.mxu0 0.0
      %1990 = vmatprep.subr.mxu0 0.0
      %1991 = vmatpush1.msra.mxu0 0.0
      %1992 = vmatprep.subr.mxu0 0.0
      %1993 = vmatpush1.msra.mxu0 0.0
      %1994 = vmatprep.subr.mxu0 0.0
      %1995 = vmatpush1.msra.mxu0 0.0
      %1996 = vmatprep.subr.mxu0 0.0
      %1997 = vmatpush1.msra.mxu0 0.0
      %1998 = vmatprep.subr.mxu0 0.0
      %1999 = vmatpush1.msra.mxu0 0.0
      %2000 = vmatprep.subr.mxu0 0.0
      %2001 = vmatpush1.msra.mxu0 0.0
      %2002 = vmatprep.subr.mxu0 0.0
      %2003 = vmatpush1.msra.mxu0 0.0
      %2004 = vmatprep.subr.mxu0 0.0
      %2005 = vmatpush1.msra.mxu0 0.0
      %2006 = vmatprep.subr.mxu0 0.0
      %2007 = vmatpush1.msra.mxu0 0.0
      %2008 = vmatprep.subr.mxu0 0.0
      %2009 = vmatpush1.msra.mxu0 0.0
      %2010 = vmatprep.subr.mxu0 0.0
      %2011 = vmatpush1.msra.mxu0 0.0
      %2012 = vmatprep.subr.mxu0 0.0
      %2013 = vmatpush1.msra.mxu0 0.0
      %2014 = vmatprep.subr.mxu0 0.0
      %2015 = vmatpush1.msra.mxu0 0.0
      %2016 = vmatprep.subr.mxu0 0.0
      %2017 = vmatpush1.msra.mxu0 0.0
      %2018 = vmatprep.subr.mxu0 0.0
      %2019 = vmatpush1.msra.mxu0 0.0
      %2020 = vmatprep.subr.mxu0 0.0
      %2021 = vmatpush1.msra.mxu0 0.0
      %2022 = vmatprep.subr.mxu0 0.0
      %2023 = vmatpush1.msra.mxu0 0.0
      %2024 = vmatprep.subr.mxu0 0.0
      %2025 = vmatpush1.msra.mxu0 0.0
      %2026 = vmatprep.subr.mxu0 0.0
      %2027 = vmatpush1.msra.mxu0 0.0
      %2028 = vmatprep.subr.mxu0 0.0
      %2029 = vmatpush1.msra.mxu0 0.0
      %2030 = vmatprep.subr.mxu0 0.0
      %2031 = vmatpush1.msra.mxu0 0.0
      %2032 = vmatprep.subr.mxu0 0.0
      %2033 = vmatpush1.msra.mxu0 0.0
      %2034 = vmatprep.subr.mxu0 0.0
      %2035 = vmatpush1.msra.mxu0 0.0
      %2036 = vmatprep.subr.mxu0 0.0
      %2037 = vmatpush1.msra.mxu0 0.0
      %2038 = vmatprep.subr.mxu0 0.0
      %2039 = vmatpush1.msra.mxu0 0.0
      %2040 = vmatprep.subr.mxu0 0.0
      %2041 = vmatpush1.msra.mxu0 0.0
      %2042 = vmatprep.subr.mxu0 0.0
      %2043 = vmatpush1.msra.mxu0 0.0
      %2044 = vmatprep.mubr.f32.mxu0 0.0
      %v2045 = vand.u32 %v1747, 4294901760
      %v2046 = vsub.f32 %v1747, %v2045
      %v2047 = vand.u32 %v2046, 4294901760
      %2048 = vmatmul.mubr.f32.gmra.mrb[0].mxu0 %v2047
      %v2049 = vpop.f32.mrb[0].mxu0
      %v2050 = vadd.f32 %v1976, %v2049
      %v2051 = vpop.f32.mrb[0].mxu0
      %2052 = vdwg.mxu0
      %2053 = vmatprep.subr.mxu0 0.0
      %v2054 = vand.u32 %v1751, 4294901760
      %v2055 = vsub.f32 %v1751, %v2054
      %v2056 = vand.u32 %v2055, 4294901760
      %2057 = vmatpush1.msra.mxu0 %v2056
      %2058 = vmatprep.subr.mxu0 0.0
      %2059 = vmatpush1.msra.mxu0 0.0
      %2060 = vmatprep.subr.mxu0 0.0
      %2061 = vmatpush1.msra.mxu0 0.0
      %2062 = vmatprep.subr.mxu0 0.0
      %2063 = vmatpush1.msra.mxu0 0.0
      %2064 = vmatprep.subr.mxu0 0.0
      %2065 = vmatpush1.msra.mxu0 0.0
      %2066 = vmatprep.subr.mxu0 0.0
      %2067 = vmatpush1.msra.mxu0 0.0
      %2068 = vmatprep.subr.mxu0 0.0
      %2069 = vmatpush1.msra.mxu0 0.0
      %2070 = vmatprep.subr.mxu0 0.0
      %2071 = vmatpush1.msra.mxu0 0.0
      %2072 = vmatprep.subr.mxu0 0.0
      %2073 = vmatpush1.msra.mxu0 0.0
      %2074 = vmatprep.subr.mxu0 0.0
      %2075 = vmatpush1.msra.mxu0 0.0
      %2076 = vmatprep.subr.mxu0 0.0
      %2077 = vmatpush1.msra.mxu0 0.0
      %2078 = vmatprep.subr.mxu0 0.0
      %2079 = vmatpush1.msra.mxu0 0.0
      %2080 = vmatprep.subr.mxu0 0.0
      %2081 = vmatpush1.msra.mxu0 0.0
      %2082 = vmatprep.subr.mxu0 0.0
      %2083 = vmatpush1.msra.mxu0 0.0
      %2084 = vmatprep.subr.mxu0 0.0
      %2085 = vmatpush1.msra.mxu0 0.0
      %2086 = vmatprep.subr.mxu0 0.0
      %2087 = vmatpush1.msra.mxu0 0.0
      %2088 = vmatprep.subr.mxu0 0.0
      %2089 = vmatpush1.msra.mxu0 0.0
      %2090 = vmatprep.subr.mxu0 0.0
      %2091 = vmatpush1.msra.mxu0 0.0
      %2092 = vmatprep.subr.mxu0 0.0
      %2093 = vmatpush1.msra.mxu0 0.0
      %2094 = vmatprep.subr.mxu0 0.0
      %2095 = vmatpush1.msra.mxu0 0.0
      %2096 = vmatprep.subr.mxu0 0.0
      %2097 = vmatpush1.msra.mxu0 0.0
      %2098 = vmatprep.subr.mxu0 0.0
      %2099 = vmatpush1.msra.mxu0 0.0
      %2100 = vmatprep.subr.mxu0 0.0
      %2101 = vmatpush1.msra.mxu0 0.0
      %2102 = vmatprep.subr.mxu0 0.0
      %2103 = vmatpush1.msra.mxu0 0.0
      %2104 = vmatprep.subr.mxu0 0.0
      %2105 = vmatpush1.msra.mxu0 0.0
      %2106 = vmatprep.subr.mxu0 0.0
      %2107 = vmatpush1.msra.mxu0 0.0
      %2108 = vmatprep.subr.mxu0 0.0
      %2109 = vmatpush1.msra.mxu0 0.0
      %2110 = vmatprep.subr.mxu0 0.0
      %2111 = vmatpush1.msra.mxu0 0.0
      %2112 = vmatprep.subr.mxu0 0.0
      %2113 = vmatpush1.msra.mxu0 0.0
      %2114 = vmatprep.subr.mxu0 0.0
      %2115 = vmatpush1.msra.mxu0 0.0
      %2116 = vmatprep.subr.mxu0 0.0
      %2117 = vmatpush1.msra.mxu0 0.0
      %2118 = vmatprep.subr.mxu0 0.0
      %2119 = vmatpush1.msra.mxu0 0.0
      %2120 = vmatprep.mubr.f32.mxu0 0.0
      %v2121 = vand.u32 %v1747, 4294901760
      %2122 = vmatmul.mubr.f32.gmra.mrb[0].mxu0 %v2121
      %v2123 = vpop.f32.mrb[0].mxu0
      %v2124 = vadd.f32 %v2050, %v2123
      %v2125 = vpop.f32.mrb[0].mxu0
      %2126 = vdwg.mxu0
      %2127 = vmatprep.subr.mxu0 0.0
      %v2128 = vand.u32 %v1751, 4294901760
      %2129 = vmatpush1.msra.mxu0 %v2128
      %2130 = vmatprep.subr.mxu0 0.0
      %2131 = vmatpush1.msra.mxu0 0.0
      %2132 = vmatprep.subr.mxu0 0.0
      %2133 = vmatpush1.msra.mxu0 0.0
      %2134 = vmatprep.subr.mxu0 0.0
      %2135 = vmatpush1.msra.mxu0 0.0
      %2136 = vmatprep.subr.mxu0 0.0
      %2137 = vmatpush1.msra.mxu0 0.0
      %2138 = vmatprep.subr.mxu0 0.0
      %2139 = vmatpush1.msra.mxu0 0.0
      %2140 = vmatprep.subr.mxu0 0.0
      %2141 = vmatpush1.msra.mxu0 0.0
      %2142 = vmatprep.subr.mxu0 0.0
      %2143 = vmatpush1.msra.mxu0 0.0
      %2144 = vmatprep.subr.mxu0 0.0
      %2145 = vmatpush1.msra.mxu0 0.0
      %2146 = vmatprep.subr.mxu0 0.0
      %2147 = vmatpush1.msra.mxu0 0.0
      %2148 = vmatprep.subr.mxu0 0.0
      %2149 = vmatpush1.msra.mxu0 0.0
      %2150 = vmatprep.subr.mxu0 0.0
      %2151 = vmatpush1.msra.mxu0 0.0
      %2152 = vmatprep.subr.mxu0 0.0
      %2153 = vmatpush1.msra.mxu0 0.0
      %2154 = vmatprep.subr.mxu0 0.0
      %2155 = vmatpush1.msra.mxu0 0.0
      %2156 = vmatprep.subr.mxu0 0.0
      %2157 = vmatpush1.msra.mxu0 0.0
      %2158 = vmatprep.subr.mxu0 0.0
      %2159 = vmatpush1.msra.mxu0 0.0
      %2160 = vmatprep.subr.mxu0 0.0
      %2161 = vmatpush1.msra.mxu0 0.0
      %2162 = vmatprep.subr.mxu0 0.0
      %2163 = vmatpush1.msra.mxu0 0.0
      %2164 = vmatprep.subr.mxu0 0.0
      %2165 = vmatpush1.msra.mxu0 0.0
      %2166 = vmatprep.subr.mxu0 0.0
      %2167 = vmatpush1.msra.mxu0 0.0
      %2168 = vmatprep.subr.mxu0 0.0
      %2169 = vmatpush1.msra.mxu0 0.0
      %2170 = vmatprep.subr.mxu0 0.0
      %2171 = vmatpush1.msra.mxu0 0.0
      %2172 = vmatprep.subr.mxu0 0.0
      %2173 = vmatpush1.msra.mxu0 0.0
      %2174 = vmatprep.subr.mxu0 0.0
      %2175 = vmatpush1.msra.mxu0 0.0
      %2176 = vmatprep.subr.mxu0 0.0
      %2177 = vmatpush1.msra.mxu0 0.0
      %2178 = vmatprep.subr.mxu0 0.0
      %2179 = vmatpush1.msra.mxu0 0.0
      %2180 = vmatprep.subr.mxu0 0.0
      %2181 = vmatpush1.msra.mxu0 0.0
      %2182 = vmatprep.subr.mxu0 0.0
      %2183 = vmatpush1.msra.mxu0 0.0
      %2184 = vmatprep.subr.mxu0 0.0
      %2185 = vmatpush1.msra.mxu0 0.0
      %2186 = vmatprep.subr.mxu0 0.0
      %2187 = vmatpush1.msra.mxu0 0.0
      %2188 = vmatprep.subr.mxu0 0.0
      %2189 = vmatpush1.msra.mxu0 0.0
      %2190 = vmatprep.subr.mxu0 0.0
      %2191 = vmatpush1.msra.mxu0 0.0
      %2192 = vmatprep.mubr.f32.mxu0 0.0
      %v2193 = vand.u32 %v1747, 4294901760
      %2194 = vmatmul.mubr.f32.gmra.mrb[0].mxu0 %v2193
      %v2195 = vpop.f32.mrb[0].mxu0
      %v2196 = vadd.f32 %v2124, %v2195
      %v2197 = vpop.f32.mrb[0].mxu0
      %2198 = vdwg.mxu0
      %v2199 = vld [vmem:[%s7] sm:$0xf]
      %v2201 = vsel %vm1745, %v2199, 0
      %2203 = vmatprep.subr.mxu0 0.0
      %v2204 = vand.u32 %v1751, 4294901760
      %2205 = vmatpush1.msra.mxu0 %v2204
      %2206 = vmatprep.subr.mxu0 0.0
      %2207 = vmatpush1.msra.mxu0 0.0
      %2208 = vmatprep.subr.mxu0 0.0
      %2209 = vmatpush1.msra.mxu0 0.0
      %2210 = vmatprep.subr.mxu0 0.0
      %2211 = vmatpush1.msra.mxu0 0.0
      %2212 = vmatprep.subr.mxu0 0.0
      %2213 = vmatpush1.msra.mxu0 0.0
      %2214 = vmatprep.subr.mxu0 0.0
      %2215 = vmatpush1.msra.mxu0 0.0
      %2216 = vmatprep.subr.mxu0 0.0
      %2217 = vmatpush1.msra.mxu0 0.0
      %2218 = vmatprep.subr.mxu0 0.0
      %2219 = vmatpush1.msra.mxu0 0.0
      %2220 = vmatprep.subr.mxu0 0.0
      %2221 = vmatpush1.msra.mxu0 0.0
      %2222 = vmatprep.subr.mxu0 0.0
      %2223 = vmatpush1.msra.mxu0 0.0
      %2224 = vmatprep.subr.mxu0 0.0
      %2225 = vmatpush1.msra.mxu0 0.0
      %2226 = vmatprep.subr.mxu0 0.0
      %2227 = vmatpush1.msra.mxu0 0.0
      %2228 = vmatprep.subr.mxu0 0.0
      %2229 = vmatpush1.msra.mxu0 0.0
      %2230 = vmatprep.subr.mxu0 0.0
      %2231 = vmatpush1.msra.mxu0 0.0
      %2232 = vmatprep.subr.mxu0 0.0
      %2233 = vmatpush1.msra.mxu0 0.0
      %2234 = vmatprep.subr.mxu0 0.0
      %2235 = vmatpush1.msra.mxu0 0.0
      %2236 = vmatprep.subr.mxu0 0.0
      %2237 = vmatpush1.msra.mxu0 0.0
      %2238 = vmatprep.subr.mxu0 0.0
      %2239 = vmatpush1.msra.mxu0 0.0
      %2240 = vmatprep.subr.mxu0 0.0
      %2241 = vmatpush1.msra.mxu0 0.0
      %2242 = vmatprep.subr.mxu0 0.0
      %2243 = vmatpush1.msra.mxu0 0.0
      %2244 = vmatprep.subr.mxu0 0.0
      %2245 = vmatpush1.msra.mxu0 0.0
      %2246 = vmatprep.subr.mxu0 0.0
      %2247 = vmatpush1.msra.mxu0 0.0
      %2248 = vmatprep.subr.mxu0 0.0
      %2249 = vmatpush1.msra.mxu0 0.0
      %2250 = vmatprep.subr.mxu0 0.0
      %2251 = vmatpush1.msra.mxu0 0.0
      %2252 = vmatprep.subr.mxu0 0.0
      %2253 = vmatpush1.msra.mxu0 0.0
      %2254 = vmatprep.subr.mxu0 0.0
      %2255 = vmatpush1.msra.mxu0 0.0
      %2256 = vmatprep.subr.mxu0 0.0
      %2257 = vmatpush1.msra.mxu0 0.0
      %2258 = vmatprep.subr.mxu0 0.0
      %2259 = vmatpush1.msra.mxu0 0.0
      %2260 = vmatprep.subr.mxu0 0.0
      %2261 = vmatpush1.msra.mxu0 0.0
      %2262 = vmatprep.subr.mxu0 0.0
      %2263 = vmatpush1.msra.mxu0 0.0
      %2264 = vmatprep.subr.mxu0 0.0
      %2265 = vmatpush1.msra.mxu0 0.0
      %2266 = vmatprep.subr.mxu0 0.0
      %2267 = vmatpush1.msra.mxu0 0.0
      %2268 = vmatprep.mubr.f32.mxu0 0.0
      %v2269 = vand.u32 %v2201, 4294901760
      %v2270 = vsub.f32 %v2201, %v2269
      %v2271 = vand.u32 %v2270, 4294901760
      %v2272 = vsub.f32 %v2270, %v2271
      %v2273 = vand.u32 %v2272, 4294901760
      %2274 = vmatmul.mubr.f32.gmra.mrb[0].mxu0 %v2273
      %v2275 = vpop.f32.mrb[0].mxu0
      %v2276 = vadd.f32 0.0, %v2275
      %v2277 = vpop.f32.mrb[0].mxu0
      %2278 = vdwg.mxu0
      %2279 = vmatprep.subr.mxu0 0.0
      %v2280 = vand.u32 %v1751, 4294901760
      %v2281 = vsub.f32 %v1751, %v2280
      %v2282 = vand.u32 %v2281, 4294901760
      %v2283 = vsub.f32 %v2281, %v2282
      %v2284 = vand.u32 %v2283, 4294901760
      %2285 = vmatpush1.msra.mxu0 %v2284
      %2286 = vmatprep.subr.mxu0 0.0
      %2287 = vmatpush1.msra.mxu0 0.0
      %2288 = vmatprep.subr.mxu0 0.0
      %2289 = vmatpush1.msra.mxu0 0.0
      %2290 = vmatprep.subr.mxu0 0.0
      %2291 = vmatpush1.msra.mxu0 0.0
      %2292 = vmatprep.subr.mxu0 0.0
      %2293 = vmatpush1.msra.mxu0 0.0
      %2294 = vmatprep.subr.mxu0 0.0
      %2295 = vmatpush1.msra.mxu0 0.0
      %2296 = vmatprep.subr.mxu0 0.0
      %2297 = vmatpush1.msra.mxu0 0.0
      %2298 = vmatprep.subr.mxu0 0.0
      %2299 = vmatpush1.msra.mxu0 0.0
      %2300 = vmatprep.subr.mxu0 0.0
      %2301 = vmatpush1.msra.mxu0 0.0
      %2302 = vmatprep.subr.mxu0 0.0
      %2303 = vmatpush1.msra.mxu0 0.0
      %2304 = vmatprep.subr.mxu0 0.0
      %2305 = vmatpush1.msra.mxu0 0.0
      %2306 = vmatprep.subr.mxu0 0.0
      %2307 = vmatpush1.msra.mxu0 0.0
      %2308 = vmatprep.subr.mxu0 0.0
      %2309 = vmatpush1.msra.mxu0 0.0
      %2310 = vmatprep.subr.mxu0 0.0
      %2311 = vmatpush1.msra.mxu0 0.0
      %2312 = vmatprep.subr.mxu0 0.0
      %2313 = vmatpush1.msra.mxu0 0.0
      %2314 = vmatprep.subr.mxu0 0.0
      %2315 = vmatpush1.msra.mxu0 0.0
      %2316 = vmatprep.subr.mxu0 0.0
      %2317 = vmatpush1.msra.mxu0 0.0
      %2318 = vmatprep.subr.mxu0 0.0
      %2319 = vmatpush1.msra.mxu0 0.0
      %2320 = vmatprep.subr.mxu0 0.0
      %2321 = vmatpush1.msra.mxu0 0.0
      %2322 = vmatprep.subr.mxu0 0.0
      %2323 = vmatpush1.msra.mxu0 0.0
      %2324 = vmatprep.subr.mxu0 0.0
      %2325 = vmatpush1.msra.mxu0 0.0
      %2326 = vmatprep.subr.mxu0 0.0
      %2327 = vmatpush1.msra.mxu0 0.0
      %2328 = vmatprep.subr.mxu0 0.0
      %2329 = vmatpush1.msra.mxu0 0.0
      %2330 = vmatprep.subr.mxu0 0.0
      %2331 = vmatpush1.msra.mxu0 0.0
      %2332 = vmatprep.subr.mxu0 0.0
      %2333 = vmatpush1.msra.mxu0 0.0
      %2334 = vmatprep.subr.mxu0 0.0
      %2335 = vmatpush1.msra.mxu0 0.0
      %2336 = vmatprep.subr.mxu0 0.0
      %2337 = vmatpush1.msra.mxu0 0.0
      %2338 = vmatprep.subr.mxu0 0.0
      %2339 = vmatpush1.msra.mxu0 0.0
      %2340 = vmatprep.subr.mxu0 0.0
      %2341 = vmatpush1.msra.mxu0 0.0
      %2342 = vmatprep.subr.mxu0 0.0
      %2343 = vmatpush1.msra.mxu0 0.0
      %2344 = vmatprep.subr.mxu0 0.0
      %2345 = vmatpush1.msra.mxu0 0.0
      %2346 = vmatprep.subr.mxu0 0.0
      %2347 = vmatpush1.msra.mxu0 0.0
      %2348 = vmatprep.mubr.f32.mxu0 0.0
      %v2349 = vand.u32 %v2201, 4294901760
      %2350 = vmatmul.mubr.f32.gmra.mrb[0].mxu0 %v2349
      %v2351 = vpop.f32.mrb[0].mxu0
      %v2352 = vadd.f32 %v2276, %v2351
      %v2353 = vpop.f32.mrb[0].mxu0
      %2354 = vdwg.mxu0
      %2355 = vmatprep.subr.mxu0 0.0
      %v2356 = vand.u32 %v1751, 4294901760
      %v2357 = vsub.f32 %v1751, %v2356
      %2358 = vmatpush1.msra.mxu0 %v2357
      %2359 = vmatprep.subr.mxu0 0.0
      %2360 = vmatpush1.msra.mxu0 0.0
      %2361 = vmatprep.subr.mxu0 0.0
      %2362 = vmatpush1.msra.mxu0 0.0
      %2363 = vmatprep.subr.mxu0 0.0
      %2364 = vmatpush1.msra.mxu0 0.0
      %2365 = vmatprep.subr.mxu0 0.0
      %2366 = vmatpush1.msra.mxu0 0.0
      %2367 = vmatprep.subr.mxu0 0.0
      %2368 = vmatpush1.msra.mxu0 0.0
      %2369 = vmatprep.subr.mxu0 0.0
      %2370 = vmatpush1.msra.mxu0 0.0
      %2371 = vmatprep.subr.mxu0 0.0
      %2372 = vmatpush1.msra.mxu0 0.0
      %2373 = vmatprep.subr.mxu0 0.0
      %2374 = vmatpush1.msra.mxu0 0.0
      %2375 = vmatprep.subr.mxu0 0.0
      %2376 = vmatpush1.msra.mxu0 0.0
      %2377 = vmatprep.subr.mxu0 0.0
      %2378 = vmatpush1.msra.mxu0 0.0
      %2379 = vmatprep.subr.mxu0 0.0
      %2380 = vmatpush1.msra.mxu0 0.0
      %2381 = vmatprep.subr.mxu0 0.0
      %2382 = vmatpush1.msra.mxu0 0.0
      %2383 = vmatprep.subr.mxu0 0.0
      %2384 = vmatpush1.msra.mxu0 0.0
      %2385 = vmatprep.subr.mxu0 0.0
      %2386 = vmatpush1.msra.mxu0 0.0
      %2387 = vmatprep.subr.mxu0 0.0
      %2388 = vmatpush1.msra.mxu0 0.0
      %2389 = vmatprep.subr.mxu0 0.0
      %2390 = vmatpush1.msra.mxu0 0.0
      %2391 = vmatprep.subr.mxu0 0.0
      %2392 = vmatpush1.msra.mxu0 0.0
      %2393 = vmatprep.subr.mxu0 0.0
      %2394 = vmatpush1.msra.mxu0 0.0
      %2395 = vmatprep.subr.mxu0 0.0
      %2396 = vmatpush1.msra.mxu0 0.0
      %2397 = vmatprep.subr.mxu0 0.0
      %2398 = vmatpush1.msra.mxu0 0.0
      %2399 = vmatprep.subr.mxu0 0.0
      %2400 = vmatpush1.msra.mxu0 0.0
      %2401 = vmatprep.subr.mxu0 0.0
      %2402 = vmatpush1.msra.mxu0 0.0
      %2403 = vmatprep.subr.mxu0 0.0
      %2404 = vmatpush1.msra.mxu0 0.0
      %2405 = vmatprep.subr.mxu0 0.0
      %2406 = vmatpush1.msra.mxu0 0.0
      %2407 = vmatprep.subr.mxu0 0.0
      %2408 = vmatpush1.msra.mxu0 0.0
      %2409 = vmatprep.subr.mxu0 0.0
      %2410 = vmatpush1.msra.mxu0 0.0
      %2411 = vmatprep.subr.mxu0 0.0
      %2412 = vmatpush1.msra.mxu0 0.0
      %2413 = vmatprep.subr.mxu0 0.0
      %2414 = vmatpush1.msra.mxu0 0.0
      %2415 = vmatprep.subr.mxu0 0.0
      %2416 = vmatpush1.msra.mxu0 0.0
      %2417 = vmatprep.subr.mxu0 0.0
      %2418 = vmatpush1.msra.mxu0 0.0
      %2419 = vmatprep.subr.mxu0 0.0
      %2420 = vmatpush1.msra.mxu0 0.0
      %2421 = vmatprep.mubr.f32.mxu0 0.0
      %v2422 = vand.u32 %v2201, 4294901760
      %v2423 = vsub.f32 %v2201, %v2422
      %2424 = vmatmul.mubr.f32.gmra.mrb[0].mxu0 %v2423
      %v2425 = vpop.f32.mrb[0].mxu0
      %v2426 = vadd.f32 %v2352, %v2425
      %v2427 = vpop.f32.mrb[0].mxu0
      %2428 = vdwg.mxu0
      %2429 = vmatprep.subr.mxu0 0.0
      %v2430 = vand.u32 %v1751, 4294901760
      %2431 = vmatpush1.msra.mxu0 %v2430
      %2432 = vmatprep.subr.mxu0 0.0
      %2433 = vmatpush1.msra.mxu0 0.0
      %2434 = vmatprep.subr.mxu0 0.0
      %2435 = vmatpush1.msra.mxu0 0.0
      %2436 = vmatprep.subr.mxu0 0.0
      %2437 = vmatpush1.msra.mxu0 0.0
      %2438 = vmatprep.subr.mxu0 0.0
      %2439 = vmatpush1.msra.mxu0 0.0
      %2440 = vmatprep.subr.mxu0 0.0
      %2441 = vmatpush1.msra.mxu0 0.0
      %2442 = vmatprep.subr.mxu0 0.0
      %2443 = vmatpush1.msra.mxu0 0.0
      %2444 = vmatprep.subr.mxu0 0.0
      %2445 = vmatpush1.msra.mxu0 0.0
      %2446 = vmatprep.subr.mxu0 0.0
      %2447 = vmatpush1.msra.mxu0 0.0
      %2448 = vmatprep.subr.mxu0 0.0
      %2449 = vmatpush1.msra.mxu0 0.0
      %2450 = vmatprep.subr.mxu0 0.0
      %2451 = vmatpush1.msra.mxu0 0.0
      %2452 = vmatprep.subr.mxu0 0.0
      %2453 = vmatpush1.msra.mxu0 0.0
      %2454 = vmatprep.subr.mxu0 0.0
      %2455 = vmatpush1.msra.mxu0 0.0
      %2456 = vmatprep.subr.mxu0 0.0
      %2457 = vmatpush1.msra.mxu0 0.0
      %2458 = vmatprep.subr.mxu0 0.0
      %2459 = vmatpush1.msra.mxu0 0.0
      %2460 = vmatprep.subr.mxu0 0.0
      %2461 = vmatpush1.msra.mxu0 0.0
      %2462 = vmatprep.subr.mxu0 0.0
      %2463 = vmatpush1.msra.mxu0 0.0
      %2464 = vmatprep.subr.mxu0 0.0
      %2465 = vmatpush1.msra.mxu0 0.0
      %2466 = vmatprep.subr.mxu0 0.0
      %2467 = vmatpush1.msra.mxu0 0.0
      %2468 = vmatprep.subr.mxu0 0.0
      %2469 = vmatpush1.msra.mxu0 0.0
      %2470 = vmatprep.subr.mxu0 0.0
      %2471 = vmatpush1.msra.mxu0 0.0
      %2472 = vmatprep.subr.mxu0 0.0
      %2473 = vmatpush1.msra.mxu0 0.0
      %2474 = vmatprep.subr.mxu0 0.0
      %2475 = vmatpush1.msra.mxu0 0.0
      %2476 = vmatprep.subr.mxu0 0.0
      %2477 = vmatpush1.msra.mxu0 0.0
      %2478 = vmatprep.subr.mxu0 0.0
      %2479 = vmatpush1.msra.mxu0 0.0
      %2480 = vmatprep.subr.mxu0 0.0
      %2481 = vmatpush1.msra.mxu0 0.0
      %2482 = vmatprep.subr.mxu0 0.0
      %2483 = vmatpush1.msra.mxu0 0.0
      %2484 = vmatprep.subr.mxu0 0.0
      %2485 = vmatpush1.msra.mxu0 0.0
      %2486 = vmatprep.subr.mxu0 0.0
      %2487 = vmatpush1.msra.mxu0 0.0
      %2488 = vmatprep.subr.mxu0 0.0
      %2489 = vmatpush1.msra.mxu0 0.0
      %2490 = vmatprep.subr.mxu0 0.0
      %2491 = vmatpush1.msra.mxu0 0.0
      %2492 = vmatprep.subr.mxu0 0.0
      %2493 = vmatpush1.msra.mxu0 0.0
      %2494 = vmatprep.mubr.f32.mxu0 0.0
      %v2495 = vand.u32 %v2201, 4294901760
      %v2496 = vsub.f32 %v2201, %v2495
      %v2497 = vand.u32 %v2496, 4294901760
      %2498 = vmatmul.mubr.f32.gmra.mrb[0].mxu0 %v2497
      %v2499 = vpop.f32.mrb[0].mxu0
      %v2500 = vadd.f32 %v2426, %v2499
      %v2501 = vpop.f32.mrb[0].mxu0
      %2502 = vdwg.mxu0
      %2503 = vmatprep.subr.mxu0 0.0
      %v2504 = vand.u32 %v1751, 4294901760
      %v2505 = vsub.f32 %v1751, %v2504
      %v2506 = vand.u32 %v2505, 4294901760
      %2507 = vmatpush1.msra.mxu0 %v2506
      %2508 = vmatprep.subr.mxu0 0.0
      %2509 = vmatpush1.msra.mxu0 0.0
      %2510 = vmatprep.subr.mxu0 0.0
      %2511 = vmatpush1.msra.mxu0 0.0
      %2512 = vmatprep.subr.mxu0 0.0
      %2513 = vmatpush1.msra.mxu0 0.0
      %2514 = vmatprep.subr.mxu0 0.0
      %2515 = vmatpush1.msra.mxu0 0.0
      %2516 = vmatprep.subr.mxu0 0.0
      %2517 = vmatpush1.msra.mxu0 0.0
      %2518 = vmatprep.subr.mxu0 0.0
      %2519 = vmatpush1.msra.mxu0 0.0
      %2520 = vmatprep.subr.mxu0 0.0
      %2521 = vmatpush1.msra.mxu0 0.0
      %2522 = vmatprep.subr.mxu0 0.0
      %2523 = vmatpush1.msra.mxu0 0.0
      %2524 = vmatprep.subr.mxu0 0.0
      %2525 = vmatpush1.msra.mxu0 0.0
      %2526 = vmatprep.subr.mxu0 0.0
      %2527 = vmatpush1.msra.mxu0 0.0
      %2528 = vmatprep.subr.mxu0 0.0
      %2529 = vmatpush1.msra.mxu0 0.0
      %2530 = vmatprep.subr.mxu0 0.0
      %2531 = vmatpush1.msra.mxu0 0.0
      %2532 = vmatprep.subr.mxu0 0.0
      %2533 = vmatpush1.msra.mxu0 0.0
      %2534 = vmatprep.subr.mxu0 0.0
      %2535 = vmatpush1.msra.mxu0 0.0
      %2536 = vmatprep.subr.mxu0 0.0
      %2537 = vmatpush1.msra.mxu0 0.0
      %2538 = vmatprep.subr.mxu0 0.0
      %2539 = vmatpush1.msra.mxu0 0.0
      %2540 = vmatprep.subr.mxu0 0.0
      %2541 = vmatpush1.msra.mxu0 0.0
      %2542 = vmatprep.subr.mxu0 0.0
      %2543 = vmatpush1.msra.mxu0 0.0
      %2544 = vmatprep.subr.mxu0 0.0
      %2545 = vmatpush1.msra.mxu0 0.0
      %2546 = vmatprep.subr.mxu0 0.0
      %2547 = vmatpush1.msra.mxu0 0.0
      %2548 = vmatprep.subr.mxu0 0.0
      %2549 = vmatpush1.msra.mxu0 0.0
      %2550 = vmatprep.subr.mxu0 0.0
      %2551 = vmatpush1.msra.mxu0 0.0
      %2552 = vmatprep.subr.mxu0 0.0
      %2553 = vmatpush1.msra.mxu0 0.0
      %2554 = vmatprep.subr.mxu0 0.0
      %2555 = vmatpush1.msra.mxu0 0.0
      %2556 = vmatprep.subr.mxu0 0.0
      %2557 = vmatpush1.msra.mxu0 0.0
      %2558 = vmatprep.subr.mxu0 0.0
      %2559 = vmatpush1.msra.mxu0 0.0
      %2560 = vmatprep.subr.mxu0 0.0
      %2561 = vmatpush1.msra.mxu0 0.0
      %2562 = vmatprep.subr.mxu0 0.0
      %2563 = vmatpush1.msra.mxu0 0.0
      %2564 = vmatprep.subr.mxu0 0.0
      %2565 = vmatpush1.msra.mxu0 0.0
      %2566 = vmatprep.subr.mxu0 0.0
      %2567 = vmatpush1.msra.mxu0 0.0
      %2568 = vmatprep.subr.mxu0 0.0
      %2569 = vmatpush1.msra.mxu0 0.0
      %2570 = vmatprep.mubr.f32.mxu0 0.0
      %v2571 = vand.u32 %v2201, 4294901760
      %2572 = vmatmul.mubr.f32.gmra.mrb[0].mxu0 %v2571
      %v2573 = vpop.f32.mrb[0].mxu0
      %v2574 = vadd.f32 %v2500, %v2573
      %v2575 = vpop.f32.mrb[0].mxu0
      %2576 = vdwg.mxu0
      %2577 = vmatprep.subr.mxu0 0.0
      %v2578 = vand.u32 %v1751, 4294901760
      %2579 = vmatpush1.msra.mxu0 %v2578
      %2580 = vmatprep.subr.mxu0 0.0
      %2581 = vmatpush1.msra.mxu0 0.0
      %2582 = vmatprep.subr.mxu0 0.0
      %2583 = vmatpush1.msra.mxu0 0.0
      %2584 = vmatprep.subr.mxu0 0.0
      %2585 = vmatpush1.msra.mxu0 0.0
      %2586 = vmatprep.subr.mxu0 0.0
      %2587 = vmatpush1.msra.mxu0 0.0
      %2588 = vmatprep.subr.mxu0 0.0
      %2589 = vmatpush1.msra.mxu0 0.0
      %2590 = vmatprep.subr.mxu0 0.0
      %2591 = vmatpush1.msra.mxu0 0.0
      %2592 = vmatprep.subr.mxu0 0.0
      %2593 = vmatpush1.msra.mxu0 0.0
      %2594 = vmatprep.subr.mxu0 0.0
      %2595 = vmatpush1.msra.mxu0 0.0
      %2596 = vmatprep.subr.mxu0 0.0
      %2597 = vmatpush1.msra.mxu0 0.0
      %2598 = vmatprep.subr.mxu0 0.0
      %2599 = vmatpush1.msra.mxu0 0.0
      %2600 = vmatprep.subr.mxu0 0.0
      %2601 = vmatpush1.msra.mxu0 0.0
      %2602 = vmatprep.subr.mxu0 0.0
      %2603 = vmatpush1.msra.mxu0 0.0
      %2604 = vmatprep.subr.mxu0 0.0
      %2605 = vmatpush1.msra.mxu0 0.0
      %2606 = vmatprep.subr.mxu0 0.0
      %2607 = vmatpush1.msra.mxu0 0.0
      %2608 = vmatprep.subr.mxu0 0.0
      %2609 = vmatpush1.msra.mxu0 0.0
      %2610 = vmatprep.subr.mxu0 0.0
      %2611 = vmatpush1.msra.mxu0 0.0
      %2612 = vmatprep.subr.mxu0 0.0
      %2613 = vmatpush1.msra.mxu0 0.0
      %2614 = vmatprep.subr.mxu0 0.0
      %2615 = vmatpush1.msra.mxu0 0.0
      %2616 = vmatprep.subr.mxu0 0.0
      %2617 = vmatpush1.msra.mxu0 0.0
      %2618 = vmatprep.subr.mxu0 0.0
      %2619 = vmatpush1.msra.mxu0 0.0
      %2620 = vmatprep.subr.mxu0 0.0
      %2621 = vmatpush1.msra.mxu0 0.0
      %2622 = vmatprep.subr.mxu0 0.0
      %2623 = vmatpush1.msra.mxu0 0.0
      %2624 = vmatprep.subr.mxu0 0.0
      %2625 = vmatpush1.msra.mxu0 0.0
      %2626 = vmatprep.subr.mxu0 0.0
      %2627 = vmatpush1.msra.mxu0 0.0
      %2628 = vmatprep.subr.mxu0 0.0
      %2629 = vmatpush1.msra.mxu0 0.0
      %2630 = vmatprep.subr.mxu0 0.0
      %2631 = vmatpush1.msra.mxu0 0.0
      %2632 = vmatprep.subr.mxu0 0.0
      %2633 = vmatpush1.msra.mxu0 0.0
      %2634 = vmatprep.subr.mxu0 0.0
      %2635 = vmatpush1.msra.mxu0 0.0
      %2636 = vmatprep.subr.mxu0 0.0
      %2637 = vmatpush1.msra.mxu0 0.0
      %2638 = vmatprep.subr.mxu0 0.0
      %2639 = vmatpush1.msra.mxu0 0.0
      %2640 = vmatprep.subr.mxu0 0.0
      %2641 = vmatpush1.msra.mxu0 0.0
      %2642 = vmatprep.mubr.f32.mxu0 0.0
      %v2643 = vand.u32 %v2201, 4294901760
      %2644 = vmatmul.mubr.f32.gmra.mrb[0].mxu0 %v2643
      %v2645 = vpop.f32.mrb[0].mxu0
      %v2646 = vadd.f32 %v2574, %v2645
      %v2647 = vpop.f32.mrb[0].mxu0
      %2648 = vdwg.mxu0
      %v2650 = vsel %vm559, %v2196, 0
      %v2653 = vsel %vm559, %v2646, 0
      %2655 = vmatprep.subr.mxu0 0.0
      %v2656 = vand.u32 %v2653, 4294901760
      %2657 = vmatpush1.xpose.msra.mxu0 %v2656
      %2658 = vmatprep.subr.mxu0 0.0
      %2659 = vmatpush1.xpose.msra.mxu0 0.0
      %2660 = vmatprep.subr.mxu0 0.0
      %2661 = vmatpush1.xpose.msra.mxu0 0.0
      %2662 = vmatprep.subr.mxu0 0.0
      %2663 = vmatpush1.xpose.msra.mxu0 0.0
      %2664 = vmatprep.subr.mxu0 0.0
      %2665 = vmatpush1.xpose.msra.mxu0 0.0
      %2666 = vmatprep.subr.mxu0 0.0
      %2667 = vmatpush1.xpose.msra.mxu0 0.0
      %2668 = vmatprep.subr.mxu0 0.0
      %2669 = vmatpush1.xpose.msra.mxu0 0.0
      %2670 = vmatprep.subr.mxu0 0.0
      %2671 = vmatpush1.xpose.msra.mxu0 0.0
      %2672 = vmatprep.subr.mxu0 0.0
      %2673 = vmatpush1.xpose.msra.mxu0 0.0
      %2674 = vmatprep.subr.mxu0 0.0
      %2675 = vmatpush1.xpose.msra.mxu0 0.0
      %2676 = vmatprep.subr.mxu0 0.0
      %2677 = vmatpush1.xpose.msra.mxu0 0.0
      %2678 = vmatprep.subr.mxu0 0.0
      %2679 = vmatpush1.xpose.msra.mxu0 0.0
      %2680 = vmatprep.subr.mxu0 0.0
      %2681 = vmatpush1.xpose.msra.mxu0 0.0
      %2682 = vmatprep.subr.mxu0 0.0
      %2683 = vmatpush1.xpose.msra.mxu0 0.0
      %2684 = vmatprep.subr.mxu0 0.0
      %2685 = vmatpush1.xpose.msra.mxu0 0.0
      %2686 = vmatprep.subr.mxu0 0.0
      %2687 = vmatpush1.xpose.msra.mxu0 0.0
      %2688 = vmatprep.subr.mxu0 0.0
      %2689 = vmatpush1.xpose.msra.mxu0 0.0
      %2690 = vmatprep.subr.mxu0 0.0
      %2691 = vmatpush1.xpose.msra.mxu0 0.0
      %2692 = vmatprep.subr.mxu0 0.0
      %2693 = vmatpush1.xpose.msra.mxu0 0.0
      %2694 = vmatprep.subr.mxu0 0.0
      %2695 = vmatpush1.xpose.msra.mxu0 0.0
      %2696 = vmatprep.subr.mxu0 0.0
      %2697 = vmatpush1.xpose.msra.mxu0 0.0
      %2698 = vmatprep.subr.mxu0 0.0
      %2699 = vmatpush1.xpose.msra.mxu0 0.0
      %2700 = vmatprep.subr.mxu0 0.0
      %2701 = vmatpush1.xpose.msra.mxu0 0.0
      %2702 = vmatprep.subr.mxu0 0.0
      %2703 = vmatpush1.xpose.msra.mxu0 0.0
      %2704 = vmatprep.subr.mxu0 0.0
      %2705 = vmatpush1.xpose.msra.mxu0 0.0
      %2706 = vmatprep.subr.mxu0 0.0
      %2707 = vmatpush1.xpose.msra.mxu0 0.0
      %2708 = vmatprep.subr.mxu0 0.0
      %2709 = vmatpush1.xpose.msra.mxu0 0.0
      %2710 = vmatprep.subr.mxu0 0.0
      %2711 = vmatpush1.xpose.msra.mxu0 0.0
      %2712 = vmatprep.subr.mxu0 0.0
      %2713 = vmatpush1.xpose.msra.mxu0 0.0
      %2714 = vmatprep.subr.mxu0 0.0
      %2715 = vmatpush1.xpose.msra.mxu0 0.0
      %2716 = vmatprep.subr.mxu0 0.0
      %2717 = vmatpush1.xpose.msra.mxu0 0.0
      %2718 = vmatprep.subr.mxu0 0.0
      %2719 = vmatpush1.xpose.msra.mxu0 0.0
      %2720 = vmatprep.mubr.f32.mxu0 0.0
      %v2721 = vand.u32 %v2650, 4294901760
      %v2722 = vsub.f32 %v2650, %v2721
      %v2723 = vand.u32 %v2722, 4294901760
      %v2724 = vsub.f32 %v2722, %v2723
      %v2725 = vand.u32 %v2724, 4294901760
      %2726 = vmatmul.mubr.f32.gmra.mrb[0].mxu0 %v2725
      %v2727 = vpop.f32.mrb[0].mxu0
      %v2728 = vadd.f32 0.0, %v2727
      %v2729 = vpop.f32.mrb[0].mxu0
      %2730 = vdwg.mxu0
      %2731 = vmatprep.subr.mxu0 0.0
      %v2732 = vand.u32 %v2653, 4294901760
      %v2733 = vsub.f32 %v2653, %v2732
      %v2734 = vand.u32 %v2733, 4294901760
      %v2735 = vsub.f32 %v2733, %v2734
      %v2736 = vand.u32 %v2735, 4294901760
      %2737 = vmatpush1.xpose.msra.mxu0 %v2736
      %2738 = vmatprep.subr.mxu0 0.0
      %2739 = vmatpush1.xpose.msra.mxu0 0.0
      %2740 = vmatprep.subr.mxu0 0.0
      %2741 = vmatpush1.xpose.msra.mxu0 0.0
      %2742 = vmatprep.subr.mxu0 0.0
      %2743 = vmatpush1.xpose.msra.mxu0 0.0
      %2744 = vmatprep.subr.mxu0 0.0
      %2745 = vmatpush1.xpose.msra.mxu0 0.0
      %2746 = vmatprep.subr.mxu0 0.0
      %2747 = vmatpush1.xpose.msra.mxu0 0.0
      %2748 = vmatprep.subr.mxu0 0.0
      %2749 = vmatpush1.xpose.msra.mxu0 0.0
      %2750 = vmatprep.subr.mxu0 0.0
      %2751 = vmatpush1.xpose.msra.mxu0 0.0
      %2752 = vmatprep.subr.mxu0 0.0
      %2753 = vmatpush1.xpose.msra.mxu0 0.0
      %2754 = vmatprep.subr.mxu0 0.0
      %2755 = vmatpush1.xpose.msra.mxu0 0.0
      %2756 = vmatprep.subr.mxu0 0.0
      %2757 = vmatpush1.xpose.msra.mxu0 0.0
      %2758 = vmatprep.subr.mxu0 0.0
      %2759 = vmatpush1.xpose.msra.mxu0 0.0
      %2760 = vmatprep.subr.mxu0 0.0
      %2761 = vmatpush1.xpose.msra.mxu0 0.0
      %2762 = vmatprep.subr.mxu0 0.0
      %2763 = vmatpush1.xpose.msra.mxu0 0.0
      %2764 = vmatprep.subr.mxu0 0.0
      %2765 = vmatpush1.xpose.msra.mxu0 0.0
      %2766 = vmatprep.subr.mxu0 0.0
      %2767 = vmatpush1.xpose.msra.mxu0 0.0
      %2768 = vmatprep.subr.mxu0 0.0
      %2769 = vmatpush1.xpose.msra.mxu0 0.0
      %2770 = vmatprep.subr.mxu0 0.0
      %2771 = vmatpush1.xpose.msra.mxu0 0.0
      %2772 = vmatprep.subr.mxu0 0.0
      %2773 = vmatpush1.xpose.msra.mxu0 0.0
      %2774 = vmatprep.subr.mxu0 0.0
      %2775 = vmatpush1.xpose.msra.mxu0 0.0
      %2776 = vmatprep.subr.mxu0 0.0
      %2777 = vmatpush1.xpose.msra.mxu0 0.0
      %2778 = vmatprep.subr.mxu0 0.0
      %2779 = vmatpush1.xpose.msra.mxu0 0.0
      %2780 = vmatprep.subr.mxu0 0.0
      %2781 = vmatpush1.xpose.msra.mxu0 0.0
      %2782 = vmatprep.subr.mxu0 0.0
      %2783 = vmatpush1.xpose.msra.mxu0 0.0
      %2784 = vmatprep.subr.mxu0 0.0
      %2785 = vmatpush1.xpose.msra.mxu0 0.0
      %2786 = vmatprep.subr.mxu0 0.0
      %2787 = vmatpush1.xpose.msra.mxu0 0.0
      %2788 = vmatprep.subr.mxu0 0.0
      %2789 = vmatpush1.xpose.msra.mxu0 0.0
      %2790 = vmatprep.subr.mxu0 0.0
      %2791 = vmatpush1.xpose.msra.mxu0 0.0
      %2792 = vmatprep.subr.mxu0 0.0
      %2793 = vmatpush1.xpose.msra.mxu0 0.0
      %2794 = vmatprep.subr.mxu0 0.0
      %2795 = vmatpush1.xpose.msra.mxu0 0.0
      %2796 = vmatprep.subr.mxu0 0.0
      %2797 = vmatpush1.xpose.msra.mxu0 0.0
      %2798 = vmatprep.subr.mxu0 0.0
      %2799 = vmatpush1.xpose.msra.mxu0 0.0
      %2800 = vmatprep.mubr.f32.mxu0 0.0
      %v2801 = vand.u32 %v2650, 4294901760
      %2802 = vmatmul.mubr.f32.gmra.mrb[0].mxu0 %v2801
      %v2803 = vpop.f32.mrb[0].mxu0
      %v2804 = vadd.f32 %v2728, %v2803
      %v2805 = vpop.f32.mrb[0].mxu0
      %2806 = vdwg.mxu0
      %2807 = vmatprep.subr.mxu0 0.0
      %v2808 = vand.u32 %v2653, 4294901760
      %v2809 = vsub.f32 %v2653, %v2808
      %2810 = vmatpush1.xpose.msra.mxu0 %v2809
      %2811 = vmatprep.subr.mxu0 0.0
      %2812 = vmatpush1.xpose.msra.mxu0 0.0
      %2813 = vmatprep.subr.mxu0 0.0
      %2814 = vmatpush1.xpose.msra.mxu0 0.0
      %2815 = vmatprep.subr.mxu0 0.0
      %2816 = vmatpush1.xpose.msra.mxu0 0.0
      %2817 = vmatprep.subr.mxu0 0.0
      %2818 = vmatpush1.xpose.msra.mxu0 0.0
      %2819 = vmatprep.subr.mxu0 0.0
      %2820 = vmatpush1.xpose.msra.mxu0 0.0
      %2821 = vmatprep.subr.mxu0 0.0
      %2822 = vmatpush1.xpose.msra.mxu0 0.0
      %2823 = vmatprep.subr.mxu0 0.0
      %2824 = vmatpush1.xpose.msra.mxu0 0.0
      %2825 = vmatprep.subr.mxu0 0.0
      %2826 = vmatpush1.xpose.msra.mxu0 0.0
      %2827 = vmatprep.subr.mxu0 0.0
      %2828 = vmatpush1.xpose.msra.mxu0 0.0
      %2829 = vmatprep.subr.mxu0 0.0
      %2830 = vmatpush1.xpose.msra.mxu0 0.0
      %2831 = vmatprep.subr.mxu0 0.0
      %2832 = vmatpush1.xpose.msra.mxu0 0.0
      %2833 = vmatprep.subr.mxu0 0.0
      %2834 = vmatpush1.xpose.msra.mxu0 0.0
      %2835 = vmatprep.subr.mxu0 0.0
      %2836 = vmatpush1.xpose.msra.mxu0 0.0
      %2837 = vmatprep.subr.mxu0 0.0
      %2838 = vmatpush1.xpose.msra.mxu0 0.0
      %2839 = vmatprep.subr.mxu0 0.0
      %2840 = vmatpush1.xpose.msra.mxu0 0.0
      %2841 = vmatprep.subr.mxu0 0.0
      %2842 = vmatpush1.xpose.msra.mxu0 0.0
      %2843 = vmatprep.subr.mxu0 0.0
      %2844 = vmatpush1.xpose.msra.mxu0 0.0
      %2845 = vmatprep.subr.mxu0 0.0
      %2846 = vmatpush1.xpose.msra.mxu0 0.0
      %2847 = vmatprep.subr.mxu0 0.0
      %2848 = vmatpush1.xpose.msra.mxu0 0.0
      %2849 = vmatprep.subr.mxu0 0.0
      %2850 = vmatpush1.xpose.msra.mxu0 0.0
      %2851 = vmatprep.subr.mxu0 0.0
      %2852 = vmatpush1.xpose.msra.mxu0 0.0
      %2853 = vmatprep.subr.mxu0 0.0
      %2854 = vmatpush1.xpose.msra.mxu0 0.0
      %2855 = vmatprep.subr.mxu0 0.0
      %2856 = vmatpush1.xpose.msra.mxu0 0.0
      %2857 = vmatprep.subr.mxu0 0.0
      %2858 = vmatpush1.xpose.msra.mxu0 0.0
      %2859 = vmatprep.subr.mxu0 0.0
      %2860 = vmatpush1.xpose.msra.mxu0 0.0
      %2861 = vmatprep.subr.mxu0 0.0
      %2862 = vmatpush1.xpose.msra.mxu0 0.0
      %2863 = vmatprep.subr.mxu0 0.0
      %2864 = vmatpush1.xpose.msra.mxu0 0.0
      %2865 = vmatprep.subr.mxu0 0.0
      %2866 = vmatpush1.xpose.msra.mxu0 0.0
      %2867 = vmatprep.subr.mxu0 0.0
      %2868 = vmatpush1.xpose.msra.mxu0 0.0
      %2869 = vmatprep.subr.mxu0 0.0
      %2870 = vmatpush1.xpose.msra.mxu0 0.0
      %2871 = vmatprep.subr.mxu0 0.0
      %2872 = vmatpush1.xpose.msra.mxu0 0.0
      %2873 = vmatprep.mubr.f32.mxu0 0.0
      %v2874 = vand.u32 %v2650, 4294901760
      %v2875 = vsub.f32 %v2650, %v2874
      %2876 = vmatmul.mubr.f32.gmra.mrb[0].mxu0 %v2875
      %v2877 = vpop.f32.mrb[0].mxu0
      %v2878 = vadd.f32 %v2804, %v2877
      %v2879 = vpop.f32.mrb[0].mxu0
      %2880 = vdwg.mxu0
      %2881 = vmatprep.subr.mxu0 0.0
      %v2882 = vand.u32 %v2653, 4294901760
      %2883 = vmatpush1.xpose.msra.mxu0 %v2882
      %2884 = vmatprep.subr.mxu0 0.0
      %2885 = vmatpush1.xpose.msra.mxu0 0.0
      %2886 = vmatprep.subr.mxu0 0.0
      %2887 = vmatpush1.xpose.msra.mxu0 0.0
      %2888 = vmatprep.subr.mxu0 0.0
      %2889 = vmatpush1.xpose.msra.mxu0 0.0
      %2890 = vmatprep.subr.mxu0 0.0
      %2891 = vmatpush1.xpose.msra.mxu0 0.0
      %2892 = vmatprep.subr.mxu0 0.0
      %2893 = vmatpush1.xpose.msra.mxu0 0.0
      %2894 = vmatprep.subr.mxu0 0.0
      %2895 = vmatpush1.xpose.msra.mxu0 0.0
      %2896 = vmatprep.subr.mxu0 0.0
      %2897 = vmatpush1.xpose.msra.mxu0 0.0
      %2898 = vmatprep.subr.mxu0 0.0
      %2899 = vmatpush1.xpose.msra.mxu0 0.0
      %2900 = vmatprep.subr.mxu0 0.0
      %2901 = vmatpush1.xpose.msra.mxu0 0.0
      %2902 = vmatprep.subr.mxu0 0.0
      %2903 = vmatpush1.xpose.msra.mxu0 0.0
      %2904 = vmatprep.subr.mxu0 0.0
      %2905 = vmatpush1.xpose.msra.mxu0 0.0
      %2906 = vmatprep.subr.mxu0 0.0
      %2907 = vmatpush1.xpose.msra.mxu0 0.0
      %2908 = vmatprep.subr.mxu0 0.0
      %2909 = vmatpush1.xpose.msra.mxu0 0.0
      %2910 = vmatprep.subr.mxu0 0.0
      %2911 = vmatpush1.xpose.msra.mxu0 0.0
      %2912 = vmatprep.subr.mxu0 0.0
      %2913 = vmatpush1.xpose.msra.mxu0 0.0
      %2914 = vmatprep.subr.mxu0 0.0
      %2915 = vmatpush1.xpose.msra.mxu0 0.0
      %2916 = vmatprep.subr.mxu0 0.0
      %2917 = vmatpush1.xpose.msra.mxu0 0.0
      %2918 = vmatprep.subr.mxu0 0.0
      %2919 = vmatpush1.xpose.msra.mxu0 0.0
      %2920 = vmatprep.subr.mxu0 0.0
      %2921 = vmatpush1.xpose.msra.mxu0 0.0
      %2922 = vmatprep.subr.mxu0 0.0
      %2923 = vmatpush1.xpose.msra.mxu0 0.0
      %2924 = vmatprep.subr.mxu0 0.0
      %2925 = vmatpush1.xpose.msra.mxu0 0.0
      %2926 = vmatprep.subr.mxu0 0.0
      %2927 = vmatpush1.xpose.msra.mxu0 0.0
      %2928 = vmatprep.subr.mxu0 0.0
      %2929 = vmatpush1.xpose.msra.mxu0 0.0
      %2930 = vmatprep.subr.mxu0 0.0
      %2931 = vmatpush1.xpose.msra.mxu0 0.0
      %2932 = vmatprep.subr.mxu0 0.0
      %2933 = vmatpush1.xpose.msra.mxu0 0.0
      %2934 = vmatprep.subr.mxu0 0.0
      %2935 = vmatpush1.xpose.msra.mxu0 0.0
      %2936 = vmatprep.subr.mxu0 0.0
      %2937 = vmatpush1.xpose.msra.mxu0 0.0
      %2938 = vmatprep.subr.mxu0 0.0
      %2939 = vmatpush1.xpose.msra.mxu0 0.0
      %2940 = vmatprep.subr.mxu0 0.0
      %2941 = vmatpush1.xpose.msra.mxu0 0.0
      %2942 = vmatprep.subr.mxu0 0.0
      %2943 = vmatpush1.xpose.msra.mxu0 0.0
      %2944 = vmatprep.subr.mxu0 0.0
      %2945 = vmatpush1.xpose.msra.mxu0 0.0
      %2946 = vmatprep.mubr.f32.mxu0 0.0
      %v2947 = vand.u32 %v2650, 4294901760
      %v2948 = vsub.f32 %v2650, %v2947
      %v2949 = vand.u32 %v2948, 4294901760
      %2950 = vmatmul.mubr.f32.gmra.mrb[0].mxu0 %v2949
      %v2951 = vpop.f32.mrb[0].mxu0
      %v2952 = vadd.f32 %v2878, %v2951
      %v2953 = vpop.f32.mrb[0].mxu0
      %2954 = vdwg.mxu0
      %2955 = vmatprep.subr.mxu0 0.0
      %v2956 = vand.u32 %v2653, 4294901760
      %v2957 = vsub.f32 %v2653, %v2956
      %v2958 = vand.u32 %v2957, 4294901760
      %2959 = vmatpush1.xpose.msra.mxu0 %v2958
      %2960 = vmatprep.subr.mxu0 0.0
      %2961 = vmatpush1.xpose.msra.mxu0 0.0
      %2962 = vmatprep.subr.mxu0 0.0
      %2963 = vmatpush1.xpose.msra.mxu0 0.0
      %2964 = vmatprep.subr.mxu0 0.0
      %2965 = vmatpush1.xpose.msra.mxu0 0.0
      %2966 = vmatprep.subr.mxu0 0.0
      %2967 = vmatpush1.xpose.msra.mxu0 0.0
      %2968 = vmatprep.subr.mxu0 0.0
      %2969 = vmatpush1.xpose.msra.mxu0 0.0
      %2970 = vmatprep.subr.mxu0 0.0
      %2971 = vmatpush1.xpose.msra.mxu0 0.0
      %2972 = vmatprep.subr.mxu0 0.0
      %2973 = vmatpush1.xpose.msra.mxu0 0.0
      %2974 = vmatprep.subr.mxu0 0.0
      %2975 = vmatpush1.xpose.msra.mxu0 0.0
      %2976 = vmatprep.subr.mxu0 0.0
      %2977 = vmatpush1.xpose.msra.mxu0 0.0
      %2978 = vmatprep.subr.mxu0 0.0
      %2979 = vmatpush1.xpose.msra.mxu0 0.0
      %2980 = vmatprep.subr.mxu0 0.0
      %2981 = vmatpush1.xpose.msra.mxu0 0.0
      %2982 = vmatprep.subr.mxu0 0.0
      %2983 = vmatpush1.xpose.msra.mxu0 0.0
      %2984 = vmatprep.subr.mxu0 0.0
      %2985 = vmatpush1.xpose.msra.mxu0 0.0
      %2986 = vmatprep.subr.mxu0 0.0
      %2987 = vmatpush1.xpose.msra.mxu0 0.0
      %2988 = vmatprep.subr.mxu0 0.0
      %2989 = vmatpush1.xpose.msra.mxu0 0.0
      %2990 = vmatprep.subr.mxu0 0.0
      %2991 = vmatpush1.xpose.msra.mxu0 0.0
      %2992 = vmatprep.subr.mxu0 0.0
      %2993 = vmatpush1.xpose.msra.mxu0 0.0
      %2994 = vmatprep.subr.mxu0 0.0
      %2995 = vmatpush1.xpose.msra.mxu0 0.0
      %2996 = vmatprep.subr.mxu0 0.0
      %2997 = vmatpush1.xpose.msra.mxu0 0.0
      %2998 = vmatprep.subr.mxu0 0.0
      %2999 = vmatpush1.xpose.msra.mxu0 0.0
      %3000 = vmatprep.subr.mxu0 0.0
      %3001 = vmatpush1.xpose.msra.mxu0 0.0
      %3002 = vmatprep.subr.mxu0 0.0
      %3003 = vmatpush1.xpose.msra.mxu0 0.0
      %3004 = vmatprep.subr.mxu0 0.0
      %3005 = vmatpush1.xpose.msra.mxu0 0.0
      %3006 = vmatprep.subr.mxu0 0.0
      %3007 = vmatpush1.xpose.msra.mxu0 0.0
      %3008 = vmatprep.subr.mxu0 0.0
      %3009 = vmatpush1.xpose.msra.mxu0 0.0
      %3010 = vmatprep.subr.mxu0 0.0
      %3011 = vmatpush1.xpose.msra.mxu0 0.0
      %3012 = vmatprep.subr.mxu0 0.0
      %3013 = vmatpush1.xpose.msra.mxu0 0.0
      %3014 = vmatprep.subr.mxu0 0.0
      %3015 = vmatpush1.xpose.msra.mxu0 0.0
      %3016 = vmatprep.subr.mxu0 0.0
      %3017 = vmatpush1.xpose.msra.mxu0 0.0
      %3018 = vmatprep.subr.mxu0 0.0
      %3019 = vmatpush1.xpose.msra.mxu0 0.0
      %3020 = vmatprep.subr.mxu0 0.0
      %3021 = vmatpush1.xpose.msra.mxu0 0.0
      %3022 = vmatprep.mubr.f32.mxu0 0.0
      %v3023 = vand.u32 %v2650, 4294901760
      %3024 = vmatmul.mubr.f32.gmra.mrb[0].mxu0 %v3023
      %v3025 = vpop.f32.mrb[0].mxu0
      %v3026 = vadd.f32 %v2952, %v3025
      %v3027 = vpop.f32.mrb[0].mxu0
      %3028 = vdwg.mxu0
      %3029 = vmatprep.subr.mxu0 0.0
      %v3030 = vand.u32 %v2653, 4294901760
      %3031 = vmatpush1.xpose.msra.mxu0 %v3030
      %3032 = vmatprep.subr.mxu0 0.0
      %3033 = vmatpush1.xpose.msra.mxu0 0.0
      %3034 = vmatprep.subr.mxu0 0.0
      %3035 = vmatpush1.xpose.msra.mxu0 0.0
      %3036 = vmatprep.subr.mxu0 0.0
      %3037 = vmatpush1.xpose.msra.mxu0 0.0
      %3038 = vmatprep.subr.mxu0 0.0
      %3039 = vmatpush1.xpose.msra.mxu0 0.0
      %3040 = vmatprep.subr.mxu0 0.0
      %3041 = vmatpush1.xpose.msra.mxu0 0.0
      %3042 = vmatprep.subr.mxu0 0.0
      %3043 = vmatpush1.xpose.msra.mxu0 0.0
      %3044 = vmatprep.subr.mxu0 0.0
      %3045 = vmatpush1.xpose.msra.mxu0 0.0
      %3046 = vmatprep.subr.mxu0 0.0
      %3047 = vmatpush1.xpose.msra.mxu0 0.0
      %3048 = vmatprep.subr.mxu0 0.0
      %3049 = vmatpush1.xpose.msra.mxu0 0.0
      %3050 = vmatprep.subr.mxu0 0.0
      %3051 = vmatpush1.xpose.msra.mxu0 0.0
      %3052 = vmatprep.subr.mxu0 0.0
      %3053 = vmatpush1.xpose.msra.mxu0 0.0
      %3054 = vmatprep.subr.mxu0 0.0
      %3055 = vmatpush1.xpose.msra.mxu0 0.0
      %3056 = vmatprep.subr.mxu0 0.0
      %3057 = vmatpush1.xpose.msra.mxu0 0.0
      %3058 = vmatprep.subr.mxu0 0.0
      %3059 = vmatpush1.xpose.msra.mxu0 0.0
      %3060 = vmatprep.subr.mxu0 0.0
      %3061 = vmatpush1.xpose.msra.mxu0 0.0
      %3062 = vmatprep.subr.mxu0 0.0
      %3063 = vmatpush1.xpose.msra.mxu0 0.0
      %3064 = vmatprep.subr.mxu0 0.0
      %3065 = vmatpush1.xpose.msra.mxu0 0.0
      %3066 = vmatprep.subr.mxu0 0.0
      %3067 = vmatpush1.xpose.msra.mxu0 0.0
      %3068 = vmatprep.subr.mxu0 0.0
      %3069 = vmatpush1.xpose.msra.mxu0 0.0
      %3070 = vmatprep.subr.mxu0 0.0
      %3071 = vmatpush1.xpose.msra.mxu0 0.0
      %3072 = vmatprep.subr.mxu0 0.0
      %3073 = vmatpush1.xpose.msra.mxu0 0.0
      %3074 = vmatprep.subr.mxu0 0.0
      %3075 = vmatpush1.xpose.msra.mxu0 0.0
      %3076 = vmatprep.subr.mxu0 0.0
      %3077 = vmatpush1.xpose.msra.mxu0 0.0
      %3078 = vmatprep.subr.mxu0 0.0
      %3079 = vmatpush1.xpose.msra.mxu0 0.0
      %3080 = vmatprep.subr.mxu0 0.0
      %3081 = vmatpush1.xpose.msra.mxu0 0.0
      %3082 = vmatprep.subr.mxu0 0.0
      %3083 = vmatpush1.xpose.msra.mxu0 0.0
      %3084 = vmatprep.subr.mxu0 0.0
      %3085 = vmatpush1.xpose.msra.mxu0 0.0
      %3086 = vmatprep.subr.mxu0 0.0
      %3087 = vmatpush1.xpose.msra.mxu0 0.0
      %3088 = vmatprep.subr.mxu0 0.0
      %3089 = vmatpush1.xpose.msra.mxu0 0.0
      %3090 = vmatprep.subr.mxu0 0.0
      %3091 = vmatpush1.xpose.msra.mxu0 0.0
      %3092 = vmatprep.subr.mxu0 0.0
      %3093 = vmatpush1.xpose.msra.mxu0 0.0
      %3094 = vmatprep.mubr.f32.mxu0 0.0
      %v3095 = vand.u32 %v2650, 4294901760
      %3096 = vmatmul.mubr.f32.gmra.mrb[0].mxu0 %v3095
      %v3097 = vpop.f32.mrb[0].mxu0
      %v3098 = vadd.f32 %v3026, %v3097
      %v3099 = vpop.f32.mrb[0].mxu0
      %3100 = vdwg.mxu0
      %vm3101 = vcmask 27648
      %v3102 = vsel %vm3101, %v3098, -inf
      %3103 = vmax.xlane.f32.xlu0 %v3102
      %v3104 = vpop.xlane.xlu0 %3103
      %v3105 = vsub.f32 %v3098, %v3104
      %v3106 = vmul.f32 %v3105, 1.442695
      %v3107 = vpow.pop %v3106
      %v3108 = vsel %vm3101, %v3107, 0.0
      %3109 = vadd.xlane.f32.xlu0 %v3108
      %v3110 = vpop.xlane.xlu0 %3109
      %v3111 = vrcp.pop %v3110
      %v3112 = vmul.f32 %v3107, %v3111
      %v3113 = vld [vmem:[%s8] sm:$0xf]
      %v3115 = vsel %vm1745, %v3113, 0
      %v3118 = vsel %vm1749, %v3112, 0
      %3120 = vmatprep.subr.mxu0 0.0
      %v3121 = vand.u32 %v3118, 4294901760
      %3122 = vmatpush1.msra.mxu0 %v3121
      %3123 = vmatprep.subr.mxu0 0.0
      %3124 = vmatpush1.msra.mxu0 0.0
      %3125 = vmatprep.subr.mxu0 0.0
      %3126 = vmatpush1.msra.mxu0 0.0
      %3127 = vmatprep.subr.mxu0 0.0
      %3128 = vmatpush1.msra.mxu0 0.0
      %3129 = vmatprep.subr.mxu0 0.0
      %3130 = vmatpush1.msra.mxu0 0.0
      %3131 = vmatprep.subr.mxu0 0.0
      %3132 = vmatpush1.msra.mxu0 0.0
      %3133 = vmatprep.subr.mxu0 0.0
      %3134 = vmatpush1.msra.mxu0 0.0
      %3135 = vmatprep.subr.mxu0 0.0
      %3136 = vmatpush1.msra.mxu0 0.0
      %3137 = vmatprep.subr.mxu0 0.0
      %3138 = vmatpush1.msra.mxu0 0.0
      %3139 = vmatprep.subr.mxu0 0.0
      %3140 = vmatpush1.msra.mxu0 0.0
      %3141 = vmatprep.subr.mxu0 0.0
      %3142 = vmatpush1.msra.mxu0 0.0
      %3143 = vmatprep.subr.mxu0 0.0
      %3144 = vmatpush1.msra.mxu0 0.0
      %3145 = vmatprep.subr.mxu0 0.0
      %3146 = vmatpush1.msra.mxu0 0.0
      %3147 = vmatprep.subr.mxu0 0.0
      %3148 = vmatpush1.msra.mxu0 0.0
      %3149 = vmatprep.subr.mxu0 0.0
      %3150 = vmatpush1.msra.mxu0 0.0
      %3151 = vmatprep.subr.mxu0 0.0
      %3152 = vmatpush1.msra.mxu0 0.0
      %3153 = vmatprep.subr.mxu0 0.0
      %3154 = vmatpush1.msra.mxu0 0.0
      %3155 = vmatprep.subr.mxu0 0.0
      %3156 = vmatpush1.msra.mxu0 0.0
      %3157 = vmatprep.subr.mxu0 0.0
      %3158 = vmatpush1.msra.mxu0 0.0
      %3159 = vmatprep.subr.mxu0 0.0
      %3160 = vmatpush1.msra.mxu0 0.0
      %3161 = vmatprep.subr.mxu0 0.0
      %3162 = vmatpush1.msra.mxu0 0.0
      %3163 = vmatprep.subr.mxu0 0.0
      %3164 = vmatpush1.msra.mxu0 0.0
      %3165 = vmatprep.subr.mxu0 0.0
      %3166 = vmatpush1.msra.mxu0 0.0
      %3167 = vmatprep.subr.mxu0 0.0
      %3168 = vmatpush1.msra.mxu0 0.0
      %3169 = vmatprep.subr.mxu0 0.0
      %3170 = vmatpush1.msra.mxu0 0.0
      %3171 = vmatprep.subr.mxu0 0.0
      %3172 = vmatpush1.msra.mxu0 0.0
      %3173 = vmatprep.subr.mxu0 0.0
      %3174 = vmatpush1.msra.mxu0 0.0
      %3175 = vmatprep.subr.mxu0 0.0
      %3176 = vmatpush1.msra.mxu0 0.0
      %3177 = vmatprep.subr.mxu0 0.0
      %3178 = vmatpush1.msra.mxu0 0.0
      %3179 = vmatprep.subr.mxu0 0.0
      %3180 = vmatpush1.msra.mxu0 0.0
      %3181 = vmatprep.subr.mxu0 0.0
      %3182 = vmatpush1.msra.mxu0 0.0
      %3183 = vmatprep.subr.mxu0 0.0
      %3184 = vmatpush1.msra.mxu0 0.0
      %3185 = vmatprep.mubr.f32.mxu0 0.0
      %v3186 = vand.u32 %v3115, 4294901760
      %v3187 = vsub.f32 %v3115, %v3186
      %v3188 = vand.u32 %v3187, 4294901760
      %v3189 = vsub.f32 %v3187, %v3188
      %v3190 = vand.u32 %v3189, 4294901760
      %3191 = vmatmul.mubr.f32.gmra.mrb[0].mxu0 %v3190
      %v3192 = vpop.f32.mrb[0].mxu0
      %v3193 = vadd.f32 0.0, %v3192
      %v3194 = vpop.f32.mrb[0].mxu0
      %3195 = vdwg.mxu0
      %3196 = vmatprep.subr.mxu0 0.0
      %v3197 = vand.u32 %v3118, 4294901760
      %v3198 = vsub.f32 %v3118, %v3197
      %v3199 = vand.u32 %v3198, 4294901760
      %v3200 = vsub.f32 %v3198, %v3199
      %v3201 = vand.u32 %v3200, 4294901760
      %3202 = vmatpush1.msra.mxu0 %v3201
      %3203 = vmatprep.subr.mxu0 0.0
      %3204 = vmatpush1.msra.mxu0 0.0
      %3205 = vmatprep.subr.mxu0 0.0
      %3206 = vmatpush1.msra.mxu0 0.0
      %3207 = vmatprep.subr.mxu0 0.0
      %3208 = vmatpush1.msra.mxu0 0.0
      %3209 = vmatprep.subr.mxu0 0.0
      %3210 = vmatpush1.msra.mxu0 0.0
      %3211 = vmatprep.subr.mxu0 0.0
      %3212 = vmatpush1.msra.mxu0 0.0
      %3213 = vmatprep.subr.mxu0 0.0
      %3214 = vmatpush1.msra.mxu0 0.0
      %3215 = vmatprep.subr.mxu0 0.0
      %3216 = vmatpush1.msra.mxu0 0.0
      %3217 = vmatprep.subr.mxu0 0.0
      %3218 = vmatpush1.msra.mxu0 0.0
      %3219 = vmatprep.subr.mxu0 0.0
      %3220 = vmatpush1.msra.mxu0 0.0
      %3221 = vmatprep.subr.mxu0 0.0
      %3222 = vmatpush1.msra.mxu0 0.0
      %3223 = vmatprep.subr.mxu0 0.0
      %3224 = vmatpush1.msra.mxu0 0.0
      %3225 = vmatprep.subr.mxu0 0.0
      %3226 = vmatpush1.msra.mxu0 0.0
      %3227 = vmatprep.subr.mxu0 0.0
      %3228 = vmatpush1.msra.mxu0 0.0
      %3229 = vmatprep.subr.mxu0 0.0
      %3230 = vmatpush1.msra.mxu0 0.0
      %3231 = vmatprep.subr.mxu0 0.0
      %3232 = vmatpush1.msra.mxu0 0.0
      %3233 = vmatprep.subr.mxu0 0.0
      %3234 = vmatpush1.msra.mxu0 0.0
      %3235 = vmatprep.subr.mxu0 0.0
      %3236 = vmatpush1.msra.mxu0 0.0
      %3237 = vmatprep.subr.mxu0 0.0
      %3238 = vmatpush1.msra.mxu0 0.0
      %3239 = vmatprep.subr.mxu0 0.0
      %3240 = vmatpush1.msra.mxu0 0.0
      %3241 = vmatprep.subr.mxu0 0.0
      %3242 = vmatpush1.msra.mxu0 0.0
      %3243 = vmatprep.subr.mxu0 0.0
      %3244 = vmatpush1.msra.mxu0 0.0
      %3245 = vmatprep.subr.mxu0 0.0
      %3246 = vmatpush1.msra.mxu0 0.0
      %3247 = vmatprep.subr.mxu0 0.0
      %3248 = vmatpush1.msra.mxu0 0.0
      %3249 = vmatprep.subr.mxu0 0.0
      %3250 = vmatpush1.msra.mxu0 0.0
      %3251 = vmatprep.subr.mxu0 0.0
      %3252 = vmatpush1.msra.mxu0 0.0
      %3253 = vmatprep.subr.mxu0 0.0
      %3254 = vmatpush1.msra.mxu0 0.0
      %3255 = vmatprep.subr.mxu0 0.0
      %3256 = vmatpush1.msra.mxu0 0.0
      %3257 = vmatprep.subr.mxu0 0.0
      %3258 = vmatpush1.msra.mxu0 0.0
      %3259 = vmatprep.subr.mxu0 0.0
      %3260 = vmatpush1.msra.mxu0 0.0
      %3261 = vmatprep.subr.mxu0 0.0
      %3262 = vmatpush1.msra.mxu0 0.0
      %3263 = vmatprep.subr.mxu0 0.0
      %3264 = vmatpush1.msra.mxu0 0.0
      %3265 = vmatprep.mubr.f32.mxu0 0.0
      %v3266 = vand.u32 %v3115, 4294901760
      %3267 = vmatmul.mubr.f32.gmra.mrb[0].mxu0 %v3266
      %v3268 = vpop.f32.mrb[0].mxu0
      %v3269 = vadd.f32 %v3193, %v3268
      %v3270 = vpop.f32.mrb[0].mxu0
      %3271 = vdwg.mxu0
      %3272 = vmatprep.subr.mxu0 0.0
      %v3273 = vand.u32 %v3118, 4294901760
      %v3274 = vsub.f32 %v3118, %v3273
      %3275 = vmatpush1.msra.mxu0 %v3274
      %3276 = vmatprep.subr.mxu0 0.0
      %3277 = vmatpush1.msra.mxu0 0.0
      %3278 = vmatprep.subr.mxu0 0.0
      %3279 = vmatpush1.msra.mxu0 0.0
      %3280 = vmatprep.subr.mxu0 0.0
      %3281 = vmatpush1.msra.mxu0 0.0
      %3282 = vmatprep.subr.mxu0 0.0
      %3283 = vmatpush1.msra.mxu0 0.0
      %3284 = vmatprep.subr.mxu0 0.0
      %3285 = vmatpush1.msra.mxu0 0.0
      %3286 = vmatprep.subr.mxu0 0.0
      %3287 = vmatpush1.msra.mxu0 0.0
      %3288 = vmatprep.subr.mxu0 0.0
      %3289 = vmatpush1.msra.mxu0 0.0
      %3290 = vmatprep.subr.mxu0 0.0
      %3291 = vmatpush1.msra.mxu0 0.0
      %3292 = vmatprep.subr.mxu0 0.0
      %3293 = vmatpush1.msra.mxu0 0.0
      %3294 = vmatprep.subr.mxu0 0.0
      %3295 = vmatpush1.msra.mxu0 0.0
      %3296 = vmatprep.subr.mxu0 0.0
      %3297 = vmatpush1.msra.mxu0 0.0
      %3298 = vmatprep.subr.mxu0 0.0
      %3299 = vmatpush1.msra.mxu0 0.0
      %3300 = vmatprep.subr.mxu0 0.0
      %3301 = vmatpush1.msra.mxu0 0.0
      %3302 = vmatprep.subr.mxu0 0.0
      %3303 = vmatpush1.msra.mxu0 0.0
      %3304 = vmatprep.subr.mxu0 0.0
      %3305 = vmatpush1.msra.mxu0 0.0
      %3306 = vmatprep.subr.mxu0 0.0
      %3307 = vmatpush1.msra.mxu0 0.0
      %3308 = vmatprep.subr.mxu0 0.0
      %3309 = vmatpush1.msra.mxu0 0.0
      %3310 = vmatprep.subr.mxu0 0.0
      %3311 = vmatpush1.msra.mxu0 0.0
      %3312 = vmatprep.subr.mxu0 0.0
      %3313 = vmatpush1.msra.mxu0 0.0
      %3314 = vmatprep.subr.mxu0 0.0
      %3315 = vmatpush1.msra.mxu0 0.0
      %3316 = vmatprep.subr.mxu0 0.0
      %3317 = vmatpush1.msra.mxu0 0.0
      %3318 = vmatprep.subr.mxu0 0.0
      %3319 = vmatpush1.msra.mxu0 0.0
      %3320 = vmatprep.subr.mxu0 0.0
      %3321 = vmatpush1.msra.mxu0 0.0
      %3322 = vmatprep.subr.mxu0 0.0
      %3323 = vmatpush1.msra.mxu0 0.0
      %3324 = vmatprep.subr.mxu0 0.0
      %3325 = vmatpush1.msra.mxu0 0.0
      %3326 = vmatprep.subr.mxu0 0.0
      %3327 = vmatpush1.msra.mxu0 0.0
      %3328 = vmatprep.subr.mxu0 0.0
      %3329 = vmatpush1.msra.mxu0 0.0
      %3330 = vmatprep.subr.mxu0 0.0
      %3331 = vmatpush1.msra.mxu0 0.0
      %3332 = vmatprep.subr.mxu0 0.0
      %3333 = vmatpush1.msra.mxu0 0.0
      %3334 = vmatprep.subr.mxu0 0.0
      %3335 = vmatpush1.msra.mxu0 0.0
      %3336 = vmatprep.subr.mxu0 0.0
      %3337 = vmatpush1.msra.mxu0 0.0
      %3338 = vmatprep.mubr.f32.mxu0 0.0
      %v3339 = vand.u32 %v3115, 4294901760
      %v3340 = vsub.f32 %v3115, %v3339
      %3341 = vmatmul.mubr.f32.gmra.mrb[0].mxu0 %v3340
      %v3342 = vpop.f32.mrb[0].mxu0
      %v3343 = vadd.f32 %v3269, %v3342
      %v3344 = vpop.f32.mrb[0].mxu0
      %3345 = vdwg.mxu0
      %3346 = vmatprep.subr.mxu0 0.0
      %v3347 = vand.u32 %v3118, 4294901760
      %3348 = vmatpush1.msra.mxu0 %v3347
      %3349 = vmatprep.subr.mxu0 0.0
      %3350 = vmatpush1.msra.mxu0 0.0
      %3351 = vmatprep.subr.mxu0 0.0
      %3352 = vmatpush1.msra.mxu0 0.0
      %3353 = vmatprep.subr.mxu0 0.0
      %3354 = vmatpush1.msra.mxu0 0.0
      %3355 = vmatprep.subr.mxu0 0.0
      %3356 = vmatpush1.msra.mxu0 0.0
      %3357 = vmatprep.subr.mxu0 0.0
      %3358 = vmatpush1.msra.mxu0 0.0
      %3359 = vmatprep.subr.mxu0 0.0
      %3360 = vmatpush1.msra.mxu0 0.0
      %3361 = vmatprep.subr.mxu0 0.0
      %3362 = vmatpush1.msra.mxu0 0.0
      %3363 = vmatprep.subr.mxu0 0.0
      %3364 = vmatpush1.msra.mxu0 0.0
      %3365 = vmatprep.subr.mxu0 0.0
      %3366 = vmatpush1.msra.mxu0 0.0
      %3367 = vmatprep.subr.mxu0 0.0
      %3368 = vmatpush1.msra.mxu0 0.0
      %3369 = vmatprep.subr.mxu0 0.0
      %3370 = vmatpush1.msra.mxu0 0.0
      %3371 = vmatprep.subr.mxu0 0.0
      %3372 = vmatpush1.msra.mxu0 0.0
      %3373 = vmatprep.subr.mxu0 0.0
      %3374 = vmatpush1.msra.mxu0 0.0
      %3375 = vmatprep.subr.mxu0 0.0
      %3376 = vmatpush1.msra.mxu0 0.0
      %3377 = vmatprep.subr.mxu0 0.0
      %3378 = vmatpush1.msra.mxu0 0.0
      %3379 = vmatprep.subr.mxu0 0.0
      %3380 = vmatpush1.msra.mxu0 0.0
      %3381 = vmatprep.subr.mxu0 0.0
      %3382 = vmatpush1.msra.mxu0 0.0
      %3383 = vmatprep.subr.mxu0 0.0
      %3384 = vmatpush1.msra.mxu0 0.0
      %3385 = vmatprep.subr.mxu0 0.0
      %3386 = vmatpush1.msra.mxu0 0.0
      %3387 = vmatprep.subr.mxu0 0.0
      %3388 = vmatpush1.msra.mxu0 0.0
      %3389 = vmatprep.subr.mxu0 0.0
      %3390 = vmatpush1.msra.mxu0 0.0
      %3391 = vmatprep.subr.mxu0 0.0
      %3392 = vmatpush1.msra.mxu0 0.0
      %3393 = vmatprep.subr.mxu0 0.0
      %3394 = vmatpush1.msra.mxu0 0.0
      %3395 = vmatprep.subr.mxu0 0.0
      %3396 = vmatpush1.msra.mxu0 0.0
      %3397 = vmatprep.subr.mxu0 0.0
      %3398 = vmatpush1.msra.mxu0 0.0
      %3399 = vmatprep.subr.mxu0 0.0
      %3400 = vmatpush1.msra.mxu0 0.0
      %3401 = vmatprep.subr.mxu0 0.0
      %3402 = vmatpush1.msra.mxu0 0.0
      %3403 = vmatprep.subr.mxu0 0.0
      %3404 = vmatpush1.msra.mxu0 0.0
      %3405 = vmatprep.subr.mxu0 0.0
      %3406 = vmatpush1.msra.mxu0 0.0
      %3407 = vmatprep.subr.mxu0 0.0
      %3408 = vmatpush1.msra.mxu0 0.0
      %3409 = vmatprep.subr.mxu0 0.0
      %3410 = vmatpush1.msra.mxu0 0.0
      %3411 = vmatprep.mubr.f32.mxu0 0.0
      %v3412 = vand.u32 %v3115, 4294901760
      %v3413 = vsub.f32 %v3115, %v3412
      %v3414 = vand.u32 %v3413, 4294901760
      %3415 = vmatmul.mubr.f32.gmra.mrb[0].mxu0 %v3414
      %v3416 = vpop.f32.mrb[0].mxu0
      %v3417 = vadd.f32 %v3343, %v3416
      %v3418 = vpop.f32.mrb[0].mxu0
      %3419 = vdwg.mxu0
      %3420 = vmatprep.subr.mxu0 0.0
      %v3421 = vand.u32 %v3118, 4294901760
      %v3422 = vsub.f32 %v3118, %v3421
      %v3423 = vand.u32 %v3422, 4294901760
      %3424 = vmatpush1.msra.mxu0 %v3423
      %3425 = vmatprep.subr.mxu0 0.0
      %3426 = vmatpush1.msra.mxu0 0.0
      %3427 = vmatprep.subr.mxu0 0.0
      %3428 = vmatpush1.msra.mxu0 0.0
      %3429 = vmatprep.subr.mxu0 0.0
      %3430 = vmatpush1.msra.mxu0 0.0
      %3431 = vmatprep.subr.mxu0 0.0
      %3432 = vmatpush1.msra.mxu0 0.0
      %3433 = vmatprep.subr.mxu0 0.0
      %3434 = vmatpush1.msra.mxu0 0.0
      %3435 = vmatprep.subr.mxu0 0.0
      %3436 = vmatpush1.msra.mxu0 0.0
      %3437 = vmatprep.subr.mxu0 0.0
      %3438 = vmatpush1.msra.mxu0 0.0
      %3439 = vmatprep.subr.mxu0 0.0
      %3440 = vmatpush1.msra.mxu0 0.0
      %3441 = vmatprep.subr.mxu0 0.0
      %3442 = vmatpush1.msra.mxu0 0.0
      %3443 = vmatprep.subr.mxu0 0.0
      %3444 = vmatpush1.msra.mxu0 0.0
      %3445 = vmatprep.subr.mxu0 0.0
      %3446 = vmatpush1.msra.mxu0 0.0
      %3447 = vmatprep.subr.mxu0 0.0
      %3448 = vmatpush1.msra.mxu0 0.0
      %3449 = vmatprep.subr.mxu0 0.0
      %3450 = vmatpush1.msra.mxu0 0.0
      %3451 = vmatprep.subr.mxu0 0.0
      %3452 = vmatpush1.msra.mxu0 0.0
      %3453 = vmatprep.subr.mxu0 0.0
      %3454 = vmatpush1.msra.mxu0 0.0
      %3455 = vmatprep.subr.mxu0 0.0
      %3456 = vmatpush1.msra.mxu0 0.0
      %3457 = vmatprep.subr.mxu0 0.0
      %3458 = vmatpush1.msra.mxu0 0.0
      %3459 = vmatprep.subr.mxu0 0.0
      %3460 = vmatpush1.msra.mxu0 0.0
      %3461 = vmatprep.subr.mxu0 0.0
      %3462 = vmatpush1.msra.mxu0 0.0
      %3463 = vmatprep.subr.mxu0 0.0
      %3464 = vmatpush1.msra.mxu0 0.0
      %3465 = vmatprep.subr.mxu0 0.0
      %3466 = vmatpush1.msra.mxu0 0.0
      %3467 = vmatprep.subr.mxu0 0.0
      %3468 = vmatpush1.msra.mxu0 0.0
      %3469 = vmatprep.subr.mxu0 0.0
      %3470 = vmatpush1.msra.mxu0 0.0
      %3471 = vmatprep.subr.mxu0 0.0
      %3472 = vmatpush1.msra.mxu0 0.0
      %3473 = vmatprep.subr.mxu0 0.0
      %3474 = vmatpush1.msra.mxu0 0.0
      %3475 = vmatprep.subr.mxu0 0.0
      %3476 = vmatpush1.msra.mxu0 0.0
      %3477 = vmatprep.subr.mxu0 0.0
      %3478 = vmatpush1.msra.mxu0 0.0
      %3479 = vmatprep.subr.mxu0 0.0
      %3480 = vmatpush1.msra.mxu0 0.0
      %3481 = vmatprep.subr.mxu0 0.0
      %3482 = vmatpush1.msra.mxu0 0.0
      %3483 = vmatprep.subr.mxu0 0.0
      %3484 = vmatpush1.msra.mxu0 0.0
      %3485 = vmatprep.subr.mxu0 0.0
      %3486 = vmatpush1.msra.mxu0 0.0
      %3487 = vmatprep.mubr.f32.mxu0 0.0
      %v3488 = vand.u32 %v3115, 4294901760
      %3489 = vmatmul.mubr.f32.gmra.mrb[0].mxu0 %v3488
      %v3490 = vpop.f32.mrb[0].mxu0
      %v3491 = vadd.f32 %v3417, %v3490
      %v3492 = vpop.f32.mrb[0].mxu0
      %3493 = vdwg.mxu0
      %3494 = vmatprep.subr.mxu0 0.0
      %v3495 = vand.u32 %v3118, 4294901760
      %3496 = vmatpush1.msra.mxu0 %v3495
      %3497 = vmatprep.subr.mxu0 0.0
      %3498 = vmatpush1.msra.mxu0 0.0
      %3499 = vmatprep.subr.mxu0 0.0
      %3500 = vmatpush1.msra.mxu0 0.0
      %3501 = vmatprep.subr.mxu0 0.0
      %3502 = vmatpush1.msra.mxu0 0.0
      %3503 = vmatprep.subr.mxu0 0.0
      %3504 = vmatpush1.msra.mxu0 0.0
      %3505 = vmatprep.subr.mxu0 0.0
      %3506 = vmatpush1.msra.mxu0 0.0
      %3507 = vmatprep.subr.mxu0 0.0
      %3508 = vmatpush1.msra.mxu0 0.0
      %3509 = vmatprep.subr.mxu0 0.0
      %3510 = vmatpush1.msra.mxu0 0.0
      %3511 = vmatprep.subr.mxu0 0.0
      %3512 = vmatpush1.msra.mxu0 0.0
      %3513 = vmatprep.subr.mxu0 0.0
      %3514 = vmatpush1.msra.mxu0 0.0
      %3515 = vmatprep.subr.mxu0 0.0
      %3516 = vmatpush1.msra.mxu0 0.0
      %3517 = vmatprep.subr.mxu0 0.0
      %3518 = vmatpush1.msra.mxu0 0.0
      %3519 = vmatprep.subr.mxu0 0.0
      %3520 = vmatpush1.msra.mxu0 0.0
      %3521 = vmatprep.subr.mxu0 0.0
      %3522 = vmatpush1.msra.mxu0 0.0
      %3523 = vmatprep.subr.mxu0 0.0
      %3524 = vmatpush1.msra.mxu0 0.0
      %3525 = vmatprep.subr.mxu0 0.0
      %3526 = vmatpush1.msra.mxu0 0.0
      %3527 = vmatprep.subr.mxu0 0.0
      %3528 = vmatpush1.msra.mxu0 0.0
      %3529 = vmatprep.subr.mxu0 0.0
      %3530 = vmatpush1.msra.mxu0 0.0
      %3531 = vmatprep.subr.mxu0 0.0
      %3532 = vmatpush1.msra.mxu0 0.0
      %3533 = vmatprep.subr.mxu0 0.0
      %3534 = vmatpush1.msra.mxu0 0.0
      %3535 = vmatprep.subr.mxu0 0.0
      %3536 = vmatpush1.msra.mxu0 0.0
      %3537 = vmatprep.subr.mxu0 0.0
      %3538 = vmatpush1.msra.mxu0 0.0
      %3539 = vmatprep.subr.mxu0 0.0
      %3540 = vmatpush1.msra.mxu0 0.0
      %3541 = vmatprep.subr.mxu0 0.0
      %3542 = vmatpush1.msra.mxu0 0.0
      %3543 = vmatprep.subr.mxu0 0.0
      %3544 = vmatpush1.msra.mxu0 0.0
      %3545 = vmatprep.subr.mxu0 0.0
      %3546 = vmatpush1.msra.mxu0 0.0
      %3547 = vmatprep.subr.mxu0 0.0
      %3548 = vmatpush1.msra.mxu0 0.0
      %3549 = vmatprep.subr.mxu0 0.0
      %3550 = vmatpush1.msra.mxu0 0.0
      %3551 = vmatprep.subr.mxu0 0.0
      %3552 = vmatpush1.msra.mxu0 0.0
      %3553 = vmatprep.subr.mxu0 0.0
      %3554 = vmatpush1.msra.mxu0 0.0
      %3555 = vmatprep.subr.mxu0 0.0
      %3556 = vmatpush1.msra.mxu0 0.0
      %3557 = vmatprep.subr.mxu0 0.0
      %3558 = vmatpush1.msra.mxu0 0.0
      %3559 = vmatprep.mubr.f32.mxu0 0.0
      %v3560 = vand.u32 %v3115, 4294901760
      %3561 = vmatmul.mubr.f32.gmra.mrb[0].mxu0 %v3560
      %v3562 = vpop.f32.mrb[0].mxu0
      %v3563 = vadd.f32 %v3491, %v3562
      %v3564 = vpop.f32.mrb[0].mxu0
      %3565 = vdwg.mxu0
      %v3566 = vld [vmem:[%s3] ss:$4 sm:$0x3]
      %3568 = vset.pattern.permute.xlu0 0
      %3569 = vperm.xlu0 %3568, %v3563
      %v3570 = vpop.permute.xlu0 %3569
      %v3573 = vlaneseq
      %v3574 = vshrl.u32 %v3573, 7
      %v3575 = vsub.s32 0, %v3574
      %v3576 = vrot.slane %v3566, %v3575
      %v3577 = vlaneseq
      %v3578 = vshrl.u32 %v3577, 7
      %v3579 = vsub.s32 1, %v3578
      %v3580 = vrot.slane %v3566, %v3579
      %v3583 = vmul.f32 %v3570, %v3576
      %v3584 = vmul.f32 %v3570, %v3580
      %v3585 = vlaneseq
      %v3586 = vshrl.u32 %v3585, 7
      %v3587 = vsub.s32 0, %v3586
      %v3588 = vrot.slane %v3583, %v3587
      %v3589 = vlaneseq
      %v3590 = vshrl.u32 %v3589, 7
      %v3591 = vsub.s32 0, %v3590
      %v3592 = vrot.slane %v3584, %v3591
      %v3593 = vmul.f32 %v3588, %v1090
      %v3594 = vmul.f32 %v3592, %v1091
      %v3595 = vadd.f32 %v3593, 0.0
      %v3596 = vadd.f32 %v3594, 0.0
      %v3597 = vlaneseq
      %v3598 = vshrl.u32 %v3597, 7
      %v3599 = vsub.s32 1, %v3598
      %v3600 = vrot.slane %v3583, %v3599
      %v3601 = vlaneseq
      %v3602 = vshrl.u32 %v3601, 7
      %v3603 = vsub.s32 1, %v3602
      %v3604 = vrot.slane %v3584, %v3603
      %v3605 = vmul.f32 %v3600, %v1275
      %v3606 = vmul.f32 %v3604, %v1276
      %v3607 = vadd.f32 %v3595, %v3605
      %v3608 = vadd.f32 %v3596, %v3606
      %v3609 = vlaneseq
      %v3610 = vshrl.u32 %v3609, 7
      %v3611 = vsub.s32 2, %v3610
      %v3612 = vrot.slane %v3583, %v3611
      %v3613 = vlaneseq
      %v3614 = vshrl.u32 %v3613, 7
      %v3615 = vsub.s32 2, %v3614
      %v3616 = vrot.slane %v3584, %v3615
      %v3617 = vmul.f32 %v3612, %v1460
      %v3618 = vmul.f32 %v3616, %v1461
      %v3619 = vadd.f32 %v3607, %v3617
      %v3620 = vadd.f32 %v3608, %v3618
      %v3621 = vlaneseq
      %v3622 = vshrl.u32 %v3621, 7
      %v3623 = vsub.s32 3, %v3622
      %v3624 = vrot.slane %v3583, %v3623
      %v3625 = vlaneseq
      %v3626 = vshrl.u32 %v3625, 7
      %v3627 = vsub.s32 3, %v3626
      %v3628 = vrot.slane %v3584, %v3627
      %v3629 = vmul.f32 %v3624, %v1645
      %v3630 = vmul.f32 %v3628, %v1646
      %v3631 = vadd.f32 %v3619, %v3629
      %v3632 = vadd.f32 %v3620, %v3630
      %s3633 = scalar_lea.vmem %s3, 1
      %v3634 = vld [vmem:[%s3633] ss:$4 sm:$0x3]
      %3635 = vset.pattern.permute.xlu0 1
      %3636 = vperm.xlu0 %3635, %v3563
      %v3637 = vpop.permute.xlu0 %3636
      %v3640 = vlaneseq
      %v3641 = vshrl.u32 %v3640, 7
      %v3642 = vsub.s32 0, %v3641
      %v3643 = vrot.slane %v3634, %v3642
      %v3644 = vlaneseq
      %v3645 = vshrl.u32 %v3644, 7
      %v3646 = vsub.s32 1, %v3645
      %v3647 = vrot.slane %v3634, %v3646
      %v3650 = vmul.f32 %v3637, %v3643
      %v3651 = vmul.f32 %v3637, %v3647
      %v3652 = vlaneseq
      %v3653 = vshrl.u32 %v3652, 7
      %v3654 = vsub.s32 0, %v3653
      %v3655 = vrot.slane %v3650, %v3654
      %v3656 = vlaneseq
      %v3657 = vshrl.u32 %v3656, 7
      %v3658 = vsub.s32 0, %v3657
      %v3659 = vrot.slane %v3651, %v3658
      %v3660 = vmul.f32 %v3655, %v905
      %v3661 = vmul.f32 %v3659, %v906
      %v3662 = vadd.f32 %v3631, %v3660
      %v3663 = vadd.f32 %v3632, %v3661
      %v3664 = vlaneseq
      %v3665 = vshrl.u32 %v3664, 7
      %v3666 = vsub.s32 1, %v3665
      %v3667 = vrot.slane %v3650, %v3666
      %v3668 = vlaneseq
      %v3669 = vshrl.u32 %v3668, 7
      %v3670 = vsub.s32 1, %v3669
      %v3671 = vrot.slane %v3651, %v3670
      %v3672 = vmul.f32 %v3667, %v1090
      %v3673 = vmul.f32 %v3671, %v1091
      %v3674 = vadd.f32 %v3662, %v3672
      %v3675 = vadd.f32 %v3663, %v3673
      %v3676 = vlaneseq
      %v3677 = vshrl.u32 %v3676, 7
      %v3678 = vsub.s32 2, %v3677
      %v3679 = vrot.slane %v3650, %v3678
      %v3680 = vlaneseq
      %v3681 = vshrl.u32 %v3680, 7
      %v3682 = vsub.s32 2, %v3681
      %v3683 = vrot.slane %v3651, %v3682
      %v3684 = vmul.f32 %v3679, %v1275
      %v3685 = vmul.f32 %v3683, %v1276
      %v3686 = vadd.f32 %v3674, %v3684
      %v3687 = vadd.f32 %v3675, %v3685
      %v3688 = vlaneseq
      %v3689 = vshrl.u32 %v3688, 7
      %v3690 = vsub.s32 3, %v3689
      %v3691 = vrot.slane %v3650, %v3690
      %v3692 = vlaneseq
      %v3693 = vshrl.u32 %v3692, 7
      %v3694 = vsub.s32 3, %v3693
      %v3695 = vrot.slane %v3651, %v3694
      %v3696 = vmul.f32 %v3691, %v1460
      %v3697 = vmul.f32 %v3695, %v1461
      %v3698 = vadd.f32 %v3686, %v3696
      %v3699 = vadd.f32 %v3687, %v3697
      %s3700 = scalar_lea.vmem %s3, 2
      %v3701 = vld [vmem:[%s3700] ss:$4 sm:$0x3]
      %3702 = vset.pattern.permute.xlu0 2
      %3703 = vperm.xlu0 %3702, %v3563
      %v3704 = vpop.permute.xlu0 %3703
      %v3707 = vlaneseq
      %v3708 = vshrl.u32 %v3707, 7
      %v3709 = vsub.s32 0, %v3708
      %v3710 = vrot.slane %v3701, %v3709
      %v3711 = vlaneseq
      %v3712 = vshrl.u32 %v3711, 7
      %v3713 = vsub.s32 1, %v3712
      %v3714 = vrot.slane %v3701, %v3713
      %v3717 = vmul.f32 %v3704, %v3710
      %v3718 = vmul.f32 %v3704, %v3714
      %v3719 = vlaneseq
      %v3720 = vshrl.u32 %v3719, 7
      %v3721 = vsub.s32 0, %v3720
      %v3722 = vrot.slane %v3717, %v3721
      %v3723 = vlaneseq
      %v3724 = vshrl.u32 %v3723, 7
      %v3725 = vsub.s32 0, %v3724
      %v3726 = vrot.slane %v3718, %v3725
      %v3727 = vmul.f32 %v3722, %v720
      %v3728 = vmul.f32 %v3726, %v721
      %v3729 = vadd.f32 %v3698, %v3727
      %v3730 = vadd.f32 %v3699, %v3728
      %v3731 = vlaneseq
      %v3732 = vshrl.u32 %v3731, 7
      %v3733 = vsub.s32 1, %v3732
      %v3734 = vrot.slane %v3717, %v3733
      %v3735 = vlaneseq
      %v3736 = vshrl.u32 %v3735, 7
      %v3737 = vsub.s32 1, %v3736
      %v3738 = vrot.slane %v3718, %v3737
      %v3739 = vmul.f32 %v3734, %v905
      %v3740 = vmul.f32 %v3738, %v906
      %v3741 = vadd.f32 %v3729, %v3739
      %v3742 = vadd.f32 %v3730, %v3740
      %v3743 = vlaneseq
      %v3744 = vshrl.u32 %v3743, 7
      %v3745 = vsub.s32 2, %v3744
      %v3746 = vrot.slane %v3717, %v3745
      %v3747 = vlaneseq
      %v3748 = vshrl.u32 %v3747, 7
      %v3749 = vsub.s32 2, %v3748
      %v3750 = vrot.slane %v3718, %v3749
      %v3751 = vmul.f32 %v3746, %v1090
      %v3752 = vmul.f32 %v3750, %v1091
      %v3753 = vadd.f32 %v3741, %v3751
      %v3754 = vadd.f32 %v3742, %v3752
      %v3755 = vlaneseq
      %v3756 = vshrl.u32 %v3755, 7
      %v3757 = vsub.s32 3, %v3756
      %v3758 = vrot.slane %v3717, %v3757
      %v3759 = vlaneseq
      %v3760 = vshrl.u32 %v3759, 7
      %v3761 = vsub.s32 3, %v3760
      %v3762 = vrot.slane %v3718, %v3761
      %v3763 = vmul.f32 %v3758, %v1275
      %v3764 = vmul.f32 %v3762, %v1276
      %v3765 = vadd.f32 %v3753, %v3763
      %v3766 = vadd.f32 %v3754, %v3764
      %s3767 = scalar_lea.vmem %s3, 3
      %v3768 = vld [vmem:[%s3767] ss:$4 sm:$0x3]
      %3769 = vset.pattern.permute.xlu0 3
      %3770 = vperm.xlu0 %3769, %v3563
      %v3771 = vpop.permute.xlu0 %3770
      %v3774 = vlaneseq
      %v3775 = vshrl.u32 %v3774, 7
      %v3776 = vsub.s32 0, %v3775
      %v3777 = vrot.slane %v3768, %v3776
      %v3778 = vlaneseq
      %v3779 = vshrl.u32 %v3778, 7
      %v3780 = vsub.s32 1, %v3779
      %v3781 = vrot.slane %v3768, %v3780
      %v3784 = vmul.f32 %v3771, %v3777
      %v3785 = vmul.f32 %v3771, %v3781
      %v3786 = vlaneseq
      %v3787 = vshrl.u32 %v3786, 7
      %v3788 = vsub.s32 0, %v3787
      %v3789 = vrot.slane %v3784, %v3788
      %v3790 = vlaneseq
      %v3791 = vshrl.u32 %v3790, 7
      %v3792 = vsub.s32 0, %v3791
      %v3793 = vrot.slane %v3785, %v3792
      %v3794 = vmul.f32 %v3789, %v536
      %v3795 = vmul.f32 %v3793, %v537
      %v3796 = vadd.f32 %v3765, %v3794
      %v3797 = vadd.f32 %v3766, %v3795
      %v3798 = vlaneseq
      %v3799 = vshrl.u32 %v3798, 7
      %v3800 = vsub.s32 1, %v3799
      %v3801 = vrot.slane %v3784, %v3800
      %v3802 = vlaneseq
      %v3803 = vshrl.u32 %v3802, 7
      %v3804 = vsub.s32 1, %v3803
      %v3805 = vrot.slane %v3785, %v3804
      %v3806 = vmul.f32 %v3801, %v720
      %v3807 = vmul.f32 %v3805, %v721
      %v3808 = vadd.f32 %v3796, %v3806
      %v3809 = vadd.f32 %v3797, %v3807
      %v3810 = vlaneseq
      %v3811 = vshrl.u32 %v3810, 7
      %v3812 = vsub.s32 2, %v3811
      %v3813 = vrot.slane %v3784, %v3812
      %v3814 = vlaneseq
      %v3815 = vshrl.u32 %v3814, 7
      %v3816 = vsub.s32 2, %v3815
      %v3817 = vrot.slane %v3785, %v3816
      %v3818 = vmul.f32 %v3813, %v905
      %v3819 = vmul.f32 %v3817, %v906
      %v3820 = vadd.f32 %v3808, %v3818
      %v3821 = vadd.f32 %v3809, %v3819
      %v3822 = vlaneseq
      %v3823 = vshrl.u32 %v3822, 7
      %v3824 = vsub.s32 3, %v3823
      %v3825 = vrot.slane %v3784, %v3824
      %v3826 = vlaneseq
      %v3827 = vshrl.u32 %v3826, 7
      %v3828 = vsub.s32 3, %v3827
      %v3829 = vrot.slane %v3785, %v3828
      %v3830 = vmul.f32 %v3825, %v1090
      %v3831 = vmul.f32 %v3829, %v1091
      %v3832 = vadd.f32 %v3820, %v3830
      %v3833 = vadd.f32 %v3821, %v3831
      %v3835 = vsel %vm1745, %v1742, 0
      %v3838 = vsel %vm1749, %v1740, 0
      %v3841 = vsel %vm1749, %v1741, 0
      %v3843 = vand.u32 %v3841, 4294901760
      %3844 = vmatprep.subr.mxu0 %v3843
      %v3845 = vand.u32 %v3838, 4294901760
      %3846 = vmatpush1.msra.mxu0 %v3845
      %3847 = vmatprep.subr.mxu0 0.0
      %3848 = vmatpush1.msra.mxu0 0.0
      %3849 = vmatprep.subr.mxu0 0.0
      %3850 = vmatpush1.msra.mxu0 0.0
      %3851 = vmatprep.subr.mxu0 0.0
      %3852 = vmatpush1.msra.mxu0 0.0
      %3853 = vmatprep.subr.mxu0 0.0
      %3854 = vmatpush1.msra.mxu0 0.0
      %3855 = vmatprep.subr.mxu0 0.0
      %3856 = vmatpush1.msra.mxu0 0.0
      %3857 = vmatprep.subr.mxu0 0.0
      %3858 = vmatpush1.msra.mxu0 0.0
      %3859 = vmatprep.subr.mxu0 0.0
      %3860 = vmatpush1.msra.mxu0 0.0
      %3861 = vmatprep.subr.mxu0 0.0
      %3862 = vmatpush1.msra.mxu0 0.0
      %3863 = vmatprep.subr.mxu0 0.0
      %3864 = vmatpush1.msra.mxu0 0.0
      %3865 = vmatprep.subr.mxu0 0.0
      %3866 = vmatpush1.msra.mxu0 0.0
      %3867 = vmatprep.subr.mxu0 0.0
      %3868 = vmatpush1.msra.mxu0 0.0
      %3869 = vmatprep.subr.mxu0 0.0
      %3870 = vmatpush1.msra.mxu0 0.0
      %3871 = vmatprep.subr.mxu0 0.0
      %3872 = vmatpush1.msra.mxu0 0.0
      %3873 = vmatprep.subr.mxu0 0.0
      %3874 = vmatpush1.msra.mxu0 0.0
      %3875 = vmatprep.subr.mxu0 0.0
      %3876 = vmatpush1.msra.mxu0 0.0
      %3877 = vmatprep.subr.mxu0 0.0
      %3878 = vmatpush1.msra.mxu0 0.0
      %3879 = vmatprep.subr.mxu0 0.0
      %3880 = vmatpush1.msra.mxu0 0.0
      %3881 = vmatprep.subr.mxu0 0.0
      %3882 = vmatpush1.msra.mxu0 0.0
      %3883 = vmatprep.subr.mxu0 0.0
      %3884 = vmatpush1.msra.mxu0 0.0
      %3885 = vmatprep.subr.mxu0 0.0
      %3886 = vmatpush1.msra.mxu0 0.0
      %3887 = vmatprep.subr.mxu0 0.0
      %3888 = vmatpush1.msra.mxu0 0.0
      %3889 = vmatprep.subr.mxu0 0.0
      %3890 = vmatpush1.msra.mxu0 0.0
      %3891 = vmatprep.subr.mxu0 0.0
      %3892 = vmatpush1.msra.mxu0 0.0
      %3893 = vmatprep.subr.mxu0 0.0
      %3894 = vmatpush1.msra.mxu0 0.0
      %3895 = vmatprep.subr.mxu0 0.0
      %3896 = vmatpush1.msra.mxu0 0.0
      %3897 = vmatprep.subr.mxu0 0.0
      %3898 = vmatpush1.msra.mxu0 0.0
      %3899 = vmatprep.subr.mxu0 0.0
      %3900 = vmatpush1.msra.mxu0 0.0
      %3901 = vmatprep.subr.mxu0 0.0
      %3902 = vmatpush1.msra.mxu0 0.0
      %3903 = vmatprep.subr.mxu0 0.0
      %3904 = vmatpush1.msra.mxu0 0.0
      %3905 = vmatprep.subr.mxu0 0.0
      %3906 = vmatpush1.msra.mxu0 0.0
      %3907 = vmatprep.subr.mxu0 0.0
      %3908 = vmatpush1.msra.mxu0 0.0
      %3909 = vmatprep.mubr.f32.mxu0 0.0
      %v3910 = vand.u32 %v3835, 4294901760
      %v3911 = vsub.f32 %v3835, %v3910
      %v3912 = vand.u32 %v3911, 4294901760
      %v3913 = vsub.f32 %v3911, %v3912
      %v3914 = vand.u32 %v3913, 4294901760
      %3915 = vmatmul.mubr.f32.gmra.mrb[0].mxu0 %v3914
      %v3916 = vpop.f32.mrb[0].mxu0
      %v3917 = vadd.f32 %v3832, %v3916
      %v3918 = vpop.f32.mrb[0].mxu0
      %v3919 = vadd.f32 %v3833, %v3918
      %3920 = vdwg.mxu0
      %v3921 = vand.u32 %v3841, 4294901760
      %v3922 = vsub.f32 %v3841, %v3921
      %v3923 = vand.u32 %v3922, 4294901760
      %v3924 = vsub.f32 %v3922, %v3923
      %v3925 = vand.u32 %v3924, 4294901760
      %3926 = vmatprep.subr.mxu0 %v3925
      %v3927 = vand.u32 %v3838, 4294901760
      %v3928 = vsub.f32 %v3838, %v3927
      %v3929 = vand.u32 %v3928, 4294901760
      %v3930 = vsub.f32 %v3928, %v3929
      %v3931 = vand.u32 %v3930, 4294901760
      %3932 = vmatpush1.msra.mxu0 %v3931
      %3933 = vmatprep.subr.mxu0 0.0
      %3934 = vmatpush1.msra.mxu0 0.0
      %3935 = vmatprep.subr.mxu0 0.0
      %3936 = vmatpush1.msra.mxu0 0.0
      %3937 = vmatprep.subr.mxu0 0.0
      %3938 = vmatpush1.msra.mxu0 0.0
      %3939 = vmatprep.subr.mxu0 0.0
      %3940 = vmatpush1.msra.mxu0 0.0
      %3941 = vmatprep.subr.mxu0 0.0
      %3942 = vmatpush1.msra.mxu0 0.0
      %3943 = vmatprep.subr.mxu0 0.0
      %3944 = vmatpush1.msra.mxu0 0.0
      %3945 = vmatprep.subr.mxu0 0.0
      %3946 = vmatpush1.msra.mxu0 0.0
      %3947 = vmatprep.subr.mxu0 0.0
      %3948 = vmatpush1.msra.mxu0 0.0
      %3949 = vmatprep.subr.mxu0 0.0
      %3950 = vmatpush1.msra.mxu0 0.0
      %3951 = vmatprep.subr.mxu0 0.0
      %3952 = vmatpush1.msra.mxu0 0.0
      %3953 = vmatprep.subr.mxu0 0.0
      %3954 = vmatpush1.msra.mxu0 0.0
      %3955 = vmatprep.subr.mxu0 0.0
      %3956 = vmatpush1.msra.mxu0 0.0
      %3957 = vmatprep.subr.mxu0 0.0
      %3958 = vmatpush1.msra.mxu0 0.0
      %3959 = vmatprep.subr.mxu0 0.0
      %3960 = vmatpush1.msra.mxu0 0.0
      %3961 = vmatprep.subr.mxu0 0.0
      %3962 = vmatpush1.msra.mxu0 0.0
      %3963 = vmatprep.subr.mxu0 0.0
      %3964 = vmatpush1.msra.mxu0 0.0
      %3965 = vmatprep.subr.mxu0 0.0
      %3966 = vmatpush1.msra.mxu0 0.0
      %3967 = vmatprep.subr.mxu0 0.0
      %3968 = vmatpush1.msra.mxu0 0.0
      %3969 = vmatprep.subr.mxu0 0.0
      %3970 = vmatpush1.msra.mxu0 0.0
      %3971 = vmatprep.subr.mxu0 0.0
      %3972 = vmatpush1.msra.mxu0 0.0
      %3973 = vmatprep.subr.mxu0 0.0
      %3974 = vmatpush1.msra.mxu0 0.0
      %3975 = vmatprep.subr.mxu0 0.0
      %3976 = vmatpush1.msra.mxu0 0.0
      %3977 = vmatprep.subr.mxu0 0.0
      %3978 = vmatpush1.msra.mxu0 0.0
      %3979 = vmatprep.subr.mxu0 0.0
      %3980 = vmatpush1.msra.mxu0 0.0
      %3981 = vmatprep.subr.mxu0 0.0
      %3982 = vmatpush1.msra.mxu0 0.0
      %3983 = vmatprep.subr.mxu0 0.0
      %3984 = vmatpush1.msra.mxu0 0.0
      %3985 = vmatprep.subr.mxu0 0.0
      %3986 = vmatpush1.msra.mxu0 0.0
      %3987 = vmatprep.subr.mxu0 0.0
      %3988 = vmatpush1.msra.mxu0 0.0
      %3989 = vmatprep.subr.mxu0 0.0
      %3990 = vmatpush1.msra.mxu0 0.0
      %3991 = vmatprep.subr.mxu0 0.0
      %3992 = vmatpush1.msra.mxu0 0.0
      %3993 = vmatprep.subr.mxu0 0.0
      %3994 = vmatpush1.msra.mxu0 0.0
      %3995 = vmatprep.mubr.f32.mxu0 0.0
      %v3996 = vand.u32 %v3835, 4294901760
      %3997 = vmatmul.mubr.f32.gmra.mrb[0].mxu0 %v3996
      %v3998 = vpop.f32.mrb[0].mxu0
      %v3999 = vadd.f32 %v3917, %v3998
      %v4000 = vpop.f32.mrb[0].mxu0
      %v4001 = vadd.f32 %v3919, %v4000
      %4002 = vdwg.mxu0
      %v4003 = vand.u32 %v3841, 4294901760
      %v4004 = vsub.f32 %v3841, %v4003
      %4005 = vmatprep.subr.mxu0 %v4004
      %v4006 = vand.u32 %v3838, 4294901760
      %v4007 = vsub.f32 %v3838, %v4006
      %4008 = vmatpush1.msra.mxu0 %v4007
      %4009 = vmatprep.subr.mxu0 0.0
      %4010 = vmatpush1.msra.mxu0 0.0
      %4011 = vmatprep.subr.mxu0 0.0
      %4012 = vmatpush1.msra.mxu0 0.0
      %4013 = vmatprep.subr.mxu0 0.0
      %4014 = vmatpush1.msra.mxu0 0.0
      %4015 = vmatprep.subr.mxu0 0.0
      %4016 = vmatpush1.msra.mxu0 0.0
      %4017 = vmatprep.subr.mxu0 0.0
      %4018 = vmatpush1.msra.mxu0 0.0
      %4019 = vmatprep.subr.mxu0 0.0
      %4020 = vmatpush1.msra.mxu0 0.0
      %4021 = vmatprep.subr.mxu0 0.0
      %4022 = vmatpush1.msra.mxu0 0.0
      %4023 = vmatprep.subr.mxu0 0.0
      %4024 = vmatpush1.msra.mxu0 0.0
      %4025 = vmatprep.subr.mxu0 0.0
      %4026 = vmatpush1.msra.mxu0 0.0
      %4027 = vmatprep.subr.mxu0 0.0
      %4028 = vmatpush1.msra.mxu0 0.0
      %4029 = vmatprep.subr.mxu0 0.0
      %4030 = vmatpush1.msra.mxu0 0.0
      %4031 = vmatprep.subr.mxu0 0.0
      %4032 = vmatpush1.msra.mxu0 0.0
      %4033 = vmatprep.subr.mxu0 0.0
      %4034 = vmatpush1.msra.mxu0 0.0
      %4035 = vmatprep.subr.mxu0 0.0
      %4036 = vmatpush1.msra.mxu0 0.0
      %4037 = vmatprep.subr.mxu0 0.0
      %4038 = vmatpush1.msra.mxu0 0.0
      %4039 = vmatprep.subr.mxu0 0.0
      %4040 = vmatpush1.msra.mxu0 0.0
      %4041 = vmatprep.subr.mxu0 0.0
      %4042 = vmatpush1.msra.mxu0 0.0
      %4043 = vmatprep.subr.mxu0 0.0
      %4044 = vmatpush1.msra.mxu0 0.0
      %4045 = vmatprep.subr.mxu0 0.0
      %4046 = vmatpush1.msra.mxu0 0.0
      %4047 = vmatprep.subr.mxu0 0.0
      %4048 = vmatpush1.msra.mxu0 0.0
      %4049 = vmatprep.subr.mxu0 0.0
      %4050 = vmatpush1.msra.mxu0 0.0
      %4051 = vmatprep.subr.mxu0 0.0
      %4052 = vmatpush1.msra.mxu0 0.0
      %4053 = vmatprep.subr.mxu0 0.0
      %4054 = vmatpush1.msra.mxu0 0.0
      %4055 = vmatprep.subr.mxu0 0.0
      %4056 = vmatpush1.msra.mxu0 0.0
      %4057 = vmatprep.subr.mxu0 0.0
      %4058 = vmatpush1.msra.mxu0 0.0
      %4059 = vmatprep.subr.mxu0 0.0
      %4060 = vmatpush1.msra.mxu0 0.0
      %4061 = vmatprep.subr.mxu0 0.0
      %4062 = vmatpush1.msra.mxu0 0.0
      %4063 = vmatprep.subr.mxu0 0.0
      %4064 = vmatpush1.msra.mxu0 0.0
      %4065 = vmatprep.subr.mxu0 0.0
      %4066 = vmatpush1.msra.mxu0 0.0
      %4067 = vmatprep.subr.mxu0 0.0
      %4068 = vmatpush1.msra.mxu0 0.0
      %4069 = vmatprep.subr.mxu0 0.0
      %4070 = vmatpush1.msra.mxu0 0.0
      %4071 = vmatprep.mubr.f32.mxu0 0.0
      %v4072 = vand.u32 %v3835, 4294901760
      %v4073 = vsub.f32 %v3835, %v4072
      %4074 = vmatmul.mubr.f32.gmra.mrb[0].mxu0 %v4073
      %v4075 = vpop.f32.mrb[0].mxu0
      %v4076 = vadd.f32 %v3999, %v4075
      %v4077 = vpop.f32.mrb[0].mxu0
      %v4078 = vadd.f32 %v4001, %v4077
      %4079 = vdwg.mxu0
      %v4080 = vand.u32 %v3841, 4294901760
      %4081 = vmatprep.subr.mxu0 %v4080
      %v4082 = vand.u32 %v3838, 4294901760
      %4083 = vmatpush1.msra.mxu0 %v4082
      %4084 = vmatprep.subr.mxu0 0.0
      %4085 = vmatpush1.msra.mxu0 0.0
      %4086 = vmatprep.subr.mxu0 0.0
      %4087 = vmatpush1.msra.mxu0 0.0
      %4088 = vmatprep.subr.mxu0 0.0
      %4089 = vmatpush1.msra.mxu0 0.0
      %4090 = vmatprep.subr.mxu0 0.0
      %4091 = vmatpush1.msra.mxu0 0.0
      %4092 = vmatprep.subr.mxu0 0.0
      %4093 = vmatpush1.msra.mxu0 0.0
      %4094 = vmatprep.subr.mxu0 0.0
      %4095 = vmatpush1.msra.mxu0 0.0
      %4096 = vmatprep.subr.mxu0 0.0
      %4097 = vmatpush1.msra.mxu0 0.0
      %4098 = vmatprep.subr.mxu0 0.0
      %4099 = vmatpush1.msra.mxu0 0.0
      %4100 = vmatprep.subr.mxu0 0.0
      %4101 = vmatpush1.msra.mxu0 0.0
      %4102 = vmatprep.subr.mxu0 0.0
      %4103 = vmatpush1.msra.mxu0 0.0
      %4104 = vmatprep.subr.mxu0 0.0
      %4105 = vmatpush1.msra.mxu0 0.0
      %4106 = vmatprep.subr.mxu0 0.0
      %4107 = vmatpush1.msra.mxu0 0.0
      %4108 = vmatprep.subr.mxu0 0.0
      %4109 = vmatpush1.msra.mxu0 0.0
      %4110 = vmatprep.subr.mxu0 0.0
      %4111 = vmatpush1.msra.mxu0 0.0
      %4112 = vmatprep.subr.mxu0 0.0
      %4113 = vmatpush1.msra.mxu0 0.0
      %4114 = vmatprep.subr.mxu0 0.0
      %4115 = vmatpush1.msra.mxu0 0.0
      %4116 = vmatprep.subr.mxu0 0.0
      %4117 = vmatpush1.msra.mxu0 0.0
      %4118 = vmatprep.subr.mxu0 0.0
      %4119 = vmatpush1.msra.mxu0 0.0
      %4120 = vmatprep.subr.mxu0 0.0
      %4121 = vmatpush1.msra.mxu0 0.0
      %4122 = vmatprep.subr.mxu0 0.0
      %4123 = vmatpush1.msra.mxu0 0.0
      %4124 = vmatprep.subr.mxu0 0.0
      %4125 = vmatpush1.msra.mxu0 0.0
      %4126 = vmatprep.subr.mxu0 0.0
      %4127 = vmatpush1.msra.mxu0 0.0
      %4128 = vmatprep.subr.mxu0 0.0
      %4129 = vmatpush1.msra.mxu0 0.0
      %4130 = vmatprep.subr.mxu0 0.0
      %4131 = vmatpush1.msra.mxu0 0.0
      %4132 = vmatprep.subr.mxu0 0.0
      %4133 = vmatpush1.msra.mxu0 0.0
      %4134 = vmatprep.subr.mxu0 0.0
      %4135 = vmatpush1.msra.mxu0 0.0
      %4136 = vmatprep.subr.mxu0 0.0
      %4137 = vmatpush1.msra.mxu0 0.0
      %4138 = vmatprep.subr.mxu0 0.0
      %4139 = vmatpush1.msra.mxu0 0.0
      %4140 = vmatprep.subr.mxu0 0.0
      %4141 = vmatpush1.msra.mxu0 0.0
      %4142 = vmatprep.subr.mxu0 0.0
      %4143 = vmatpush1.msra.mxu0 0.0
      %4144 = vmatprep.subr.mxu0 0.0
      %4145 = vmatpush1.msra.mxu0 0.0
      %4146 = vmatprep.mubr.f32.mxu0 0.0
      %v4147 = vand.u32 %v3835, 4294901760
      %v4148 = vsub.f32 %v3835, %v4147
      %v4149 = vand.u32 %v4148, 4294901760
      %4150 = vmatmul.mubr.f32.gmra.mrb[0].mxu0 %v4149
      %v4151 = vpop.f32.mrb[0].mxu0
      %v4152 = vadd.f32 %v4076, %v4151
      %v4153 = vpop.f32.mrb[0].mxu0
      %v4154 = vadd.f32 %v4078, %v4153
      %4155 = vdwg.mxu0
      %v4156 = vand.u32 %v3841, 4294901760
      %v4157 = vsub.f32 %v3841, %v4156
      %v4158 = vand.u32 %v4157, 4294901760
      %4159 = vmatprep.subr.mxu0 %v4158
      %v4160 = vand.u32 %v3838, 4294901760
      %v4161 = vsub.f32 %v3838, %v4160
      %v4162 = vand.u32 %v4161, 4294901760
      %4163 = vmatpush1.msra.mxu0 %v4162
      %4164 = vmatprep.subr.mxu0 0.0
      %4165 = vmatpush1.msra.mxu0 0.0
      %4166 = vmatprep.subr.mxu0 0.0
      %4167 = vmatpush1.msra.mxu0 0.0
      %4168 = vmatprep.subr.mxu0 0.0
      %4169 = vmatpush1.msra.mxu0 0.0
      %4170 = vmatprep.subr.mxu0 0.0
      %4171 = vmatpush1.msra.mxu0 0.0
      %4172 = vmatprep.subr.mxu0 0.0
      %4173 = vmatpush1.msra.mxu0 0.0
      %4174 = vmatprep.subr.mxu0 0.0
      %4175 = vmatpush1.msra.mxu0 0.0
      %4176 = vmatprep.subr.mxu0 0.0
      %4177 = vmatpush1.msra.mxu0 0.0
      %4178 = vmatprep.subr.mxu0 0.0
      %4179 = vmatpush1.msra.mxu0 0.0
      %4180 = vmatprep.subr.mxu0 0.0
      %4181 = vmatpush1.msra.mxu0 0.0
      %4182 = vmatprep.subr.mxu0 0.0
      %4183 = vmatpush1.msra.mxu0 0.0
      %4184 = vmatprep.subr.mxu0 0.0
      %4185 = vmatpush1.msra.mxu0 0.0
      %4186 = vmatprep.subr.mxu0 0.0
      %4187 = vmatpush1.msra.mxu0 0.0
      %4188 = vmatprep.subr.mxu0 0.0
      %4189 = vmatpush1.msra.mxu0 0.0
      %4190 = vmatprep.subr.mxu0 0.0
      %4191 = vmatpush1.msra.mxu0 0.0
      %4192 = vmatprep.subr.mxu0 0.0
      %4193 = vmatpush1.msra.mxu0 0.0
      %4194 = vmatprep.subr.mxu0 0.0
      %4195 = vmatpush1.msra.mxu0 0.0
      %4196 = vmatprep.subr.mxu0 0.0
      %4197 = vmatpush1.msra.mxu0 0.0
      %4198 = vmatprep.subr.mxu0 0.0
      %4199 = vmatpush1.msra.mxu0 0.0
      %4200 = vmatprep.subr.mxu0 0.0
      %4201 = vmatpush1.msra.mxu0 0.0
      %4202 = vmatprep.subr.mxu0 0.0
      %4203 = vmatpush1.msra.mxu0 0.0
      %4204 = vmatprep.subr.mxu0 0.0
      %4205 = vmatpush1.msra.mxu0 0.0
      %4206 = vmatprep.subr.mxu0 0.0
      %4207 = vmatpush1.msra.mxu0 0.0
      %4208 = vmatprep.subr.mxu0 0.0
      %4209 = vmatpush1.msra.mxu0 0.0
      %4210 = vmatprep.subr.mxu0 0.0
      %4211 = vmatpush1.msra.mxu0 0.0
      %4212 = vmatprep.subr.mxu0 0.0
      %4213 = vmatpush1.msra.mxu0 0.0
      %4214 = vmatprep.subr.mxu0 0.0
      %4215 = vmatpush1.msra.mxu0 0.0
      %4216 = vmatprep.subr.mxu0 0.0
      %4217 = vmatpush1.msra.mxu0 0.0
      %4218 = vmatprep.subr.mxu0 0.0
      %4219 = vmatpush1.msra.mxu0 0.0
      %4220 = vmatprep.subr.mxu0 0.0
      %4221 = vmatpush1.msra.mxu0 0.0
      %4222 = vmatprep.subr.mxu0 0.0
      %4223 = vmatpush1.msra.mxu0 0.0
      %4224 = vmatprep.subr.mxu0 0.0
      %4225 = vmatpush1.msra.mxu0 0.0
      %4226 = vmatprep.mubr.f32.mxu0 0.0
      %v4227 = vand.u32 %v3835, 4294901760
      %4228 = vmatmul.mubr.f32.gmra.mrb[0].mxu0 %v4227
      %v4229 = vpop.f32.mrb[0].mxu0
      %v4230 = vadd.f32 %v4152, %v4229
      %v4231 = vpop.f32.mrb[0].mxu0
      %v4232 = vadd.f32 %v4154, %v4231
      %4233 = vdwg.mxu0
      %v4234 = vand.u32 %v3841, 4294901760
      %4235 = vmatprep.subr.mxu0 %v4234
      %v4236 = vand.u32 %v3838, 4294901760
      %4237 = vmatpush1.msra.mxu0 %v4236
      %4238 = vmatprep.subr.mxu0 0.0
      %4239 = vmatpush1.msra.mxu0 0.0
      %4240 = vmatprep.subr.mxu0 0.0
      %4241 = vmatpush1.msra.mxu0 0.0
      %4242 = vmatprep.subr.mxu0 0.0
      %4243 = vmatpush1.msra.mxu0 0.0
      %4244 = vmatprep.subr.mxu0 0.0
      %4245 = vmatpush1.msra.mxu0 0.0
      %4246 = vmatprep.subr.mxu0 0.0
      %4247 = vmatpush1.msra.mxu0 0.0
      %4248 = vmatprep.subr.mxu0 0.0
      %4249 = vmatpush1.msra.mxu0 0.0
      %4250 = vmatprep.subr.mxu0 0.0
      %4251 = vmatpush1.msra.mxu0 0.0
      %4252 = vmatprep.subr.mxu0 0.0
      %4253 = vmatpush1.msra.mxu0 0.0
      %4254 = vmatprep.subr.mxu0 0.0
      %4255 = vmatpush1.msra.mxu0 0.0
      %4256 = vmatprep.subr.mxu0 0.0
      %4257 = vmatpush1.msra.mxu0 0.0
      %4258 = vmatprep.subr.mxu0 0.0
      %4259 = vmatpush1.msra.mxu0 0.0
      %4260 = vmatprep.subr.mxu0 0.0
      %4261 = vmatpush1.msra.mxu0 0.0
      %4262 = vmatprep.subr.mxu0 0.0
      %4263 = vmatpush1.msra.mxu0 0.0
      %4264 = vmatprep.subr.mxu0 0.0
      %4265 = vmatpush1.msra.mxu0 0.0
      %4266 = vmatprep.subr.mxu0 0.0
      %4267 = vmatpush1.msra.mxu0 0.0
      %4268 = vmatprep.subr.mxu0 0.0
      %4269 = vmatpush1.msra.mxu0 0.0
      %4270 = vmatprep.subr.mxu0 0.0
      %4271 = vmatpush1.msra.mxu0 0.0
      %4272 = vmatprep.subr.mxu0 0.0
      %4273 = vmatpush1.msra.mxu0 0.0
      %4274 = vmatprep.subr.mxu0 0.0
      %4275 = vmatpush1.msra.mxu0 0.0
      %4276 = vmatprep.subr.mxu0 0.0
      %4277 = vmatpush1.msra.mxu0 0.0
      %4278 = vmatprep.subr.mxu0 0.0
      %4279 = vmatpush1.msra.mxu0 0.0
      %4280 = vmatprep.subr.mxu0 0.0
      %4281 = vmatpush1.msra.mxu0 0.0
      %4282 = vmatprep.subr.mxu0 0.0
      %4283 = vmatpush1.msra.mxu0 0.0
      %4284 = vmatprep.subr.mxu0 0.0
      %4285 = vmatpush1.msra.mxu0 0.0
      %4286 = vmatprep.subr.mxu0 0.0
      %4287 = vmatpush1.msra.mxu0 0.0
      %4288 = vmatprep.subr.mxu0 0.0
      %4289 = vmatpush1.msra.mxu0 0.0
      %4290 = vmatprep.subr.mxu0 0.0
      %4291 = vmatpush1.msra.mxu0 0.0
      %4292 = vmatprep.subr.mxu0 0.0
      %4293 = vmatpush1.msra.mxu0 0.0
      %4294 = vmatprep.subr.mxu0 0.0
      %4295 = vmatpush1.msra.mxu0 0.0
      %4296 = vmatprep.subr.mxu0 0.0
      %4297 = vmatpush1.msra.mxu0 0.0
      %4298 = vmatprep.subr.mxu0 0.0
      %4299 = vmatpush1.msra.mxu0 0.0
      %4300 = vmatprep.mubr.f32.mxu0 0.0
      %v4301 = vand.u32 %v3835, 4294901760
      %4302 = vmatmul.mubr.f32.gmra.mrb[0].mxu0 %v4301
      %v4303 = vpop.f32.mrb[0].mxu0
      %v4304 = vadd.f32 %v4230, %v4303
      %v4305 = vpop.f32.mrb[0].mxu0
      %v4306 = vadd.f32 %v4232, %v4305
      %4307 = vdwg.mxu0
      %v4308 = vsel %vm1749, %v4304, 0.0
      %v4309 = vsel %vm1749, %v4306, 0.0
      %v4310 = vadd.f32 %v4308, %v4309
      %4311 = vadd.xlane.f32.xlu0 %v4310
      %v4312 = vpop.xlane.xlu0 %4311
      %v4313 = vrot.slane %v4312, 4
      %v4314 = vadd.f32 %v4312, %v4313
      %v4315 = vrot.slane %v4314, 2
      %v4316 = vadd.f32 %v4314, %v4315
      %v4317 = vrot.slane %v4316, 1
      %v4318 = vadd.f32 %v4316, %v4317
      %s4319 = vtos %v4318
      %v4320 = vstv %s4319
      %v4321 = vmul.f32 %v4320, 0.0009765625
      %v4322 = vsub.f32 %v4304, %v4321
      %v4323 = vsub.f32 %v4306, %v4321
      %v4324 = vmul.f32 %v4322, %v4322
      %v4325 = vmul.f32 %v4323, %v4323
      %v4326 = vsel %vm1749, %v4324, 0.0
      %v4327 = vsel %vm1749, %v4325, 0.0
      %v4328 = vadd.f32 %v4326, %v4327
      %4329 = vadd.xlane.f32.xlu0 %v4328
      %v4330 = vpop.xlane.xlu0 %4329
      %v4331 = vrot.slane %v4330, 4
      %v4332 = vadd.f32 %v4330, %v4331
      %v4333 = vrot.slane %v4332, 2
      %v4334 = vadd.f32 %v4332, %v4333
      %v4335 = vrot.slane %v4334, 1
      %v4336 = vadd.f32 %v4334, %v4335
      %s4337 = vtos %v4336
      %v4338 = vstv %s4337
      %v4339 = vmul.f32 %v4338, 0.0009765625
      %v4340 = vadd.f32 %v4339, 1e-05
      %v4341 = vrsqrt.pop %v4340
      %v4342 = vmul.f32 %v4322, %v4341
      %v4343 = vmul.f32 %v4323, %v4341
      %v4344 = vld [vmem:[%s9] sm:$0xff]
      %v4345 = vld [vmem:[%s9 + $0x8] sm:$0xff]
      %v4346 = vld [vmem:[%s10] sm:$0xff]
      %v4347 = vld [vmem:[%s10 + $0x8] sm:$0xff]
      %4349 = vset.pattern.permute.xlu0 0
      %4350 = vperm.xlu0 %4349, %v4346
      %v4351 = vpop.permute.xlu0 %4350
      %4354 = vset.pattern.permute.xlu0 0
      %4355 = vperm.xlu0 %4354, %v4347
      %v4356 = vpop.permute.xlu0 %4355
      %v4359 = vsel %vm1745, %v4344, 0
      %v4362 = vsel %vm1745, %v4345, 0
      %v4365 = vsel %vm1749, %v4342, 0
      %v4368 = vsel %vm1749, %v4343, 0
      %v4370 = vand.u32 %v4368, 4294901760
      %4371 = vmatprep.subr.mxu0 %v4370
      %v4372 = vand.u32 %v4365, 4294901760
      %4373 = vmatpush1.msra.mxu0 %v4372
      %4374 = vmatprep.subr.mxu0 0.0
      %4375 = vmatpush1.msra.mxu0 0.0
      %4376 = vmatprep.subr.mxu0 0.0
      %4377 = vmatpush1.msra.mxu0 0.0
      %4378 = vmatprep.subr.mxu0 0.0
      %4379 = vmatpush1.msra.mxu0 0.0
      %4380 = vmatprep.subr.mxu0 0.0
      %4381 = vmatpush1.msra.mxu0 0.0
      %4382 = vmatprep.subr.mxu0 0.0
      %4383 = vmatpush1.msra.mxu0 0.0
      %4384 = vmatprep.subr.mxu0 0.0
      %4385 = vmatpush1.msra.mxu0 0.0
      %4386 = vmatprep.subr.mxu0 0.0
      %4387 = vmatpush1.msra.mxu0 0.0
      %4388 = vmatprep.subr.mxu0 0.0
      %4389 = vmatpush1.msra.mxu0 0.0
      %4390 = vmatprep.subr.mxu0 0.0
      %4391 = vmatpush1.msra.mxu0 0.0
      %4392 = vmatprep.subr.mxu0 0.0
      %4393 = vmatpush1.msra.mxu0 0.0
      %4394 = vmatprep.subr.mxu0 0.0
      %4395 = vmatpush1.msra.mxu0 0.0
      %4396 = vmatprep.subr.mxu0 0.0
      %4397 = vmatpush1.msra.mxu0 0.0
      %4398 = vmatprep.subr.mxu0 0.0
      %4399 = vmatpush1.msra.mxu0 0.0
      %4400 = vmatprep.subr.mxu0 0.0
      %4401 = vmatpush1.msra.mxu0 0.0
      %4402 = vmatprep.subr.mxu0 0.0
      %4403 = vmatpush1.msra.mxu0 0.0
      %4404 = vmatprep.subr.mxu0 0.0
      %4405 = vmatpush1.msra.mxu0 0.0
      %4406 = vmatprep.subr.mxu0 0.0
      %4407 = vmatpush1.msra.mxu0 0.0
      %4408 = vmatprep.subr.mxu0 0.0
      %4409 = vmatpush1.msra.mxu0 0.0
      %4410 = vmatprep.subr.mxu0 0.0
      %4411 = vmatpush1.msra.mxu0 0.0
      %4412 = vmatprep.subr.mxu0 0.0
      %4413 = vmatpush1.msra.mxu0 0.0
      %4414 = vmatprep.subr.mxu0 0.0
      %4415 = vmatpush1.msra.mxu0 0.0
      %4416 = vmatprep.subr.mxu0 0.0
      %4417 = vmatpush1.msra.mxu0 0.0
      %4418 = vmatprep.subr.mxu0 0.0
      %4419 = vmatpush1.msra.mxu0 0.0
      %4420 = vmatprep.subr.mxu0 0.0
      %4421 = vmatpush1.msra.mxu0 0.0
      %4422 = vmatprep.subr.mxu0 0.0
      %4423 = vmatpush1.msra.mxu0 0.0
      %4424 = vmatprep.subr.mxu0 0.0
      %4425 = vmatpush1.msra.mxu0 0.0
      %4426 = vmatprep.subr.mxu0 0.0
      %4427 = vmatpush1.msra.mxu0 0.0
      %4428 = vmatprep.subr.mxu0 0.0
      %4429 = vmatpush1.msra.mxu0 0.0
      %4430 = vmatprep.subr.mxu0 0.0
      %4431 = vmatpush1.msra.mxu0 0.0
      %4432 = vmatprep.subr.mxu0 0.0
      %4433 = vmatpush1.msra.mxu0 0.0
      %4434 = vmatprep.subr.mxu0 0.0
      %4435 = vmatpush1.msra.mxu0 0.0
      %4436 = vmatprep.mubr.f32.mxu0 0.0
      %v4437 = vand.u32 %v4359, 4294901760
      %v4438 = vsub.f32 %v4359, %v4437
      %v4439 = vand.u32 %v4438, 4294901760
      %v4440 = vsub.f32 %v4438, %v4439
      %v4441 = vand.u32 %v4440, 4294901760
      %4442 = vmatmul.mubr.f32.gmra.mrb[0].mxu0 %v4441
      %v4443 = vpop.f32.mrb[0].mxu0
      %v4444 = vadd.f32 %v4351, %v4443
      %v4445 = vpop.f32.mrb[0].mxu0
      %v4446 = vadd.f32 %v4351, %v4445
      %4447 = vmatprep.mubr.f32.mxu0 0.0
      %v4448 = vand.u32 %v4362, 4294901760
      %v4449 = vsub.f32 %v4362, %v4448
      %v4450 = vand.u32 %v4449, 4294901760
      %v4451 = vsub.f32 %v4449, %v4450
      %v4452 = vand.u32 %v4451, 4294901760
      %4453 = vmatmul.mubr.f32.gmra.mrb[0].mxu0 %v4452
      %v4454 = vpop.f32.mrb[0].mxu0
      %v4455 = vadd.f32 %v4356, %v4454
      %v4456 = vpop.f32.mrb[0].mxu0
      %v4457 = vadd.f32 %v4356, %v4456
      %4458 = vdwg.mxu0
      %v4459 = vand.u32 %v4368, 4294901760
      %v4460 = vsub.f32 %v4368, %v4459
      %v4461 = vand.u32 %v4460, 4294901760
      %v4462 = vsub.f32 %v4460, %v4461
      %v4463 = vand.u32 %v4462, 4294901760
      %4464 = vmatprep.subr.mxu0 %v4463
      %v4465 = vand.u32 %v4365, 4294901760
      %v4466 = vsub.f32 %v4365, %v4465
      %v4467 = vand.u32 %v4466, 4294901760
      %v4468 = vsub.f32 %v4466, %v4467
      %v4469 = vand.u32 %v4468, 4294901760
      %4470 = vmatpush1.msra.mxu0 %v4469
      %4471 = vmatprep.subr.mxu0 0.0
      %4472 = vmatpush1.msra.mxu0 0.0
      %4473 = vmatprep.subr.mxu0 0.0
      %4474 = vmatpush1.msra.mxu0 0.0
      %4475 = vmatprep.subr.mxu0 0.0
      %4476 = vmatpush1.msra.mxu0 0.0
      %4477 = vmatprep.subr.mxu0 0.0
      %4478 = vmatpush1.msra.mxu0 0.0
      %4479 = vmatprep.subr.mxu0 0.0
      %4480 = vmatpush1.msra.mxu0 0.0
      %4481 = vmatprep.subr.mxu0 0.0
      %4482 = vmatpush1.msra.mxu0 0.0
      %4483 = vmatprep.subr.mxu0 0.0
      %4484 = vmatpush1.msra.mxu0 0.0
      %4485 = vmatprep.subr.mxu0 0.0
      %4486 = vmatpush1.msra.mxu0 0.0
      %4487 = vmatprep.subr.mxu0 0.0
      %4488 = vmatpush1.msra.mxu0 0.0
      %4489 = vmatprep.subr.mxu0 0.0
      %4490 = vmatpush1.msra.mxu0 0.0
      %4491 = vmatprep.subr.mxu0 0.0
      %4492 = vmatpush1.msra.mxu0 0.0
      %4493 = vmatprep.subr.mxu0 0.0
      %4494 = vmatpush1.msra.mxu0 0.0
      %4495 = vmatprep.subr.mxu0 0.0
      %4496 = vmatpush1.msra.mxu0 0.0
      %4497 = vmatprep.subr.mxu0 0.0
      %4498 = vmatpush1.msra.mxu0 0.0
      %4499 = vmatprep.subr.mxu0 0.0
      %4500 = vmatpush1.msra.mxu0 0.0
      %4501 = vmatprep.subr.mxu0 0.0
      %4502 = vmatpush1.msra.mxu0 0.0
      %4503 = vmatprep.subr.mxu0 0.0
      %4504 = vmatpush1.msra.mxu0 0.0
      %4505 = vmatprep.subr.mxu0 0.0
      %4506 = vmatpush1.msra.mxu0 0.0
      %4507 = vmatprep.subr.mxu0 0.0
      %4508 = vmatpush1.msra.mxu0 0.0
      %4509 = vmatprep.subr.mxu0 0.0
      %4510 = vmatpush1.msra.mxu0 0.0
      %4511 = vmatprep.subr.mxu0 0.0
      %4512 = vmatpush1.msra.mxu0 0.0
      %4513 = vmatprep.subr.mxu0 0.0
      %4514 = vmatpush1.msra.mxu0 0.0
      %4515 = vmatprep.subr.mxu0 0.0
      %4516 = vmatpush1.msra.mxu0 0.0
      %4517 = vmatprep.subr.mxu0 0.0
      %4518 = vmatpush1.msra.mxu0 0.0
      %4519 = vmatprep.subr.mxu0 0.0
      %4520 = vmatpush1.msra.mxu0 0.0
      %4521 = vmatprep.subr.mxu0 0.0
      %4522 = vmatpush1.msra.mxu0 0.0
      %4523 = vmatprep.subr.mxu0 0.0
      %4524 = vmatpush1.msra.mxu0 0.0
      %4525 = vmatprep.subr.mxu0 0.0
      %4526 = vmatpush1.msra.mxu0 0.0
      %4527 = vmatprep.subr.mxu0 0.0
      %4528 = vmatpush1.msra.mxu0 0.0
      %4529 = vmatprep.subr.mxu0 0.0
      %4530 = vmatpush1.msra.mxu0 0.0
      %4531 = vmatprep.subr.mxu0 0.0
      %4532 = vmatpush1.msra.mxu0 0.0
      %4533 = vmatprep.mubr.f32.mxu0 0.0
      %v4534 = vand.u32 %v4359, 4294901760
      %4535 = vmatmul.mubr.f32.gmra.mrb[0].mxu0 %v4534
      %v4536 = vpop.f32.mrb[0].mxu0
      %v4537 = vadd.f32 %v4444, %v4536
      %v4538 = vpop.f32.mrb[0].mxu0
      %v4539 = vadd.f32 %v4446, %v4538
      %4540 = vmatprep.mubr.f32.mxu0 0.0
      %v4541 = vand.u32 %v4362, 4294901760
      %4542 = vmatmul.mubr.f32.gmra.mrb[0].mxu0 %v4541
      %v4543 = vpop.f32.mrb[0].mxu0
      %v4544 = vadd.f32 %v4455, %v4543
      %v4545 = vpop.f32.mrb[0].mxu0
      %v4546 = vadd.f32 %v4457, %v4545
      %4547 = vdwg.mxu0
      %v4548 = vand.u32 %v4368, 4294901760
      %v4549 = vsub.f32 %v4368, %v4548
      %4550 = vmatprep.subr.mxu0 %v4549
      %v4551 = vand.u32 %v4365, 4294901760
      %v4552 = vsub.f32 %v4365, %v4551
      %4553 = vmatpush1.msra.mxu0 %v4552
      %4554 = vmatprep.subr.mxu0 0.0
      %4555 = vmatpush1.msra.mxu0 0.0
      %4556 = vmatprep.subr.mxu0 0.0
      %4557 = vmatpush1.msra.mxu0 0.0
      %4558 = vmatprep.subr.mxu0 0.0
      %4559 = vmatpush1.msra.mxu0 0.0
      %4560 = vmatprep.subr.mxu0 0.0
      %4561 = vmatpush1.msra.mxu0 0.0
      %4562 = vmatprep.subr.mxu0 0.0
      %4563 = vmatpush1.msra.mxu0 0.0
      %4564 = vmatprep.subr.mxu0 0.0
      %4565 = vmatpush1.msra.mxu0 0.0
      %4566 = vmatprep.subr.mxu0 0.0
      %4567 = vmatpush1.msra.mxu0 0.0
      %4568 = vmatprep.subr.mxu0 0.0
      %4569 = vmatpush1.msra.mxu0 0.0
      %4570 = vmatprep.subr.mxu0 0.0
      %4571 = vmatpush1.msra.mxu0 0.0
      %4572 = vmatprep.subr.mxu0 0.0
      %4573 = vmatpush1.msra.mxu0 0.0
      %4574 = vmatprep.subr.mxu0 0.0
      %4575 = vmatpush1.msra.mxu0 0.0
      %4576 = vmatprep.subr.mxu0 0.0
      %4577 = vmatpush1.msra.mxu0 0.0
      %4578 = vmatprep.subr.mxu0 0.0
      %4579 = vmatpush1.msra.mxu0 0.0
      %4580 = vmatprep.subr.mxu0 0.0
      %4581 = vmatpush1.msra.mxu0 0.0
      %4582 = vmatprep.subr.mxu0 0.0
      %4583 = vmatpush1.msra.mxu0 0.0
      %4584 = vmatprep.subr.mxu0 0.0
      %4585 = vmatpush1.msra.mxu0 0.0
      %4586 = vmatprep.subr.mxu0 0.0
      %4587 = vmatpush1.msra.mxu0 0.0
      %4588 = vmatprep.subr.mxu0 0.0
      %4589 = vmatpush1.msra.mxu0 0.0
      %4590 = vmatprep.subr.mxu0 0.0
      %4591 = vmatpush1.msra.mxu0 0.0
      %4592 = vmatprep.subr.mxu0 0.0
      %4593 = vmatpush1.msra.mxu0 0.0
      %4594 = vmatprep.subr.mxu0 0.0
      %4595 = vmatpush1.msra.mxu0 0.0
      %4596 = vmatprep.subr.mxu0 0.0
      %4597 = vmatpush1.msra.mxu0 0.0
      %4598 = vmatprep.subr.mxu0 0.0
      %4599 = vmatpush1.msra.mxu0 0.0
      %4600 = vmatprep.subr.mxu0 0.0
      %4601 = vmatpush1.msra.mxu0 0.0
      %4602 = vmatprep.subr.mxu0 0.0
      %4603 = vmatpush1.msra.mxu0 0.0
      %4604 = vmatprep.subr.mxu0 0.0
      %4605 = vmatpush1.msra.mxu0 0.0
      %4606 = vmatprep.subr.mxu0 0.0
      %4607 = vmatpush1.msra.mxu0 0.0
      %4608 = vmatprep.subr.mxu0 0.0
      %4609 = vmatpush1.msra.mxu0 0.0
      %4610 = vmatprep.subr.mxu0 0.0
      %4611 = vmatpush1.msra.mxu0 0.0
      %4612 = vmatprep.subr.mxu0 0.0
      %4613 = vmatpush1.msra.mxu0 0.0
      %4614 = vmatprep.subr.mxu0 0.0
      %4615 = vmatpush1.msra.mxu0 0.0
      %4616 = vmatprep.mubr.f32.mxu0 0.0
      %v4617 = vand.u32 %v4359, 4294901760
      %v4618 = vsub.f32 %v4359, %v4617
      %4619 = vmatmul.mubr.f32.gmra.mrb[0].mxu0 %v4618
      %v4620 = vpop.f32.mrb[0].mxu0
      %v4621 = vadd.f32 %v4537, %v4620
      %v4622 = vpop.f32.mrb[0].mxu0
      %v4623 = vadd.f32 %v4539, %v4622
      %4624 = vmatprep.mubr.f32.mxu0 0.0
      %v4625 = vand.u32 %v4362, 4294901760
      %v4626 = vsub.f32 %v4362, %v4625
      %4627 = vmatmul.mubr.f32.gmra.mrb[0].mxu0 %v4626
      %v4628 = vpop.f32.mrb[0].mxu0
      %v4629 = vadd.f32 %v4544, %v4628
      %v4630 = vpop.f32.mrb[0].mxu0
      %v4631 = vadd.f32 %v4546, %v4630
      %4632 = vdwg.mxu0
      %v4633 = vand.u32 %v4368, 4294901760
      %4634 = vmatprep.subr.mxu0 %v4633
      %v4635 = vand.u32 %v4365, 4294901760
      %4636 = vmatpush1.msra.mxu0 %v4635
      %4637 = vmatprep.subr.mxu0 0.0
      %4638 = vmatpush1.msra.mxu0 0.0
      %4639 = vmatprep.subr.mxu0 0.0
      %4640 = vmatpush1.msra.mxu0 0.0
      %4641 = vmatprep.subr.mxu0 0.0
      %4642 = vmatpush1.msra.mxu0 0.0
      %4643 = vmatprep.subr.mxu0 0.0
      %4644 = vmatpush1.msra.mxu0 0.0
      %4645 = vmatprep.subr.mxu0 0.0
      %4646 = vmatpush1.msra.mxu0 0.0
      %4647 = vmatprep.subr.mxu0 0.0
      %4648 = vmatpush1.msra.mxu0 0.0
      %4649 = vmatprep.subr.mxu0 0.0
      %4650 = vmatpush1.msra.mxu0 0.0
      %4651 = vmatprep.subr.mxu0 0.0
      %4652 = vmatpush1.msra.mxu0 0.0
      %4653 = vmatprep.subr.mxu0 0.0
      %4654 = vmatpush1.msra.mxu0 0.0
      %4655 = vmatprep.subr.mxu0 0.0
      %4656 = vmatpush1.msra.mxu0 0.0
      %4657 = vmatprep.subr.mxu0 0.0
      %4658 = vmatpush1.msra.mxu0 0.0
      %4659 = vmatprep.subr.mxu0 0.0
      %4660 = vmatpush1.msra.mxu0 0.0
      %4661 = vmatprep.subr.mxu0 0.0
      %4662 = vmatpush1.msra.mxu0 0.0
      %4663 = vmatprep.subr.mxu0 0.0
      %4664 = vmatpush1.msra.mxu0 0.0
      %4665 = vmatprep.subr.mxu0 0.0
      %4666 = vmatpush1.msra.mxu0 0.0
      %4667 = vmatprep.subr.mxu0 0.0
      %4668 = vmatpush1.msra.mxu0 0.0
      %4669 = vmatprep.subr.mxu0 0.0
      %4670 = vmatpush1.msra.mxu0 0.0
      %4671 = vmatprep.subr.mxu0 0.0
      %4672 = vmatpush1.msra.mxu0 0.0
      %4673 = vmatprep.subr.mxu0 0.0
      %4674 = vmatpush1.msra.mxu0 0.0
      %4675 = vmatprep.subr.mxu0 0.0
      %4676 = vmatpush1.msra.mxu0 0.0
      %4677 = vmatprep.subr.mxu0 0.0
      %4678 = vmatpush1.msra.mxu0 0.0
      %4679 = vmatprep.subr.mxu0 0.0
      %4680 = vmatpush1.msra.mxu0 0.0
      %4681 = vmatprep.subr.mxu0 0.0
      %4682 = vmatpush1.msra.mxu0 0.0
      %4683 = vmatprep.subr.mxu0 0.0
      %4684 = vmatpush1.msra.mxu0 0.0
      %4685 = vmatprep.subr.mxu0 0.0
      %4686 = vmatpush1.msra.mxu0 0.0
      %4687 = vmatprep.subr.mxu0 0.0
      %4688 = vmatpush1.msra.mxu0 0.0
      %4689 = vmatprep.subr.mxu0 0.0
      %4690 = vmatpush1.msra.mxu0 0.0
      %4691 = vmatprep.subr.mxu0 0.0
      %4692 = vmatpush1.msra.mxu0 0.0
      %4693 = vmatprep.subr.mxu0 0.0
      %4694 = vmatpush1.msra.mxu0 0.0
      %4695 = vmatprep.subr.mxu0 0.0
      %4696 = vmatpush1.msra.mxu0 0.0
      %4697 = vmatprep.subr.mxu0 0.0
      %4698 = vmatpush1.msra.mxu0 0.0
      %4699 = vmatprep.mubr.f32.mxu0 0.0
      %v4700 = vand.u32 %v4359, 4294901760
      %v4701 = vsub.f32 %v4359, %v4700
      %v4702 = vand.u32 %v4701, 4294901760
      %4703 = vmatmul.mubr.f32.gmra.mrb[0].mxu0 %v4702
      %v4704 = vpop.f32.mrb[0].mxu0
      %v4705 = vadd.f32 %v4621, %v4704
      %v4706 = vpop.f32.mrb[0].mxu0
      %v4707 = vadd.f32 %v4623, %v4706
      %4708 = vmatprep.mubr.f32.mxu0 0.0
      %v4709 = vand.u32 %v4362, 4294901760
      %v4710 = vsub.f32 %v4362, %v4709
      %v4711 = vand.u32 %v4710, 4294901760
      %4712 = vmatmul.mubr.f32.gmra.mrb[0].mxu0 %v4711
      %v4713 = vpop.f32.mrb[0].mxu0
      %v4714 = vadd.f32 %v4629, %v4713
      %v4715 = vpop.f32.mrb[0].mxu0
      %v4716 = vadd.f32 %v4631, %v4715
      %4717 = vdwg.mxu0
      %v4718 = vand.u32 %v4368, 4294901760
      %v4719 = vsub.f32 %v4368, %v4718
      %v4720 = vand.u32 %v4719, 4294901760
      %4721 = vmatprep.subr.mxu0 %v4720
      %v4722 = vand.u32 %v4365, 4294901760
      %v4723 = vsub.f32 %v4365, %v4722
      %v4724 = vand.u32 %v4723, 4294901760
      %4725 = vmatpush1.msra.mxu0 %v4724
      %4726 = vmatprep.subr.mxu0 0.0
      %4727 = vmatpush1.msra.mxu0 0.0
      %4728 = vmatprep.subr.mxu0 0.0
      %4729 = vmatpush1.msra.mxu0 0.0
      %4730 = vmatprep.subr.mxu0 0.0
      %4731 = vmatpush1.msra.mxu0 0.0
      %4732 = vmatprep.subr.mxu0 0.0
      %4733 = vmatpush1.msra.mxu0 0.0
      %4734 = vmatprep.subr.mxu0 0.0
      %4735 = vmatpush1.msra.mxu0 0.0
      %4736 = vmatprep.subr.mxu0 0.0
      %4737 = vmatpush1.msra.mxu0 0.0
      %4738 = vmatprep.subr.mxu0 0.0
      %4739 = vmatpush1.msra.mxu0 0.0
      %4740 = vmatprep.subr.mxu0 0.0
      %4741 = vmatpush1.msra.mxu0 0.0
      %4742 = vmatprep.subr.mxu0 0.0
      %4743 = vmatpush1.msra.mxu0 0.0
      %4744 = vmatprep.subr.mxu0 0.0
      %4745 = vmatpush1.msra.mxu0 0.0
      %4746 = vmatprep.subr.mxu0 0.0
      %4747 = vmatpush1.msra.mxu0 0.0
      %4748 = vmatprep.subr.mxu0 0.0
      %4749 = vmatpush1.msra.mxu0 0.0
      %4750 = vmatprep.subr.mxu0 0.0
      %4751 = vmatpush1.msra.mxu0 0.0
      %4752 = vmatprep.subr.mxu0 0.0
      %4753 = vmatpush1.msra.mxu0 0.0
      %4754 = vmatprep.subr.mxu0 0.0
      %4755 = vmatpush1.msra.mxu0 0.0
      %4756 = vmatprep.subr.mxu0 0.0
      %4757 = vmatpush1.msra.mxu0 0.0
      %4758 = vmatprep.subr.mxu0 0.0
      %4759 = vmatpush1.msra.mxu0 0.0
      %4760 = vmatprep.subr.mxu0 0.0
      %4761 = vmatpush1.msra.mxu0 0.0
      %4762 = vmatprep.subr.mxu0 0.0
      %4763 = vmatpush1.msra.mxu0 0.0
      %4764 = vmatprep.subr.mxu0 0.0
      %4765 = vmatpush1.msra.mxu0 0.0
      %4766 = vmatprep.subr.mxu0 0.0
      %4767 = vmatpush1.msra.mxu0 0.0
      %4768 = vmatprep.subr.mxu0 0.0
      %4769 = vmatpush1.msra.mxu0 0.0
      %4770 = vmatprep.subr.mxu0 0.0
      %4771 = vmatpush1.msra.mxu0 0.0
      %4772 = vmatprep.subr.mxu0 0.0
      %4773 = vmatpush1.msra.mxu0 0.0
      %4774 = vmatprep.subr.mxu0 0.0
      %4775 = vmatpush1.msra.mxu0 0.0
      %4776 = vmatprep.subr.mxu0 0.0
      %4777 = vmatpush1.msra.mxu0 0.0
      %4778 = vmatprep.subr.mxu0 0.0
      %4779 = vmatpush1.msra.mxu0 0.0
      %4780 = vmatprep.subr.mxu0 0.0
      %4781 = vmatpush1.msra.mxu0 0.0
      %4782 = vmatprep.subr.mxu0 0.0
      %4783 = vmatpush1.msra.mxu0 0.0
      %4784 = vmatprep.subr.mxu0 0.0
      %4785 = vmatpush1.msra.mxu0 0.0
      %4786 = vmatprep.subr.mxu0 0.0
      %4787 = vmatpush1.msra.mxu0 0.0
      %4788 = vmatprep.mubr.f32.mxu0 0.0
      %v4789 = vand.u32 %v4359, 4294901760
      %4790 = vmatmul.mubr.f32.gmra.mrb[0].mxu0 %v4789
      %v4791 = vpop.f32.mrb[0].mxu0
      %v4792 = vadd.f32 %v4705, %v4791
      %v4793 = vpop.f32.mrb[0].mxu0
      %v4794 = vadd.f32 %v4707, %v4793
      %4795 = vmatprep.mubr.f32.mxu0 0.0
      %v4796 = vand.u32 %v4362, 4294901760
      %4797 = vmatmul.mubr.f32.gmra.mrb[0].mxu0 %v4796
      %v4798 = vpop.f32.mrb[0].mxu0
      %v4799 = vadd.f32 %v4714, %v4798
      %v4800 = vpop.f32.mrb[0].mxu0
      %v4801 = vadd.f32 %v4716, %v4800
      %4802 = vdwg.mxu0
      %v4803 = vand.u32 %v4368, 4294901760
      %4804 = vmatprep.subr.mxu0 %v4803
      %v4805 = vand.u32 %v4365, 4294901760
      %4806 = vmatpush1.msra.mxu0 %v4805
      %4807 = vmatprep.subr.mxu0 0.0
      %4808 = vmatpush1.msra.mxu0 0.0
      %4809 = vmatprep.subr.mxu0 0.0
      %4810 = vmatpush1.msra.mxu0 0.0
      %4811 = vmatprep.subr.mxu0 0.0
      %4812 = vmatpush1.msra.mxu0 0.0
      %4813 = vmatprep.subr.mxu0 0.0
      %4814 = vmatpush1.msra.mxu0 0.0
      %4815 = vmatprep.subr.mxu0 0.0
      %4816 = vmatpush1.msra.mxu0 0.0
      %4817 = vmatprep.subr.mxu0 0.0
      %4818 = vmatpush1.msra.mxu0 0.0
      %4819 = vmatprep.subr.mxu0 0.0
      %4820 = vmatpush1.msra.mxu0 0.0
      %4821 = vmatprep.subr.mxu0 0.0
      %4822 = vmatpush1.msra.mxu0 0.0
      %4823 = vmatprep.subr.mxu0 0.0
      %4824 = vmatpush1.msra.mxu0 0.0
      %4825 = vmatprep.subr.mxu0 0.0
      %4826 = vmatpush1.msra.mxu0 0.0
      %4827 = vmatprep.subr.mxu0 0.0
      %4828 = vmatpush1.msra.mxu0 0.0
      %4829 = vmatprep.subr.mxu0 0.0
      %4830 = vmatpush1.msra.mxu0 0.0
      %4831 = vmatprep.subr.mxu0 0.0
      %4832 = vmatpush1.msra.mxu0 0.0
      %4833 = vmatprep.subr.mxu0 0.0
      %4834 = vmatpush1.msra.mxu0 0.0
      %4835 = vmatprep.subr.mxu0 0.0
      %4836 = vmatpush1.msra.mxu0 0.0
      %4837 = vmatprep.subr.mxu0 0.0
      %4838 = vmatpush1.msra.mxu0 0.0
      %4839 = vmatprep.subr.mxu0 0.0
      %4840 = vmatpush1.msra.mxu0 0.0
      %4841 = vmatprep.subr.mxu0 0.0
      %4842 = vmatpush1.msra.mxu0 0.0
      %4843 = vmatprep.subr.mxu0 0.0
      %4844 = vmatpush1.msra.mxu0 0.0
      %4845 = vmatprep.subr.mxu0 0.0
      %4846 = vmatpush1.msra.mxu0 0.0
      %4847 = vmatprep.subr.mxu0 0.0
      %4848 = vmatpush1.msra.mxu0 0.0
      %4849 = vmatprep.subr.mxu0 0.0
      %4850 = vmatpush1.msra.mxu0 0.0
      %4851 = vmatprep.subr.mxu0 0.0
      %4852 = vmatpush1.msra.mxu0 0.0
      %4853 = vmatprep.subr.mxu0 0.0
      %4854 = vmatpush1.msra.mxu0 0.0
      %4855 = vmatprep.subr.mxu0 0.0
      %4856 = vmatpush1.msra.mxu0 0.0
      %4857 = vmatprep.subr.mxu0 0.0
      %4858 = vmatpush1.msra.mxu0 0.0
      %4859 = vmatprep.subr.mxu0 0.0
      %4860 = vmatpush1.msra.mxu0 0.0
      %4861 = vmatprep.subr.mxu0 0.0
      %4862 = vmatpush1.msra.mxu0 0.0
      %4863 = vmatprep.subr.mxu0 0.0
      %4864 = vmatpush1.msra.mxu0 0.0
      %4865 = vmatprep.subr.mxu0 0.0
      %4866 = vmatpush1.msra.mxu0 0.0
      %4867 = vmatprep.subr.mxu0 0.0
      %4868 = vmatpush1.msra.mxu0 0.0
      %4869 = vmatprep.mubr.f32.mxu0 0.0
      %v4870 = vand.u32 %v4359, 4294901760
      %4871 = vmatmul.mubr.f32.gmra.mrb[0].mxu0 %v4870
      %v4872 = vpop.f32.mrb[0].mxu0
      %v4873 = vadd.f32 %v4792, %v4872
      %v4874 = vpop.f32.mrb[0].mxu0
      %v4875 = vadd.f32 %v4794, %v4874
      %4876 = vmatprep.mubr.f32.mxu0 0.0
      %v4877 = vand.u32 %v4362, 4294901760
      %4878 = vmatmul.mubr.f32.gmra.mrb[0].mxu0 %v4877
      %v4879 = vpop.f32.mrb[0].mxu0
      %v4880 = vadd.f32 %v4799, %v4879
      %v4881 = vpop.f32.mrb[0].mxu0
      %v4882 = vadd.f32 %v4801, %v4881
      %4883 = vdwg.mxu0
      %v4884 = vmul.f32 %v4873, 0.5
      %v4885 = vmul.f32 %v4875, 0.5
      %v4886 = vmul.f32 %v4880, 0.5
      %v4887 = vmul.f32 %v4882, 0.5
      %v4888 = vmul.f32 %v4873, 0.70710677
      %v4889 = vmul.f32 %v4875, 0.70710677
      %v4890 = vmul.f32 %v4880, 0.70710677
      %v4891 = vmul.f32 %v4882, 0.70710677
      %vm4892 = vcmp.ge.f32.partialorder %v4888, 0.0
      %vm4893 = vcmp.ge.f32.partialorder %v4889, 0.0
      %vm4894 = vcmp.ge.f32.partialorder %v4890, 0.0
      %vm4895 = vcmp.ge.f32.partialorder %v4891, 0.0
      %v4896 = vsel %vm4892, 1.0, -1.0
      %v4897 = vsel %vm4893, 1.0, -1.0
      %v4898 = vsel %vm4894, 1.0, -1.0
      %v4899 = vsel %vm4895, 1.0, -1.0
      %v4900 = vand.u32 2147483647, %v4888
      %v4901 = vand.u32 2147483647, %v4889
      %v4902 = vand.u32 2147483647, %v4890
      %v4903 = vand.u32 2147483647, %v4891
      %v4904 = vmul.f32 %v4900, 0.3275911
      %v4905 = vmul.f32 %v4901, 0.3275911
      %v4906 = vmul.f32 %v4902, 0.3275911
      %v4907 = vmul.f32 %v4903, 0.3275911
      %v4908 = vadd.f32 %v4904, 1.0
      %v4909 = vadd.f32 %v4905, 1.0
      %v4910 = vadd.f32 %v4906, 1.0
      %v4911 = vadd.f32 %v4907, 1.0
      %v4912 = vrcp.pop %v4908
      %v4913 = vmul.f32 1.0, %v4912
      %v4914 = vrcp.pop %v4909
      %v4915 = vmul.f32 1.0, %v4914
      %v4916 = vrcp.pop %v4910
      %v4917 = vmul.f32 1.0, %v4916
      %v4918 = vrcp.pop %v4911
      %v4919 = vmul.f32 1.0, %v4918
      %v4920 = vmul.f32 %v4913, 1.0614054
      %v4921 = vmul.f32 %v4915, 1.0614054
      %v4922 = vmul.f32 %v4917, 1.0614054
      %v4923 = vmul.f32 %v4919, 1.0614054
      %v4924 = vadd.f32 %v4920, -1.4531521
      %v4925 = vadd.f32 %v4921, -1.4531521
      %v4926 = vadd.f32 %v4922, -1.4531521
      %v4927 = vadd.f32 %v4923, -1.4531521
      %v4928 = vmul.f32 %v4924, %v4913
      %v4929 = vmul.f32 %v4925, %v4915
      %v4930 = vmul.f32 %v4926, %v4917
      %v4931 = vmul.f32 %v4927, %v4919
      %v4932 = vadd.f32 %v4928, 1.4214138
      %v4933 = vadd.f32 %v4929, 1.4214138
      %v4934 = vadd.f32 %v4930, 1.4214138
      %v4935 = vadd.f32 %v4931, 1.4214138
      %v4936 = vmul.f32 %v4932, %v4913
      %v4937 = vmul.f32 %v4933, %v4915
      %v4938 = vmul.f32 %v4934, %v4917
      %v4939 = vmul.f32 %v4935, %v4919
      %v4940 = vadd.f32 %v4936, -0.28449672
      %v4941 = vadd.f32 %v4937, -0.28449672
      %v4942 = vadd.f32 %v4938, -0.28449672
      %v4943 = vadd.f32 %v4939, -0.28449672
      %v4944 = vmul.f32 %v4940, %v4913
      %v4945 = vmul.f32 %v4941, %v4915
      %v4946 = vmul.f32 %v4942, %v4917
      %v4947 = vmul.f32 %v4943, %v4919
      %v4948 = vadd.f32 %v4944, 0.2548296
      %v4949 = vadd.f32 %v4945, 0.2548296
      %v4950 = vadd.f32 %v4946, 0.2548296
      %v4951 = vadd.f32 %v4947, 0.2548296
      %v4952 = vmul.f32 %v4948, %v4913
      %v4953 = vmul.f32 %v4949, %v4915
      %v4954 = vmul.f32 %v4950, %v4917
      %v4955 = vmul.f32 %v4951, %v4919
      %v4956 = vsub.f32 0.0, %v4900
      %v4957 = vsub.f32 0.0, %v4901
      %v4958 = vsub.f32 0.0, %v4902
      %v4959 = vsub.f32 0.0, %v4903
      %v4960 = vmul.f32 %v4956, %v4900
      %v4961 = vmul.f32 %v4957, %v4901
      %v4962 = vmul.f32 %v4958, %v4902
      %v4963 = vmul.f32 %v4959, %v4903
      %v4964 = vmul.f32 %v4960, 1.442695
      %v4965 = vpow.pop %v4964
      %v4966 = vmul.f32 %v4961, 1.442695
      %v4967 = vpow.pop %v4966
      %v4968 = vmul.f32 %v4962, 1.442695
      %v4969 = vpow.pop %v4968
      %v4970 = vmul.f32 %v4963, 1.442695
      %v4971 = vpow.pop %v4970
      %v4972 = vmul.f32 %v4952, %v4965
      %v4973 = vmul.f32 %v4953, %v4967
      %v4974 = vmul.f32 %v4954, %v4969
      %v4975 = vmul.f32 %v4955, %v4971
      %v4976 = vsub.f32 1.0, %v4972
      %v4977 = vsub.f32 1.0, %v4973
      %v4978 = vsub.f32 1.0, %v4974
      %v4979 = vsub.f32 1.0, %v4975
      %v4980 = vmul.f32 %v4896, %v4976
      %v4981 = vmul.f32 %v4897, %v4977
      %v4982 = vmul.f32 %v4898, %v4978
      %v4983 = vmul.f32 %v4899, %v4979
      %v4984 = vadd.f32 %v4980, 1.0
      %v4985 = vadd.f32 %v4981, 1.0
      %v4986 = vadd.f32 %v4982, 1.0
      %v4987 = vadd.f32 %v4983, 1.0
      %v4988 = vmul.f32 %v4884, %v4984
      %v4989 = vmul.f32 %v4885, %v4985
      %v4990 = vmul.f32 %v4886, %v4986
      %v4991 = vmul.f32 %v4887, %v4987
      %v4992 = vld [vmem:[%s11] sm:$0xf]
      %v4993 = vld [vmem:[%s12] sm:$0xf]
      %4995 = vset.pattern.permute.xlu0 0
      %4996 = vperm.xlu0 %4995, %v4993
      %v4997 = vpop.permute.xlu0 %4996
      %vm4999 = vcmask 130048
      %v5001 = vsel %vm4999, %v4992, 0
      %v5003 = vand.u32 %v4989, 4294901760
      %5004 = vmatprep.subr.mxu0 %v5003
      %v5005 = vand.u32 %v4988, 4294901760
      %5006 = vmatpush1.msra.mxu0 %v5005
      %v5007 = vand.u32 %v4991, 4294901760
      %5008 = vmatprep.subr.mxu0 %v5007
      %v5009 = vand.u32 %v4990, 4294901760
      %5010 = vmatpush1.msra.mxu0 %v5009
      %5011 = vmatprep.subr.mxu0 0.0
      %5012 = vmatpush1.msra.mxu0 0.0
      %5013 = vmatprep.subr.mxu0 0.0
      %5014 = vmatpush1.msra.mxu0 0.0
      %5015 = vmatprep.subr.mxu0 0.0
      %5016 = vmatpush1.msra.mxu0 0.0
      %5017 = vmatprep.subr.mxu0 0.0
      %5018 = vmatpush1.msra.mxu0 0.0
      %5019 = vmatprep.subr.mxu0 0.0
      %5020 = vmatpush1.msra.mxu0 0.0
      %5021 = vmatprep.subr.mxu0 0.0
      %5022 = vmatpush1.msra.mxu0 0.0
      %5023 = vmatprep.subr.mxu0 0.0
      %5024 = vmatpush1.msra.mxu0 0.0
      %5025 = vmatprep.subr.mxu0 0.0
      %5026 = vmatpush1.msra.mxu0 0.0
      %5027 = vmatprep.subr.mxu0 0.0
      %5028 = vmatpush1.msra.mxu0 0.0
      %5029 = vmatprep.subr.mxu0 0.0
      %5030 = vmatpush1.msra.mxu0 0.0
      %5031 = vmatprep.subr.mxu0 0.0
      %5032 = vmatpush1.msra.mxu0 0.0
      %5033 = vmatprep.subr.mxu0 0.0
      %5034 = vmatpush1.msra.mxu0 0.0
      %5035 = vmatprep.subr.mxu0 0.0
      %5036 = vmatpush1.msra.mxu0 0.0
      %5037 = vmatprep.subr.mxu0 0.0
      %5038 = vmatpush1.msra.mxu0 0.0
      %5039 = vmatprep.subr.mxu0 0.0
      %5040 = vmatpush1.msra.mxu0 0.0
      %5041 = vmatprep.subr.mxu0 0.0
      %5042 = vmatpush1.msra.mxu0 0.0
      %5043 = vmatprep.subr.mxu0 0.0
      %5044 = vmatpush1.msra.mxu0 0.0
      %5045 = vmatprep.subr.mxu0 0.0
      %5046 = vmatpush1.msra.mxu0 0.0
      %5047 = vmatprep.subr.mxu0 0.0
      %5048 = vmatpush1.msra.mxu0 0.0
      %5049 = vmatprep.subr.mxu0 0.0
      %5050 = vmatpush1.msra.mxu0 0.0
      %5051 = vmatprep.subr.mxu0 0.0
      %5052 = vmatpush1.msra.mxu0 0.0
      %5053 = vmatprep.subr.mxu0 0.0
      %5054 = vmatpush1.msra.mxu0 0.0
      %5055 = vmatprep.subr.mxu0 0.0
      %5056 = vmatpush1.msra.mxu0 0.0
      %5057 = vmatprep.subr.mxu0 0.0
      %5058 = vmatpush1.msra.mxu0 0.0
      %5059 = vmatprep.subr.mxu0 0.0
      %5060 = vmatpush1.msra.mxu0 0.0
      %5061 = vmatprep.subr.mxu0 0.0
      %5062 = vmatpush1.msra.mxu0 0.0
      %5063 = vmatprep.subr.mxu0 0.0
      %5064 = vmatpush1.msra.mxu0 0.0
      %5065 = vmatprep.subr.mxu0 0.0
      %5066 = vmatpush1.msra.mxu0 0.0
      %5067 = vmatprep.subr.mxu0 0.0
      %5068 = vmatpush1.msra.mxu0 0.0
      %5069 = vmatprep.subr.mxu0 0.0
      %5070 = vmatpush1.msra.mxu0 0.0
      %5071 = vmatprep.mubr.f32.mxu0 0.0
      %v5072 = vand.u32 %v5001, 4294901760
      %v5073 = vsub.f32 %v5001, %v5072
      %v5074 = vand.u32 %v5073, 4294901760
      %v5075 = vsub.f32 %v5073, %v5074
      %v5076 = vand.u32 %v5075, 4294901760
      %5077 = vmatmul.mubr.f32.gmra.mrb[0].mxu0 %v5076
      %v5078 = vpop.f32.mrb[0].mxu0
      %v5079 = vadd.f32 %v4997, %v5078
      %v5080 = vpop.f32.mrb[0].mxu0
      %v5081 = vadd.f32 %v4997, %v5080
      %5082 = vdwg.mxu0
      %v5083 = vand.u32 %v4989, 4294901760
      %v5084 = vsub.f32 %v4989, %v5083
      %v5085 = vand.u32 %v5084, 4294901760
      %v5086 = vsub.f32 %v5084, %v5085
      %v5087 = vand.u32 %v5086, 4294901760
      %5088 = vmatprep.subr.mxu0 %v5087
      %v5089 = vand.u32 %v4988, 4294901760
      %v5090 = vsub.f32 %v4988, %v5089
      %v5091 = vand.u32 %v5090, 4294901760
      %v5092 = vsub.f32 %v5090, %v5091
      %v5093 = vand.u32 %v5092, 4294901760
      %5094 = vmatpush1.msra.mxu0 %v5093
      %v5095 = vand.u32 %v4991, 4294901760
      %v5096 = vsub.f32 %v4991, %v5095
      %v5097 = vand.u32 %v5096, 4294901760
      %v5098 = vsub.f32 %v5096, %v5097
      %v5099 = vand.u32 %v5098, 4294901760
      %5100 = vmatprep.subr.mxu0 %v5099
      %v5101 = vand.u32 %v4990, 4294901760
      %v5102 = vsub.f32 %v4990, %v5101
      %v5103 = vand.u32 %v5102, 4294901760
      %v5104 = vsub.f32 %v5102, %v5103
      %v5105 = vand.u32 %v5104, 4294901760
      %5106 = vmatpush1.msra.mxu0 %v5105
      %5107 = vmatprep.subr.mxu0 0.0
      %5108 = vmatpush1.msra.mxu0 0.0
      %5109 = vmatprep.subr.mxu0 0.0
      %5110 = vmatpush1.msra.mxu0 0.0
      %5111 = vmatprep.subr.mxu0 0.0
      %5112 = vmatpush1.msra.mxu0 0.0
      %5113 = vmatprep.subr.mxu0 0.0
      %5114 = vmatpush1.msra.mxu0 0.0
      %5115 = vmatprep.subr.mxu0 0.0
      %5116 = vmatpush1.msra.mxu0 0.0
      %5117 = vmatprep.subr.mxu0 0.0
      %5118 = vmatpush1.msra.mxu0 0.0
      %5119 = vmatprep.subr.mxu0 0.0
      %5120 = vmatpush1.msra.mxu0 0.0
      %5121 = vmatprep.subr.mxu0 0.0
      %5122 = vmatpush1.msra.mxu0 0.0
      %5123 = vmatprep.subr.mxu0 0.0
      %5124 = vmatpush1.msra.mxu0 0.0
      %5125 = vmatprep.subr.mxu0 0.0
      %5126 = vmatpush1.msra.mxu0 0.0
      %5127 = vmatprep.subr.mxu0 0.0
      %5128 = vmatpush1.msra.mxu0 0.0
      %5129 = vmatprep.subr.mxu0 0.0
      %5130 = vmatpush1.msra.mxu0 0.0
      %5131 = vmatprep.subr.mxu0 0.0
      %5132 = vmatpush1.msra.mxu0 0.0
      %5133 = vmatprep.subr.mxu0 0.0
      %5134 = vmatpush1.msra.mxu0 0.0
      %5135 = vmatprep.subr.mxu0 0.0
      %5136 = vmatpush1.msra.mxu0 0.0
      %5137 = vmatprep.subr.mxu0 0.0
      %5138 = vmatpush1.msra.mxu0 0.0
      %5139 = vmatprep.subr.mxu0 0.0
      %5140 = vmatpush1.msra.mxu0 0.0
      %5141 = vmatprep.subr.mxu0 0.0
      %5142 = vmatpush1.msra.mxu0 0.0
      %5143 = vmatprep.subr.mxu0 0.0
      %5144 = vmatpush1.msra.mxu0 0.0
      %5145 = vmatprep.subr.mxu0 0.0
      %5146 = vmatpush1.msra.mxu0 0.0
      %5147 = vmatprep.subr.mxu0 0.0
      %5148 = vmatpush1.msra.mxu0 0.0
      %5149 = vmatprep.subr.mxu0 0.0
      %5150 = vmatpush1.msra.mxu0 0.0
      %5151 = vmatprep.subr.mxu0 0.0
      %5152 = vmatpush1.msra.mxu0 0.0
      %5153 = vmatprep.subr.mxu0 0.0
      %5154 = vmatpush1.msra.mxu0 0.0
      %5155 = vmatprep.subr.mxu0 0.0
      %5156 = vmatpush1.msra.mxu0 0.0
      %5157 = vmatprep.subr.mxu0 0.0
      %5158 = vmatpush1.msra.mxu0 0.0
      %5159 = vmatprep.subr.mxu0 0.0
      %5160 = vmatpush1.msra.mxu0 0.0
      %5161 = vmatprep.subr.mxu0 0.0
      %5162 = vmatpush1.msra.mxu0 0.0
      %5163 = vmatprep.subr.mxu0 0.0
      %5164 = vmatpush1.msra.mxu0 0.0
      %5165 = vmatprep.subr.mxu0 0.0
      %5166 = vmatpush1.msra.mxu0 0.0
      %5167 = vmatprep.mubr.f32.mxu0 0.0
      %v5168 = vand.u32 %v5001, 4294901760
      %5169 = vmatmul.mubr.f32.gmra.mrb[0].mxu0 %v5168
      %v5170 = vpop.f32.mrb[0].mxu0
      %v5171 = vadd.f32 %v5079, %v5170
      %v5172 = vpop.f32.mrb[0].mxu0
      %v5173 = vadd.f32 %v5081, %v5172
      %5174 = vdwg.mxu0
      %v5175 = vand.u32 %v4989, 4294901760
      %v5176 = vsub.f32 %v4989, %v5175
      %5177 = vmatprep.subr.mxu0 %v5176
      %v5178 = vand.u32 %v4988, 4294901760
      %v5179 = vsub.f32 %v4988, %v5178
      %5180 = vmatpush1.msra.mxu0 %v5179
      %v5181 = vand.u32 %v4991, 4294901760
      %v5182 = vsub.f32 %v4991, %v5181
      %5183 = vmatprep.subr.mxu0 %v5182
      %v5184 = vand.u32 %v4990, 4294901760
      %v5185 = vsub.f32 %v4990, %v5184
      %5186 = vmatpush1.msra.mxu0 %v5185
      %5187 = vmatprep.subr.mxu0 0.0
      %5188 = vmatpush1.msra.mxu0 0.0
      %5189 = vmatprep.subr.mxu0 0.0
      %5190 = vmatpush1.msra.mxu0 0.0
      %5191 = vmatprep.subr.mxu0 0.0
      %5192 = vmatpush1.msra.mxu0 0.0
      %5193 = vmatprep.subr.mxu0 0.0
      %5194 = vmatpush1.msra.mxu0 0.0
      %5195 = vmatprep.subr.mxu0 0.0
      %5196 = vmatpush1.msra.mxu0 0.0
      %5197 = vmatprep.subr.mxu0 0.0
      %5198 = vmatpush1.msra.mxu0 0.0
      %5199 = vmatprep.subr.mxu0 0.0
      %5200 = vmatpush1.msra.mxu0 0.0
      %5201 = vmatprep.subr.mxu0 0.0
      %5202 = vmatpush1.msra.mxu0 0.0
      %5203 = vmatprep.subr.mxu0 0.0
      %5204 = vmatpush1.msra.mxu0 0.0
      %5205 = vmatprep.subr.mxu0 0.0
      %5206 = vmatpush1.msra.mxu0 0.0
      %5207 = vmatprep.subr.mxu0 0.0
      %5208 = vmatpush1.msra.mxu0 0.0
      %5209 = vmatprep.subr.mxu0 0.0
      %5210 = vmatpush1.msra.mxu0 0.0
      %5211 = vmatprep.subr.mxu0 0.0
      %5212 = vmatpush1.msra.mxu0 0.0
      %5213 = vmatprep.subr.mxu0 0.0
      %5214 = vmatpush1.msra.mxu0 0.0
      %5215 = vmatprep.subr.mxu0 0.0
      %5216 = vmatpush1.msra.mxu0 0.0
      %5217 = vmatprep.subr.mxu0 0.0
      %5218 = vmatpush1.msra.mxu0 0.0
      %5219 = vmatprep.subr.mxu0 0.0
      %5220 = vmatpush1.msra.mxu0 0.0
      %5221 = vmatprep.subr.mxu0 0.0
      %5222 = vmatpush1.msra.mxu0 0.0
      %5223 = vmatprep.subr.mxu0 0.0
      %5224 = vmatpush1.msra.mxu0 0.0
      %5225 = vmatprep.subr.mxu0 0.0
      %5226 = vmatpush1.msra.mxu0 0.0
      %5227 = vmatprep.subr.mxu0 0.0
      %5228 = vmatpush1.msra.mxu0 0.0
      %5229 = vmatprep.subr.mxu0 0.0
      %5230 = vmatpush1.msra.mxu0 0.0
      %5231 = vmatprep.subr.mxu0 0.0
      %5232 = vmatpush1.msra.mxu0 0.0
      %5233 = vmatprep.subr.mxu0 0.0
      %5234 = vmatpush1.msra.mxu0 0.0
      %5235 = vmatprep.subr.mxu0 0.0
      %5236 = vmatpush1.msra.mxu0 0.0
      %5237 = vmatprep.subr.mxu0 0.0
      %5238 = vmatpush1.msra.mxu0 0.0
      %5239 = vmatprep.subr.mxu0 0.0
      %5240 = vmatpush1.msra.mxu0 0.0
      %5241 = vmatprep.subr.mxu0 0.0
      %5242 = vmatpush1.msra.mxu0 0.0
      %5243 = vmatprep.subr.mxu0 0.0
      %5244 = vmatpush1.msra.mxu0 0.0
      %5245 = vmatprep.subr.mxu0 0.0
      %5246 = vmatpush1.msra.mxu0 0.0
      %5247 = vmatprep.mubr.f32.mxu0 0.0
      %v5248 = vand.u32 %v5001, 4294901760
      %v5249 = vsub.f32 %v5001, %v5248
      %5250 = vmatmul.mubr.f32.gmra.mrb[0].mxu0 %v5249
      %v5251 = vpop.f32.mrb[0].mxu0
      %v5252 = vadd.f32 %v5171, %v5251
      %v5253 = vpop.f32.mrb[0].mxu0
      %v5254 = vadd.f32 %v5173, %v5253
      %5255 = vdwg.mxu0
      %v5256 = vand.u32 %v4989, 4294901760
      %5257 = vmatprep.subr.mxu0 %v5256
      %v5258 = vand.u32 %v4988, 4294901760
      %5259 = vmatpush1.msra.mxu0 %v5258
      %v5260 = vand.u32 %v4991, 4294901760
      %5261 = vmatprep.subr.mxu0 %v5260
      %v5262 = vand.u32 %v4990, 4294901760
      %5263 = vmatpush1.msra.mxu0 %v5262
      %5264 = vmatprep.subr.mxu0 0.0
      %5265 = vmatpush1.msra.mxu0 0.0
      %5266 = vmatprep.subr.mxu0 0.0
      %5267 = vmatpush1.msra.mxu0 0.0
      %5268 = vmatprep.subr.mxu0 0.0
      %5269 = vmatpush1.msra.mxu0 0.0
      %5270 = vmatprep.subr.mxu0 0.0
      %5271 = vmatpush1.msra.mxu0 0.0
      %5272 = vmatprep.subr.mxu0 0.0
      %5273 = vmatpush1.msra.mxu0 0.0
      %5274 = vmatprep.subr.mxu0 0.0
      %5275 = vmatpush1.msra.mxu0 0.0
      %5276 = vmatprep.subr.mxu0 0.0
      %5277 = vmatpush1.msra.mxu0 0.0
      %5278 = vmatprep.subr.mxu0 0.0
      %5279 = vmatpush1.msra.mxu0 0.0
      %5280 = vmatprep.subr.mxu0 0.0
      %5281 = vmatpush1.msra.mxu0 0.0
      %5282 = vmatprep.subr.mxu0 0.0
      %5283 = vmatpush1.msra.mxu0 0.0
      %5284 = vmatprep.subr.mxu0 0.0
      %5285 = vmatpush1.msra.mxu0 0.0
      %5286 = vmatprep.subr.mxu0 0.0
      %5287 = vmatpush1.msra.mxu0 0.0
      %5288 = vmatprep.subr.mxu0 0.0
      %5289 = vmatpush1.msra.mxu0 0.0
      %5290 = vmatprep.subr.mxu0 0.0
      %5291 = vmatpush1.msra.mxu0 0.0
      %5292 = vmatprep.subr.mxu0 0.0
      %5293 = vmatpush1.msra.mxu0 0.0
      %5294 = vmatprep.subr.mxu0 0.0
      %5295 = vmatpush1.msra.mxu0 0.0
      %5296 = vmatprep.subr.mxu0 0.0
      %5297 = vmatpush1.msra.mxu0 0.0
      %5298 = vmatprep.subr.mxu0 0.0
      %5299 = vmatpush1.msra.mxu0 0.0
      %5300 = vmatprep.subr.mxu0 0.0
      %5301 = vmatpush1.msra.mxu0 0.0
      %5302 = vmatprep.subr.mxu0 0.0
      %5303 = vmatpush1.msra.mxu0 0.0
      %5304 = vmatprep.subr.mxu0 0.0
      %5305 = vmatpush1.msra.mxu0 0.0
      %5306 = vmatprep.subr.mxu0 0.0
      %5307 = vmatpush1.msra.mxu0 0.0
      %5308 = vmatprep.subr.mxu0 0.0
      %5309 = vmatpush1.msra.mxu0 0.0
      %5310 = vmatprep.subr.mxu0 0.0
      %5311 = vmatpush1.msra.mxu0 0.0
      %5312 = vmatprep.subr.mxu0 0.0
      %5313 = vmatpush1.msra.mxu0 0.0
      %5314 = vmatprep.subr.mxu0 0.0
      %5315 = vmatpush1.msra.mxu0 0.0
      %5316 = vmatprep.subr.mxu0 0.0
      %5317 = vmatpush1.msra.mxu0 0.0
      %5318 = vmatprep.subr.mxu0 0.0
      %5319 = vmatpush1.msra.mxu0 0.0
      %5320 = vmatprep.subr.mxu0 0.0
      %5321 = vmatpush1.msra.mxu0 0.0
      %5322 = vmatprep.subr.mxu0 0.0
      %5323 = vmatpush1.msra.mxu0 0.0
      %5324 = vmatprep.mubr.f32.mxu0 0.0
      %v5325 = vand.u32 %v5001, 4294901760
      %v5326 = vsub.f32 %v5001, %v5325
      %v5327 = vand.u32 %v5326, 4294901760
      %5328 = vmatmul.mubr.f32.gmra.mrb[0].mxu0 %v5327
      %v5329 = vpop.f32.mrb[0].mxu0
      %v5330 = vadd.f32 %v5252, %v5329
      %v5331 = vpop.f32.mrb[0].mxu0
      %v5332 = vadd.f32 %v5254, %v5331
      %5333 = vdwg.mxu0
      %v5334 = vand.u32 %v4989, 4294901760
      %v5335 = vsub.f32 %v4989, %v5334
      %v5336 = vand.u32 %v5335, 4294901760
      %5337 = vmatprep.subr.mxu0 %v5336
      %v5338 = vand.u32 %v4988, 4294901760
      %v5339 = vsub.f32 %v4988, %v5338
      %v5340 = vand.u32 %v5339, 4294901760
      %5341 = vmatpush1.msra.mxu0 %v5340
      %v5342 = vand.u32 %v4991, 4294901760
      %v5343 = vsub.f32 %v4991, %v5342
      %v5344 = vand.u32 %v5343, 4294901760
      %5345 = vmatprep.subr.mxu0 %v5344
      %v5346 = vand.u32 %v4990, 4294901760
      %v5347 = vsub.f32 %v4990, %v5346
      %v5348 = vand.u32 %v5347, 4294901760
      %5349 = vmatpush1.msra.mxu0 %v5348
      %5350 = vmatprep.subr.mxu0 0.0
      %5351 = vmatpush1.msra.mxu0 0.0
      %5352 = vmatprep.subr.mxu0 0.0
      %5353 = vmatpush1.msra.mxu0 0.0
      %5354 = vmatprep.subr.mxu0 0.0
      %5355 = vmatpush1.msra.mxu0 0.0
      %5356 = vmatprep.subr.mxu0 0.0
      %5357 = vmatpush1.msra.mxu0 0.0
      %5358 = vmatprep.subr.mxu0 0.0
      %5359 = vmatpush1.msra.mxu0 0.0
      %5360 = vmatprep.subr.mxu0 0.0
      %5361 = vmatpush1.msra.mxu0 0.0
      %5362 = vmatprep.subr.mxu0 0.0
      %5363 = vmatpush1.msra.mxu0 0.0
      %5364 = vmatprep.subr.mxu0 0.0
      %5365 = vmatpush1.msra.mxu0 0.0
      %5366 = vmatprep.subr.mxu0 0.0
      %5367 = vmatpush1.msra.mxu0 0.0
      %5368 = vmatprep.subr.mxu0 0.0
      %5369 = vmatpush1.msra.mxu0 0.0
      %5370 = vmatprep.subr.mxu0 0.0
      %5371 = vmatpush1.msra.mxu0 0.0
      %5372 = vmatprep.subr.mxu0 0.0
      %5373 = vmatpush1.msra.mxu0 0.0
      %5374 = vmatprep.subr.mxu0 0.0
      %5375 = vmatpush1.msra.mxu0 0.0
      %5376 = vmatprep.subr.mxu0 0.0
      %5377 = vmatpush1.msra.mxu0 0.0
      %5378 = vmatprep.subr.mxu0 0.0
      %5379 = vmatpush1.msra.mxu0 0.0
      %5380 = vmatprep.subr.mxu0 0.0
      %5381 = vmatpush1.msra.mxu0 0.0
      %5382 = vmatprep.subr.mxu0 0.0
      %5383 = vmatpush1.msra.mxu0 0.0
      %5384 = vmatprep.subr.mxu0 0.0
      %5385 = vmatpush1.msra.mxu0 0.0
      %5386 = vmatprep.subr.mxu0 0.0
      %5387 = vmatpush1.msra.mxu0 0.0
      %5388 = vmatprep.subr.mxu0 0.0
      %5389 = vmatpush1.msra.mxu0 0.0
      %5390 = vmatprep.subr.mxu0 0.0
      %5391 = vmatpush1.msra.mxu0 0.0
      %5392 = vmatprep.subr.mxu0 0.0
      %5393 = vmatpush1.msra.mxu0 0.0
      %5394 = vmatprep.subr.mxu0 0.0
      %5395 = vmatpush1.msra.mxu0 0.0
      %5396 = vmatprep.subr.mxu0 0.0
      %5397 = vmatpush1.msra.mxu0 0.0
      %5398 = vmatprep.subr.mxu0 0.0
      %5399 = vmatpush1.msra.mxu0 0.0
      %5400 = vmatprep.subr.mxu0 0.0
      %5401 = vmatpush1.msra.mxu0 0.0
      %5402 = vmatprep.subr.mxu0 0.0
      %5403 = vmatpush1.msra.mxu0 0.0
      %5404 = vmatprep.subr.mxu0 0.0
      %5405 = vmatpush1.msra.mxu0 0.0
      %5406 = vmatprep.subr.mxu0 0.0
      %5407 = vmatpush1.msra.mxu0 0.0
      %5408 = vmatprep.subr.mxu0 0.0
      %5409 = vmatpush1.msra.mxu0 0.0
      %5410 = vmatprep.mubr.f32.mxu0 0.0
      %v5411 = vand.u32 %v5001, 4294901760
      %5412 = vmatmul.mubr.f32.gmra.mrb[0].mxu0 %v5411
      %v5413 = vpop.f32.mrb[0].mxu0
      %v5414 = vadd.f32 %v5330, %v5413
      %v5415 = vpop.f32.mrb[0].mxu0
      %v5416 = vadd.f32 %v5332, %v5415
      %5417 = vdwg.mxu0
      %v5418 = vand.u32 %v4989, 4294901760
      %5419 = vmatprep.subr.mxu0 %v5418
      %v5420 = vand.u32 %v4988, 4294901760
      %5421 = vmatpush1.msra.mxu0 %v5420
      %v5422 = vand.u32 %v4991, 4294901760
      %5423 = vmatprep.subr.mxu0 %v5422
      %v5424 = vand.u32 %v4990, 4294901760
      %5425 = vmatpush1.msra.mxu0 %v5424
      %5426 = vmatprep.subr.mxu0 0.0
      %5427 = vmatpush1.msra.mxu0 0.0
      %5428 = vmatprep.subr.mxu0 0.0
      %5429 = vmatpush1.msra.mxu0 0.0
      %5430 = vmatprep.subr.mxu0 0.0
      %5431 = vmatpush1.msra.mxu0 0.0
      %5432 = vmatprep.subr.mxu0 0.0
      %5433 = vmatpush1.msra.mxu0 0.0
      %5434 = vmatprep.subr.mxu0 0.0
      %5435 = vmatpush1.msra.mxu0 0.0
      %5436 = vmatprep.subr.mxu0 0.0
      %5437 = vmatpush1.msra.mxu0 0.0
      %5438 = vmatprep.subr.mxu0 0.0
      %5439 = vmatpush1.msra.mxu0 0.0
      %5440 = vmatprep.subr.mxu0 0.0
      %5441 = vmatpush1.msra.mxu0 0.0
      %5442 = vmatprep.subr.mxu0 0.0
      %5443 = vmatpush1.msra.mxu0 0.0
      %5444 = vmatprep.subr.mxu0 0.0
      %5445 = vmatpush1.msra.mxu0 0.0
      %5446 = vmatprep.subr.mxu0 0.0
      %5447 = vmatpush1.msra.mxu0 0.0
      %5448 = vmatprep.subr.mxu0 0.0
      %5449 = vmatpush1.msra.mxu0 0.0
      %5450 = vmatprep.subr.mxu0 0.0
      %5451 = vmatpush1.msra.mxu0 0.0
      %5452 = vmatprep.subr.mxu0 0.0
      %5453 = vmatpush1.msra.mxu0 0.0
      %5454 = vmatprep.subr.mxu0 0.0
      %5455 = vmatpush1.msra.mxu0 0.0
      %5456 = vmatprep.subr.mxu0 0.0
      %5457 = vmatpush1.msra.mxu0 0.0
      %5458 = vmatprep.subr.mxu0 0.0
      %5459 = vmatpush1.msra.mxu0 0.0
      %5460 = vmatprep.subr.mxu0 0.0
      %5461 = vmatpush1.msra.mxu0 0.0
      %5462 = vmatprep.subr.mxu0 0.0
      %5463 = vmatpush1.msra.mxu0 0.0
      %5464 = vmatprep.subr.mxu0 0.0
      %5465 = vmatpush1.msra.mxu0 0.0
      %5466 = vmatprep.subr.mxu0 0.0
      %5467 = vmatpush1.msra.mxu0 0.0
      %5468 = vmatprep.subr.mxu0 0.0
      %5469 = vmatpush1.msra.mxu0 0.0
      %5470 = vmatprep.subr.mxu0 0.0
      %5471 = vmatpush1.msra.mxu0 0.0
      %5472 = vmatprep.subr.mxu0 0.0
      %5473 = vmatpush1.msra.mxu0 0.0
      %5474 = vmatprep.subr.mxu0 0.0
      %5475 = vmatpush1.msra.mxu0 0.0
      %5476 = vmatprep.subr.mxu0 0.0
      %5477 = vmatpush1.msra.mxu0 0.0
      %5478 = vmatprep.subr.mxu0 0.0
      %5479 = vmatpush1.msra.mxu0 0.0
      %5480 = vmatprep.subr.mxu0 0.0
      %5481 = vmatpush1.msra.mxu0 0.0
      %5482 = vmatprep.subr.mxu0 0.0
      %5483 = vmatpush1.msra.mxu0 0.0
      %5484 = vmatprep.subr.mxu0 0.0
      %5485 = vmatpush1.msra.mxu0 0.0
      %5486 = vmatprep.mubr.f32.mxu0 0.0
      %v5487 = vand.u32 %v5001, 4294901760
      %5488 = vmatmul.mubr.f32.gmra.mrb[0].mxu0 %v5487
      %v5489 = vpop.f32.mrb[0].mxu0
      %v5490 = vadd.f32 %v5414, %v5489
      %v5491 = vpop.f32.mrb[0].mxu0
      %v5492 = vadd.f32 %v5416, %v5491
      %5493 = vdwg.mxu0
      %v5496 = vcombine.low %v5490, %v5492
      %5498 = vst [vmem:[%s457] sm:$0xff] %v5496
      %p5499 = scmp.lt.s32.totalorder %s24, 1
      %s5500 = scalar_select %p5499, %s24, 1
      %s5501 = smul.addr %s5500, 2
      %s5502 = smul.addr %s5501, 4
      %s5503 = scalar_lea.vmem %s13, %s5502
      // Predicated region
      $region73: #{hformer_block_forward.1} parent=71 // pred_check
        %p5504 = pneg %p325
      $region74: #{hformer_block_forward.1} parent=71 // pred_check_branch
        %5506 = sbr.rel (%p5504) target = $region76
      $region75: #{hformer_block_forward.1} parent=71 // pred_region
        _
      $region76: #{hformer_block_forward.1} parent=71 // pred_fallthru
        _
    $region72: #{hformer_block_forward.1} parent=5 // pred_fallthru
      _
    %p5507 = scmp.le.s32.totalorder 2, %s19
    // Predicated region
    $region77: #{hformer_block_forward.1} parent=5 // pred_check
      %p5508 = pneg %p5507
    $region78: #{hformer_block_forward.1} parent=5 // pred_check_branch
      %5510 = sbr.rel (%p5508) target = $region80
    $region79: #{hformer_block_forward.1} parent=5 // pred_region
      %s5511 = ssub.s32 %s19, 2
      // Predicated region
      $region81: #{hformer_block_forward.1} parent=79 // pred_check
        %p5512 = pneg %p331
      $region82: #{hformer_block_forward.1} parent=79 // pred_check_branch
        %5514 = sbr.rel (%p5512) target = $region84
      $region83: #{hformer_block_forward.1} parent=79 // pred_region
        %p5515 = scmp.lt.s32.totalorder %s25, 1
        %s5516 = scalar_select %p5515, %s25, 1
        %s5517 = smul.addr %s5516, 2
        %s5518 = smul.addr %s5517, 4
        %s5519 = scalar_lea.vmem %s13, %s5518
      $region84: #{hformer_block_forward.1} parent=79 // pred_fallthru
        _
    $region80: #{hformer_block_forward.1} parent=5 // pred_fallthru
      _
  $region6: #{hformer_block_forward.1} parent=0 // loop_footer
    %s23 = sadd.s32 1, %s19
  $region7: #{hformer_block_forward.1} parent=0 // loop_footer_branch
    %18 = sbr.rel target = $region3
  $region8: #{hformer_block_forward.1} parent=0 // loop_exit
    _

</llo_original>
